<compile_context>
chip_gen: v7x
topology: tpu7x:2x2x1
jax: 0.10.0
libtpu: 0.0.40
codegen_flags: <defaults>
</compile_context>

<pallas_src>
import math

import numpy as np
import jax
import jax.numpy as jnp
from jax import lax
from jax.experimental import pallas as pl
from jax.experimental.pallas import tpu as pltpu


_BIG = 1e30   # sentinel so padded frequency bins never win the median


def _round_up(v, m):
    return ((v + m - 1) // m) * m


# ----------------------------------------------------------------------------
# DFT matrices (ortho rfft / irfft along an axis of length N)
# ----------------------------------------------------------------------------
def _dft_matrices(N, Kp):
    """fwd: (2*Kp, N) rows [0:K]=Re(rfft), [Kp:Kp+K]=Im(rfft).
    invr/invi: (N, Kp) act on Re(y) / Im(y).  Padded rows/cols are zero."""
    K = N // 2 + 1
    n = np.arange(N)
    k = np.arange(K)
    ang = 2.0 * np.pi * np.outer(k, n) / N
    cre = np.cos(ang) / np.sqrt(N)                       # (K, N)
    cim = -np.sin(ang) / np.sqrt(N)                      # (K, N)
    c = np.full(K, 2.0)
    c[0] = 1.0
    if N % 2 == 0:
        c[-1] = 1.0
    ang2 = 2.0 * np.pi * np.outer(n, k) / N
    dr = c[None, :] * np.cos(ang2) / np.sqrt(N)          # (N, K)
    di = -c[None, :] * np.sin(ang2) / np.sqrt(N)         # (N, K)

    fwd = np.zeros((2 * Kp, N), np.float32)
    fwd[:K] = cre
    fwd[Kp:Kp + K] = cim
    invr = np.zeros((N, Kp), np.float32)
    invi = np.zeros((N, Kp), np.float32)
    invr[:, :K] = dr
    invi[:, :K] = di
    return fwd, invr, invi


# ----------------------------------------------------------------------------
# In-kernel torch-style lower median (rank counting)
# ----------------------------------------------------------------------------
def _lower_median(e_m, K, Kp, axis):
    """Lower median along `axis` over the first K entries; e_m must already
    hold _BIG at padded (>= K) positions along that axis."""
    m = (K - 1) // 2
    zeros = jnp.zeros_like(e_m)
    if Kp <= 32:
        cnt_lt, cnt_le = zeros, zeros
        for j in range(Kp):                              # small static unroll
            ej = lax.slice_in_dim(e_m, j, j + 1, axis=axis)
            cnt_lt = cnt_lt + (ej < e_m).astype(jnp.float32)
            cnt_le = cnt_le + (ej <= e_m).astype(jnp.float32)
    else:
        # bounded-live-range version for large Kp (feedback: don't unroll)
        row = lax.broadcasted_iota(jnp.int32, e_m.shape, axis)

        def body(j, carry):
            clt, cle = carry
            ej = jnp.max(jnp.where(row == j, e_m, -_BIG), axis=axis,
                         keepdims=True)
            return (clt + (ej < e_m).astype(jnp.float32),
                    cle + (ej <= e_m).astype(jnp.float32))

        cnt_lt, cnt_le = lax.fori_loop(0, Kp, body, (zeros, zeros))
    is_med = (cnt_lt <= m) & (cnt_le > m)
    return jnp.max(jnp.where(is_med, e_m, -1.0), axis=axis, keepdims=True)


# ----------------------------------------------------------------------------
# Kernel A: natural layout (Bt, N, HW) blocks, used when HW % 128 == 0
# ----------------------------------------------------------------------------
def _make_kernel_natural(K, Kp, HW, Bt):
    def kernel(x_ref, fwd_ref, invr_ref, invi_ref, w_ref, thr_ref, o_ref):
        # x_ref/o_ref: (Bt, N, HW); fwd: (2Kp, N) f32; invr/invi: (N, Kp) bf16
        # w_ref: (4, HW) f32 rows = [g0*w_re, g0*w_im, g1*wh_re, g1*wh_im]
        thr = thr_ref[0]
        fwd = fwd_ref[...]
        invr = invr_ref[...]
        invi = invi_ref[...]
        ar = w_ref[0:1, :]
        ai = w_ref[1:2, :]
        br = w_ref[2:3, :]
        bi = w_ref[3:4, :]
        row = lax.broadcasted_iota(jnp.int32, (Kp, 1), 0)

        for b in range(Bt):                               # small static unroll
            x = x_ref[b].astype(jnp.float32)              # (N, HW)
            # f32 HIGHEST on purpose: the hard threshold decision below must
            # not move (reviewer correctness caveat).
            xs = jnp.dot(fwd, x, preferred_element_type=jnp.float32,
                         precision=lax.Precision.HIGHEST)     # (2Kp, HW)
            xr = xs[:Kp, :]
            xi = xs[Kp:, :]
            e = xr * xr + xi * xi
            energy = jnp.sum(e, axis=-1, keepdims=True)       # (Kp, 1)
            e_m = jnp.where(row < K, energy, _BIG)
            median = _lower_median(e_m, K, Kp, axis=0)        # (1, 1)
            # energy/(median+eps) > thr  <=>  energy > thr*(median+eps)
            mask = (energy > thr * (median + 1e-6)).astype(jnp.float32)
            cr = ar + mask * br                               # (Kp, HW)
            ci = ai + mask * bi
            yr = (xr * cr - xi * ci).astype(jnp.bfloat16)
            yi = (xr * ci + xi * cr).astype(jnp.bfloat16)
            # split irfft: no (2Kp, HW) concatenate / copy before the MXU
            out = jnp.dot(invr, yr, preferred_element_type=jnp.float32)
            out = out + jnp.dot(invi, yi, preferred_element_type=jnp.float32)
            o_ref[b] = out.astype(o_ref.dtype)

    return kernel


# ----------------------------------------------------------------------------
# Kernel B: lane-flat layout (N, Bt*HW) blocks, used when HW % 128 != 0
# ----------------------------------------------------------------------------
def _make_kernel_flat(K, Kp, HW, Bt, Btp):
    L = Bt * HW

    def kernel(x_ref, fwd_ref, invr_ref, invi_ref, w_ref, thr_ref, o_ref):
        x = x_ref[...].astype(jnp.float32)                    # (N, L)
        xs = jnp.dot(fwd_ref[...], x, preferred_element_type=jnp.float32,
                     precision=lax.Precision.HIGHEST)         # (2Kp, L)
        xr = xs[:Kp, :]
        xi = xs[Kp:, :]
        e = xr * xr + xi * xi                                 # (Kp, L)

        # 0/1 batch-membership generated in-kernel (no HBM S / S^T arrays).
        lane = lax.broadcasted_iota(jnp.int32, (L, Btp), 0)
        blo = lax.broadcasted_iota(jnp.int32, (L, Btp), 1) * HW
        s = ((lane >= blo) & (lane < blo + HW)).astype(jnp.float32)   # (L,Btp)
        energy = jnp.dot(e, s, preferred_element_type=jnp.float32,
                         precision=lax.Precision.HIGHEST)     # (Kp, Btp)

        row = lax.broadcasted_iota(jnp.int32, energy.shape, 0)
        e_m = jnp.where(row < K, energy, _BIG)
        median = _lower_median(e_m, K, Kp, axis=0)            # (1, Btp)

        thr = thr_ref[0]
        mask = (energy > thr * (median + 1e-6)).astype(jnp.bfloat16)  # (Kp,Btp)

        # broadcast the per-batch mask to lanes: 0/1 x 0/1 matmul, exact bf16.
        brow = lax.broadcasted_iota(jnp.int32, (Btp, L), 0) * HW
        lane2 = lax.broadcasted_iota(jnp.int32, (Btp, L), 1)
        st = ((lane2 >= brow) & (lane2 < brow + HW)).astype(jnp.bfloat16)
        mfull = jnp.dot(mask, st, preferred_element_type=jnp.float32)  # (Kp,L)

        ar = w_ref[0:1, :]
        ai = w_ref[1:2, :]
        br = w_ref[2:3, :]
        bi = w_ref[3:4, :]
        cr = ar + mfull * br
        ci = ai + mfull * bi
        yr = (xr * cr - xi * ci).astype(jnp.bfloat16)
        yi = (xr * ci + xi * cr).astype(jnp.bfloat16)

        # split irfft: two dots on pre-split halves (no concat copy).
        out = jnp.dot(invr_ref[...], yr, preferred_element_type=jnp.float32)
        out = out + jnp.dot(invi_ref[...], yi, preferred_element_type=jnp.float32)
        o_ref[...] = out.astype(o_ref.dtype)

    return kernel


# ----------------------------------------------------------------------------
# Generation-aware VMEM budgeting + batch-tile selection
# ----------------------------------------------------------------------------
def _vmem_capacity_bytes():
    try:
        cap = int(pltpu.get_tpu_info().vmem_capacity_bytes)
        if cap > 0:
            return cap
    except Exception:
        pass
    try:
        kind = jax.devices()[0].device_kind.lower()
    except Exception:
        kind = ""
    if "v7" in kind:
        return 64 * 1024 * 1024
    if "v2" in kind or "v3" in kind:
        return 16 * 1024 * 1024
    return 128 * 1024 * 1024          # v4 / v5e / v5p / v6e


def _vmem_limit_bytes():
    cap = _vmem_capacity_bytes()
    return min(int(cap * 3 // 4), 96 * 1024 * 1024)


def _flat_tile_bytes(bt, N, HW, Kp, io_bytes):
    L = bt * HW
    btp = _round_up(bt, 8)
    io = 2 * N * L * io_bytes * 2                      # double-buffered x + out
    consts = 2 * (2 * Kp * N * 4 + 2 * N * Kp * 2 + 4 * L * 4)
    tmp = 2 * N * L * 4 + 10 * Kp * L * 4 + 2 * L * btp * 4
    return io + consts + tmp


def _natural_tile_bytes(bt, N, HW, Kp, io_bytes):
    io = 2 * bt * N * HW * io_bytes * 2
    consts = 2 * (2 * Kp * N * 4 + 2 * N * Kp * 2 + 4 * HW * 4)
    tmp = 2 * N * HW * 4 + 10 * Kp * HW * 4            # per-batch working set
    return io + consts + tmp


def _choose_bt(B, fits, lane_dense, max_bt):
    cands = list(range(1, max(1, max_bt) + 1))
    feas = [bt for bt in cands if fits(bt)] or [1]
    dense = [bt for bt in feas if lane_dense(bt)]

    def steps(bt):
        return -(-B // bt)

    # prefer lane-dense tiles; among those prefer >= 4 grid steps (v7x megacore
    # pipelining), then >= 2, then anything; take the largest tile that fits.
    for pool in (dense, feas):
        for min_steps in (4, 2, 1):
            pick = [bt for bt in pool if steps(bt) >= min_steps]
            if pick:
                return max(pick)
    return 1


def _const_spec(shape, single_buffer):
    nd = len(shape)
    index_map = lambda i: (0,) * nd
    if single_buffer:
        # constant across the grid -> single-buffer its VMEM copy
        return pl.BlockSpec(shape, index_map, pipeline_mode=pl.Buffered(1))
    return pl.BlockSpec(shape, index_map)


# ----------------------------------------------------------------------------
# Wrapper
# ----------------------------------------------------------------------------
def adaptive_spectral_block(x, complex_weight, complex_weight_high, gammb,
                            threshold_param, batch_tile=None):
    """Forward pass of Adaptive_Spectral_Block with adaptive_filter=True.

    x: (B, N, H, W); complex_weight[_high]: (H*W, 2); gammb: (2,); thr: (1,)
    """
    B, N, H, W = x.shape
    HW = H * W
    K = N // 2 + 1
    Kp = _round_up(K, 8)
    in_dtype = x.dtype
    io_bytes = max(jnp.dtype(in_dtype).itemsize, 4)

    fwd_np, invr_np, invi_np = _dft_matrices(N, Kp)
    fwd = jnp.asarray(fwd_np, jnp.float32)     # f32: exact energy / mask path
    invr = jnp.asarray(invr_np, jnp.bfloat16)  # bf16: single-pass MXU irfft
    invi = jnp.asarray(invi_np, jnp.bfloat16)

    w = jnp.asarray(complex_weight, jnp.float32)
    wh = jnp.asarray(complex_weight_high, jnp.float32)
    g = jnp.asarray(gammb, jnp.float32)
    # fold gammb into the weights once:
    # rows = [Re(g0*w), Im(g0*w), Re(g1*wh), Im(g1*wh)]
    wrow = jnp.stack([g[0] * w[:, 0], g[0] * w[:, 1],
                      g[1] * wh[:, 0], g[1] * wh[:, 1]], axis=0)     # (4, HW)
    thr = jnp.asarray(threshold_param, jnp.float32).reshape(1)

    vmem_limit = _vmem_limit_bytes()
    budget = max(vmem_limit - (1 << 20), 4 * 1024 * 1024)
    cparams = pltpu.CompilerParams(dimension_semantics=("parallel",),
                                   vmem_limit_bytes=int(vmem_limit))

    natural = (HW % 128 == 0)

    if natural:
        # ---------- natural (B, N, HW) layout: no wrapper HBM transposes ----
        if batch_tile is not None:
            Bt = int(batch_tile)
        else:
            Bt = _choose_bt(
                B,
                fits=lambda bt: _natural_tile_bytes(bt, N, HW, Kp, io_bytes) <= budget,
                lane_dense=lambda bt: True,
                max_bt=min(B, 8))                       # cap static unroll
        Bp = _round_up(B, Bt)
        G = Bp // Bt

        x3 = x.reshape(B, N, HW)
        if Bp != B:
            x3 = jnp.pad(x3, ((0, Bp - B), (0, 0), (0, 0)))

        cost = pl.CostEstimate(
            flops=int(4 * (2 * Kp) * N * Bp * HW + 12 * Kp * Bp * HW),
            transcendentals=0,
            bytes_accessed=int(2 * Bp * N * HW * io_bytes
                               + (2 * Kp * N + 2 * N * Kp + 4 * HW) * 4))
        kernel = _make_kernel_natural(K, Kp, HW, Bt)
        out_shape = jax.ShapeDtypeStruct((Bp, N, HW), in_dtype)

        def call(single_buf):
            return pl.pallas_call(
                kernel,
                out_shape=out_shape,
                grid=(G,),
                in_specs=[
                    pl.BlockSpec((Bt, N, HW), lambda i: (i, 0, 0)),
                    _const_spec((2 * Kp, N), single_buf),
                    _const_spec((N, Kp), single_buf),
                    _const_spec((N, Kp), single_buf),
                    _const_spec((4, HW), single_buf),
                    pl.BlockSpec(memory_space=pltpu.MemorySpace.SMEM),
                ],
                out_specs=pl.BlockSpec((Bt, N, HW), lambda i: (i, 0, 0)),
                compiler_params=cparams,
                cost_estimate=cost,
            )(x3, fwd, invr, invi, wrow, thr)

        try:
            out3 = call(True)
        except Exception:   # fall back if Buffered(1) is not supported
            out3 = call(False)
        return out3[:B].reshape(B, N, H, W)

    # -------- lane-flat (N, B*HW) layout (HW not a multiple of 128) ---------
    lane_dense = lambda bt: (bt * HW) % 128 == 0
    fits = lambda bt: _flat_tile_bytes(bt, N, HW, Kp, io_bytes) <= budget
    max_bt = B
    if not any(lane_dense(bt) and fits(bt) for bt in range(1, B + 1)):
        # allow padding the batch axis (bounded to <= 2x work) to regain
        # lane-dense (unmasked) stores.
        min_dense = 128 // math.gcd(HW, 128)
        if min_dense <= 2 * B and fits(min_dense):
            max_bt = min_dense
    Bt = int(batch_tile) if batch_tile is not None else _choose_bt(
        B, fits, lane_dense, max_bt)
    Bp = _round_up(B, Bt)
    G = Bp // Bt
    L = Bt * HW
    Btp = _round_up(Bt, 8)

    x3 = x.reshape(B, N, HW)
    if Bp != B:
        x3 = jnp.pad(x3, ((0, Bp - B), (0, 0), (0, 0)))
    # (Bp, N, HW) -> (N, Bp*HW): N on sublanes (DFT contraction axis),
    # batch*spatial flattened on lanes so all kernel I/O is lane-dense.
    x2 = jnp.transpose(x3, (1, 0, 2)).reshape(N, Bp * HW)
    wtile = jnp.tile(wrow, (1, Bt))                                  # (4, L)

    cost = pl.CostEstimate(
        flops=int(4 * (2 * Kp) * N * Bp * HW + 12 * Kp * Bp * HW),
        transcendentals=0,
        bytes_accessed=int(2 * Bp * N * HW * io_bytes
                           + (2 * Kp * N + 2 * N * Kp + 4 * L) * 4))
    kernel = _make_kernel_flat(K, Kp, HW, Bt, Btp)
    out_shape = jax.ShapeDtypeStruct((N, Bp * HW), in_dtype)

    def call(single_buf):
        return pl.pallas_call(
            kernel,
            out_shape=out_shape,
            grid=(G,),
            in_specs=[
                pl.BlockSpec((N, L), lambda i: (0, i)),
                _const_spec((2 * Kp, N), single_buf),
                _const_spec((N, Kp), single_buf),
                _const_spec((N, Kp), single_buf),
                _const_spec((4, L), single_buf),
                pl.BlockSpec(memory_space=pltpu.MemorySpace.SMEM),
            ],
            out_specs=pl.BlockSpec((N, L), lambda i: (0, i)),
            compiler_params=cparams,
            cost_estimate=cost,
        )(x2, fwd, invr, invi, wtile, thr)

    try:
        out2 = call(True)
    except Exception:       # fall back if Buffered(1) is not supported
        out2 = call(False)

    out = jnp.transpose(out2.reshape(N, Bp, H, W), (1, 0, 2, 3))
    return out[:B]


# ----------------------------------------------------------------------------
# Pure numpy reference (replicates the PyTorch forward)
# ----------------------------------------------------------------------------
def _reference_numpy(x, w, wh, g, thr):
    x = np.asarray(x)
    w = np.asarray(w)
    wh = np.asarray(wh)
    g = np.asarray(g)
    t = float(np.asarray(thr)[0])
    B, N, H, W = x.shape
    xf = np.fft.rfft(x.astype(np.float32), axis=1, norm="ortho")
    K = xf.shape[1]
    xf = xf.reshape(B, K, H * W)
    weight = w[:, 0] + 1j * w[:, 1]
    xw = xf * weight
    energy = np.sum(np.abs(xf) ** 2, axis=-1)                        # (B, K)
    med = np.sort(energy, axis=1)[:, (K - 1) // 2][:, None]          # lower median
    norm_e = energy / (med + 1e-6)
    mask = (norm_e > t).astype(np.float32)[..., None]
    whc = wh[:, 0] + 1j * wh[:, 1]
    xw2 = (xf * mask) * whc
    y = g[0] * xw + g[1] * xw2
    y = y.reshape(B, K, H, W)
    out = np.fft.irfft(y, n=N, axis=1, norm="ortho")
    return out.astype(x.dtype)


if __name__ == "__main__":
    def _init_params(key, HW):
        k1, k2, k3 = jax.random.split(key, 3)
        w = 0.02 * jax.random.truncated_normal(k1, -2.0, 2.0, (HW, 2), jnp.float32)
        wh = 0.02 * jax.random.truncated_normal(k2, -2.0, 2.0, (HW, 2), jnp.float32)
        g = jnp.ones((2,), jnp.float32)
        t = jax.random.uniform(k3, (1,), jnp.float32)
        return w, wh, g, t

    key = jax.random.PRNGKey(0)
    kA, kB, kx1, kx2 = jax.random.split(key, 4)

    # Case 1: HW = 64 (< 128) -> lane-flat path (batch axis padded onto lanes).
    B1, N1, H1, W1 = 8, 16, 8, 8
    w1, wh1, g1, t1 = _init_params(kA, H1 * W1)
    x1 = jax.random.normal(kx1, (B1, N1, H1, W1), jnp.float32)
    out1 = jax.block_until_ready(adaptive_spectral_block(x1, w1, wh1, g1, t1))
    ref1 = _reference_numpy(x1, w1, wh1, g1, t1)
    np.testing.assert_allclose(np.asarray(out1), ref1, atol=2e-3, rtol=2e-2)

    # Case 2: HW = 256 (% 128 == 0) -> natural layout, no wrapper transposes.
    B2, N2, H2, W2 = 4, 16, 16, 16
    w2, wh2, g2, t2 = _init_params(kB, H2 * W2)
    x2 = jax.random.normal(kx2, (B2, N2, H2, W2), jnp.float32)
    out2 = jax.block_until_ready(adaptive_spectral_block(x2, w2, wh2, g2, t2))
    ref2 = _reference_numpy(x2, w2, wh2, g2, t2)
    np.testing.assert_allclose(np.asarray(out2), ref2, atol=2e-3, rtol=2e-2)

    print("KERNEL_OK")
</pallas_src>

<mosaic_0001>
module attributes {stable_mosaic.version = 11 : i64} {
  func.func @kernel(%arg0: i32, %arg1: memref<16x128xf32, #tpu.memory_space<vmem>>, %arg2: memref<32x16xf32, #tpu.memory_space<vmem>>, %arg3: memref<16x16xbf16, #tpu.memory_space<vmem>>, %arg4: memref<16x16xbf16, #tpu.memory_space<vmem>>, %arg5: memref<4x128xf32, #tpu.memory_space<vmem>>, %arg6: memref<1xf32, #tpu.memory_space<smem>>, %arg7: memref<16x128xf32, #tpu.memory_space<vmem>>) attributes {dimension_semantics = [#tpu.dimension_semantics<parallel>], iteration_bounds = array<i64: 4>, scalar_prefetch = 0 : i64, scratch_operands = 0 : i64, tpu.core_type = #tpu.core_type<tc>, window_params = [{transform_indices = @transform_0, window_bounds = array<i64: 16, 128>}, {pipeline_mode = #tpu.pipeline_mode<synchronous>, transform_indices = @transform_1, window_bounds = array<i64: 32, 16>}, {pipeline_mode = #tpu.pipeline_mode<synchronous>, transform_indices = @transform_2, window_bounds = array<i64: 16, 16>}, {pipeline_mode = #tpu.pipeline_mode<synchronous>, transform_indices = @transform_3, window_bounds = array<i64: 16, 16>}, {pipeline_mode = #tpu.pipeline_mode<synchronous>, transform_indices = @transform_4, window_bounds = array<i64: 4, 128>}, {transform_indices = @transform_5, window_bounds = array<i64: 1>}, {transform_indices = @transform_6, window_bounds = array<i64: 16, 128>}]} {
    %c0 = arith.constant 0 : index
    %c0_0 = arith.constant 0 : index
    %0 = vector.load %arg1[%c0, %c0_0] : memref<16x128xf32, #tpu.memory_space<vmem>>, vector<16x128xf32>
    %c0_1 = arith.constant 0 : index
    %c0_2 = arith.constant 0 : index
    %1 = vector.load %arg2[%c0_1, %c0_2] : memref<32x16xf32, #tpu.memory_space<vmem>>, vector<32x16xf32>
    %cst = arith.constant dense<0.000000e+00> : vector<32x128xf32>
    %2 = tpu.matmul %1, %0, %cst {dimension_numbers = #tpu.dot_dimension_numbers<[1], [0], [0], [1], [0, 0, 1, 1], [], []>, precision = #tpu.contract_precision<fp32>} : vector<32x16xf32>, vector<16x128xf32>, vector<32x128xf32> -> vector<32x128xf32>
    %3 = vector.extract_strided_slice %2 {offsets = [0, 0], sizes = [16, 128], strides = [1, 1]} : vector<32x128xf32> to vector<16x128xf32>
    %4 = vector.extract_strided_slice %2 {offsets = [16, 0], sizes = [16, 128], strides = [1, 1]} : vector<32x128xf32> to vector<16x128xf32>
    %5 = arith.mulf %3, %3 : vector<16x128xf32>
    %6 = arith.mulf %4, %4 : vector<16x128xf32>
    %7 = arith.addf %5, %6 : vector<16x128xf32>
    %8 = tpu.iota {dimensions = array<i32: 0>} : vector<128x8xi32>
    %9 = tpu.iota {dimensions = array<i32: 1>} : vector<128x8xi32>
    %c64_i32 = arith.constant 64 : i32
    %10 = vector.broadcast %c64_i32 : i32 to vector<128x8xi32>
    %11 = arith.muli %9, %10 : vector<128x8xi32>
    %12 = arith.cmpi sge, %8, %11 : vector<128x8xi32>
    %c64_i32_3 = arith.constant 64 : i32
    %13 = vector.broadcast %c64_i32_3 : i32 to vector<128x8xi32>
    %14 = arith.addi %11, %13 : vector<128x8xi32>
    %15 = arith.cmpi slt, %8, %14 : vector<128x8xi32>
    %16 = arith.andi %12, %15 : vector<128x8xi1>
    %17 = arith.extui %16 : vector<128x8xi1> to vector<128x8xi32>
    %18 = arith.sitofp %17 : vector<128x8xi32> to vector<128x8xf32>
    %cst_4 = arith.constant dense<0.000000e+00> : vector<16x8xf32>
    %19 = tpu.matmul %7, %18, %cst_4 {dimension_numbers = #tpu.dot_dimension_numbers<[1], [0], [0], [1], [0, 0, 1, 1], [], []>, precision = #tpu.contract_precision<fp32>} : vector<16x128xf32>, vector<128x8xf32>, vector<16x8xf32> -> vector<16x8xf32>
    %20 = tpu.iota {dimensions = array<i32: 0>} : vector<16x8xi32>
    %c9_i32 = arith.constant 9 : i32
    %21 = vector.broadcast %c9_i32 : i32 to vector<16x8xi32>
    %22 = arith.cmpi slt, %20, %21 : vector<16x8xi32>
    %cst_5 = arith.constant 1.000000e+30 : f32
    %23 = vector.broadcast %cst_5 : f32 to vector<16x8xf32>
    %24 = arith.select %22, %19, %23 : vector<16x8xi1>, vector<16x8xf32>
    %cst_6 = arith.constant 0.000000e+00 : f32
    %25 = vector.broadcast %cst_6 : f32 to vector<16x8xf32>
    %26 = vector.extract_strided_slice %24 {offsets = [0, 0], sizes = [1, 8], strides = [1, 1]} : vector<16x8xf32> to vector<1x8xf32>
    %27 = vector.broadcast %26 : vector<1x8xf32> to vector<16x8xf32>
    %28 = arith.cmpf olt, %27, %24 : vector<16x8xf32>
    %29 = arith.extui %28 : vector<16x8xi1> to vector<16x8xi32>
    %30 = arith.sitofp %29 : vector<16x8xi32> to vector<16x8xf32>
    %31 = arith.addf %25, %30 : vector<16x8xf32>
    %32 = vector.broadcast %26 : vector<1x8xf32> to vector<16x8xf32>
    %33 = arith.cmpf ole, %32, %24 : vector<16x8xf32>
    %34 = arith.extui %33 : vector<16x8xi1> to vector<16x8xi32>
    %35 = arith.sitofp %34 : vector<16x8xi32> to vector<16x8xf32>
    %36 = arith.addf %25, %35 : vector<16x8xf32>
    %37 = vector.extract_strided_slice %24 {offsets = [1, 0], sizes = [1, 8], strides = [1, 1]} : vector<16x8xf32> to vector<1x8xf32>
    %38 = vector.broadcast %37 : vector<1x8xf32> to vector<16x8xf32>
    %39 = arith.cmpf olt, %38, %24 : vector<16x8xf32>
    %40 = arith.extui %39 : vector<16x8xi1> to vector<16x8xi32>
    %41 = arith.sitofp %40 : vector<16x8xi32> to vector<16x8xf32>
    %42 = arith.addf %31, %41 : vector<16x8xf32>
    %43 = vector.broadcast %37 : vector<1x8xf32> to vector<16x8xf32>
    %44 = arith.cmpf ole, %43, %24 : vector<16x8xf32>
    %45 = arith.extui %44 : vector<16x8xi1> to vector<16x8xi32>
    %46 = arith.sitofp %45 : vector<16x8xi32> to vector<16x8xf32>
    %47 = arith.addf %36, %46 : vector<16x8xf32>
    %48 = vector.extract_strided_slice %24 {offsets = [2, 0], sizes = [1, 8], strides = [1, 1]} : vector<16x8xf32> to vector<1x8xf32>
    %49 = vector.broadcast %48 : vector<1x8xf32> to vector<16x8xf32>
    %50 = arith.cmpf olt, %49, %24 : vector<16x8xf32>
    %51 = arith.extui %50 : vector<16x8xi1> to vector<16x8xi32>
    %52 = arith.sitofp %51 : vector<16x8xi32> to vector<16x8xf32>
    %53 = arith.addf %42, %52 : vector<16x8xf32>
    %54 = vector.broadcast %48 : vector<1x8xf32> to vector<16x8xf32>
    %55 = arith.cmpf ole, %54, %24 : vector<16x8xf32>
    %56 = arith.extui %55 : vector<16x8xi1> to vector<16x8xi32>
    %57 = arith.sitofp %56 : vector<16x8xi32> to vector<16x8xf32>
    %58 = arith.addf %47, %57 : vector<16x8xf32>
    %59 = vector.extract_strided_slice %24 {offsets = [3, 0], sizes = [1, 8], strides = [1, 1]} : vector<16x8xf32> to vector<1x8xf32>
    %60 = vector.broadcast %59 : vector<1x8xf32> to vector<16x8xf32>
    %61 = arith.cmpf olt, %60, %24 : vector<16x8xf32>
    %62 = arith.extui %61 : vector<16x8xi1> to vector<16x8xi32>
    %63 = arith.sitofp %62 : vector<16x8xi32> to vector<16x8xf32>
    %64 = arith.addf %53, %63 : vector<16x8xf32>
    %65 = vector.broadcast %59 : vector<1x8xf32> to vector<16x8xf32>
    %66 = arith.cmpf ole, %65, %24 : vector<16x8xf32>
    %67 = arith.extui %66 : vector<16x8xi1> to vector<16x8xi32>
    %68 = arith.sitofp %67 : vector<16x8xi32> to vector<16x8xf32>
    %69 = arith.addf %58, %68 : vector<16x8xf32>
    %70 = vector.extract_strided_slice %24 {offsets = [4, 0], sizes = [1, 8], strides = [1, 1]} : vector<16x8xf32> to vector<1x8xf32>
    %71 = vector.broadcast %70 : vector<1x8xf32> to vector<16x8xf32>
    %72 = arith.cmpf olt, %71, %24 : vector<16x8xf32>
    %73 = arith.extui %72 : vector<16x8xi1> to vector<16x8xi32>
    %74 = arith.sitofp %73 : vector<16x8xi32> to vector<16x8xf32>
    %75 = arith.addf %64, %74 : vector<16x8xf32>
    %76 = vector.broadcast %70 : vector<1x8xf32> to vector<16x8xf32>
    %77 = arith.cmpf ole, %76, %24 : vector<16x8xf32>
    %78 = arith.extui %77 : vector<16x8xi1> to vector<16x8xi32>
    %79 = arith.sitofp %78 : vector<16x8xi32> to vector<16x8xf32>
    %80 = arith.addf %69, %79 : vector<16x8xf32>
    %81 = vector.extract_strided_slice %24 {offsets = [5, 0], sizes = [1, 8], strides = [1, 1]} : vector<16x8xf32> to vector<1x8xf32>
    %82 = vector.broadcast %81 : vector<1x8xf32> to vector<16x8xf32>
    %83 = arith.cmpf olt, %82, %24 : vector<16x8xf32>
    %84 = arith.extui %83 : vector<16x8xi1> to vector<16x8xi32>
    %85 = arith.sitofp %84 : vector<16x8xi32> to vector<16x8xf32>
    %86 = arith.addf %75, %85 : vector<16x8xf32>
    %87 = vector.broadcast %81 : vector<1x8xf32> to vector<16x8xf32>
    %88 = arith.cmpf ole, %87, %24 : vector<16x8xf32>
    %89 = arith.extui %88 : vector<16x8xi1> to vector<16x8xi32>
    %90 = arith.sitofp %89 : vector<16x8xi32> to vector<16x8xf32>
    %91 = arith.addf %80, %90 : vector<16x8xf32>
    %92 = vector.extract_strided_slice %24 {offsets = [6, 0], sizes = [1, 8], strides = [1, 1]} : vector<16x8xf32> to vector<1x8xf32>
    %93 = vector.broadcast %92 : vector<1x8xf32> to vector<16x8xf32>
    %94 = arith.cmpf olt, %93, %24 : vector<16x8xf32>
    %95 = arith.extui %94 : vector<16x8xi1> to vector<16x8xi32>
    %96 = arith.sitofp %95 : vector<16x8xi32> to vector<16x8xf32>
    %97 = arith.addf %86, %96 : vector<16x8xf32>
    %98 = vector.broadcast %92 : vector<1x8xf32> to vector<16x8xf32>
    %99 = arith.cmpf ole, %98, %24 : vector<16x8xf32>
    %100 = arith.extui %99 : vector<16x8xi1> to vector<16x8xi32>
    %101 = arith.sitofp %100 : vector<16x8xi32> to vector<16x8xf32>
    %102 = arith.addf %91, %101 : vector<16x8xf32>
    %103 = vector.extract_strided_slice %24 {offsets = [7, 0], sizes = [1, 8], strides = [1, 1]} : vector<16x8xf32> to vector<1x8xf32>
    %104 = vector.broadcast %103 : vector<1x8xf32> to vector<16x8xf32>
    %105 = arith.cmpf olt, %104, %24 : vector<16x8xf32>
    %106 = arith.extui %105 : vector<16x8xi1> to vector<16x8xi32>
    %107 = arith.sitofp %106 : vector<16x8xi32> to vector<16x8xf32>
    %108 = arith.addf %97, %107 : vector<16x8xf32>
    %109 = vector.broadcast %103 : vector<1x8xf32> to vector<16x8xf32>
    %110 = arith.cmpf ole, %109, %24 : vector<16x8xf32>
    %111 = arith.extui %110 : vector<16x8xi1> to vector<16x8xi32>
    %112 = arith.sitofp %111 : vector<16x8xi32> to vector<16x8xf32>
    %113 = arith.addf %102, %112 : vector<16x8xf32>
    %114 = vector.extract_strided_slice %24 {offsets = [8, 0], sizes = [1, 8], strides = [1, 1]} : vector<16x8xf32> to vector<1x8xf32>
    %115 = vector.broadcast %114 : vector<1x8xf32> to vector<16x8xf32>
    %116 = arith.cmpf olt, %115, %24 : vector<16x8xf32>
    %117 = arith.extui %116 : vector<16x8xi1> to vector<16x8xi32>
    %118 = arith.sitofp %117 : vector<16x8xi32> to vector<16x8xf32>
    %119 = arith.addf %108, %118 : vector<16x8xf32>
    %120 = vector.broadcast %114 : vector<1x8xf32> to vector<16x8xf32>
    %121 = arith.cmpf ole, %120, %24 : vector<16x8xf32>
    %122 = arith.extui %121 : vector<16x8xi1> to vector<16x8xi32>
    %123 = arith.sitofp %122 : vector<16x8xi32> to vector<16x8xf32>
    %124 = arith.addf %113, %123 : vector<16x8xf32>
    %125 = vector.extract_strided_slice %24 {offsets = [9, 0], sizes = [1, 8], strides = [1, 1]} : vector<16x8xf32> to vector<1x8xf32>
    %126 = vector.broadcast %125 : vector<1x8xf32> to vector<16x8xf32>
    %127 = arith.cmpf olt, %126, %24 : vector<16x8xf32>
    %128 = arith.extui %127 : vector<16x8xi1> to vector<16x8xi32>
    %129 = arith.sitofp %128 : vector<16x8xi32> to vector<16x8xf32>
    %130 = arith.addf %119, %129 : vector<16x8xf32>
    %131 = vector.broadcast %125 : vector<1x8xf32> to vector<16x8xf32>
    %132 = arith.cmpf ole, %131, %24 : vector<16x8xf32>
    %133 = arith.extui %132 : vector<16x8xi1> to vector<16x8xi32>
    %134 = arith.sitofp %133 : vector<16x8xi32> to vector<16x8xf32>
    %135 = arith.addf %124, %134 : vector<16x8xf32>
    %136 = vector.extract_strided_slice %24 {offsets = [10, 0], sizes = [1, 8], strides = [1, 1]} : vector<16x8xf32> to vector<1x8xf32>
    %137 = vector.broadcast %136 : vector<1x8xf32> to vector<16x8xf32>
    %138 = arith.cmpf olt, %137, %24 : vector<16x8xf32>
    %139 = arith.extui %138 : vector<16x8xi1> to vector<16x8xi32>
    %140 = arith.sitofp %139 : vector<16x8xi32> to vector<16x8xf32>
    %141 = arith.addf %130, %140 : vector<16x8xf32>
    %142 = vector.broadcast %136 : vector<1x8xf32> to vector<16x8xf32>
    %143 = arith.cmpf ole, %142, %24 : vector<16x8xf32>
    %144 = arith.extui %143 : vector<16x8xi1> to vector<16x8xi32>
    %145 = arith.sitofp %144 : vector<16x8xi32> to vector<16x8xf32>
    %146 = arith.addf %135, %145 : vector<16x8xf32>
    %147 = vector.extract_strided_slice %24 {offsets = [11, 0], sizes = [1, 8], strides = [1, 1]} : vector<16x8xf32> to vector<1x8xf32>
    %148 = vector.broadcast %147 : vector<1x8xf32> to vector<16x8xf32>
    %149 = arith.cmpf olt, %148, %24 : vector<16x8xf32>
    %150 = arith.extui %149 : vector<16x8xi1> to vector<16x8xi32>
    %151 = arith.sitofp %150 : vector<16x8xi32> to vector<16x8xf32>
    %152 = arith.addf %141, %151 : vector<16x8xf32>
    %153 = vector.broadcast %147 : vector<1x8xf32> to vector<16x8xf32>
    %154 = arith.cmpf ole, %153, %24 : vector<16x8xf32>
    %155 = arith.extui %154 : vector<16x8xi1> to vector<16x8xi32>
    %156 = arith.sitofp %155 : vector<16x8xi32> to vector<16x8xf32>
    %157 = arith.addf %146, %156 : vector<16x8xf32>
    %158 = vector.extract_strided_slice %24 {offsets = [12, 0], sizes = [1, 8], strides = [1, 1]} : vector<16x8xf32> to vector<1x8xf32>
    %159 = vector.broadcast %158 : vector<1x8xf32> to vector<16x8xf32>
    %160 = arith.cmpf olt, %159, %24 : vector<16x8xf32>
    %161 = arith.extui %160 : vector<16x8xi1> to vector<16x8xi32>
    %162 = arith.sitofp %161 : vector<16x8xi32> to vector<16x8xf32>
    %163 = arith.addf %152, %162 : vector<16x8xf32>
    %164 = vector.broadcast %158 : vector<1x8xf32> to vector<16x8xf32>
    %165 = arith.cmpf ole, %164, %24 : vector<16x8xf32>
    %166 = arith.extui %165 : vector<16x8xi1> to vector<16x8xi32>
    %167 = arith.sitofp %166 : vector<16x8xi32> to vector<16x8xf32>
    %168 = arith.addf %157, %167 : vector<16x8xf32>
    %169 = vector.extract_strided_slice %24 {offsets = [13, 0], sizes = [1, 8], strides = [1, 1]} : vector<16x8xf32> to vector<1x8xf32>
    %170 = vector.broadcast %169 : vector<1x8xf32> to vector<16x8xf32>
    %171 = arith.cmpf olt, %170, %24 : vector<16x8xf32>
    %172 = arith.extui %171 : vector<16x8xi1> to vector<16x8xi32>
    %173 = arith.sitofp %172 : vector<16x8xi32> to vector<16x8xf32>
    %174 = arith.addf %163, %173 : vector<16x8xf32>
    %175 = vector.broadcast %169 : vector<1x8xf32> to vector<16x8xf32>
    %176 = arith.cmpf ole, %175, %24 : vector<16x8xf32>
    %177 = arith.extui %176 : vector<16x8xi1> to vector<16x8xi32>
    %178 = arith.sitofp %177 : vector<16x8xi32> to vector<16x8xf32>
    %179 = arith.addf %168, %178 : vector<16x8xf32>
    %180 = vector.extract_strided_slice %24 {offsets = [14, 0], sizes = [1, 8], strides = [1, 1]} : vector<16x8xf32> to vector<1x8xf32>
    %181 = vector.broadcast %180 : vector<1x8xf32> to vector<16x8xf32>
    %182 = arith.cmpf olt, %181, %24 : vector<16x8xf32>
    %183 = arith.extui %182 : vector<16x8xi1> to vector<16x8xi32>
    %184 = arith.sitofp %183 : vector<16x8xi32> to vector<16x8xf32>
    %185 = arith.addf %174, %184 : vector<16x8xf32>
    %186 = vector.broadcast %180 : vector<1x8xf32> to vector<16x8xf32>
    %187 = arith.cmpf ole, %186, %24 : vector<16x8xf32>
    %188 = arith.extui %187 : vector<16x8xi1> to vector<16x8xi32>
    %189 = arith.sitofp %188 : vector<16x8xi32> to vector<16x8xf32>
    %190 = arith.addf %179, %189 : vector<16x8xf32>
    %191 = vector.extract_strided_slice %24 {offsets = [15, 0], sizes = [1, 8], strides = [1, 1]} : vector<16x8xf32> to vector<1x8xf32>
    %192 = vector.broadcast %191 : vector<1x8xf32> to vector<16x8xf32>
    %193 = arith.cmpf olt, %192, %24 : vector<16x8xf32>
    %194 = arith.extui %193 : vector<16x8xi1> to vector<16x8xi32>
    %195 = arith.sitofp %194 : vector<16x8xi32> to vector<16x8xf32>
    %196 = arith.addf %185, %195 : vector<16x8xf32>
    %197 = vector.broadcast %191 : vector<1x8xf32> to vector<16x8xf32>
    %198 = arith.cmpf ole, %197, %24 : vector<16x8xf32>
    %199 = arith.extui %198 : vector<16x8xi1> to vector<16x8xi32>
    %200 = arith.sitofp %199 : vector<16x8xi32> to vector<16x8xf32>
    %201 = arith.addf %190, %200 : vector<16x8xf32>
    %cst_7 = arith.constant 4.000000e+00 : f32
    %202 = vector.broadcast %cst_7 : f32 to vector<16x8xf32>
    %203 = arith.cmpf ole, %196, %202 : vector<16x8xf32>
    %cst_8 = arith.constant 4.000000e+00 : f32
    %204 = vector.broadcast %cst_8 : f32 to vector<16x8xf32>
    %205 = arith.cmpf ogt, %201, %204 : vector<16x8xf32>
    %206 = arith.andi %203, %205 : vector<16x8xi1>
    %cst_9 = arith.constant -1.000000e+00 : f32
    %207 = vector.broadcast %cst_9 : f32 to vector<16x8xf32>
    %208 = arith.select %206, %24, %207 : vector<16x8xi1>, vector<16x8xf32>
    %cst_10 = arith.constant dense<0xFF800000> : vector<8xf32>
    %209 = vector.multi_reduction <maximumf>, %208, %cst_10 [0] : vector<16x8xf32> to vector<8xf32>
    %210 = vector.shape_cast %209 : vector<8xf32> to vector<1x8xf32>
    %c0_11 = arith.constant 0 : index
    %211 = memref.load %arg6[%c0_11] : memref<1xf32, #tpu.memory_space<smem>>
    %cst_12 = arith.constant 9.99999997E-7 : f32
    %212 = vector.broadcast %cst_12 : f32 to vector<1x8xf32>
    %213 = arith.addf %210, %212 : vector<1x8xf32>
    %214 = vector.broadcast %211 : f32 to vector<1x8xf32>
    %215 = arith.mulf %214, %213 : vector<1x8xf32>
    %216 = vector.broadcast %215 : vector<1x8xf32> to vector<16x8xf32>
    %217 = arith.cmpf ogt, %19, %216 : vector<16x8xf32>
    %218 = arith.extui %217 : vector<16x8xi1> to vector<16x8xi32>
    %219 = arith.sitofp %218 : vector<16x8xi32> to vector<16x8xf32>
    %220 = arith.truncf %219 : vector<16x8xf32> to vector<16x8xbf16>
    %221 = tpu.iota {dimensions = array<i32: 0>} : vector<8x128xi32>
    %c64_i32_13 = arith.constant 64 : i32
    %222 = vector.broadcast %c64_i32_13 : i32 to vector<8x128xi32>
    %223 = arith.muli %221, %222 : vector<8x128xi32>
    %224 = tpu.iota {dimensions = array<i32: 1>} : vector<8x128xi32>
    %225 = arith.cmpi sge, %224, %223 : vector<8x128xi32>
    %c64_i32_14 = arith.constant 64 : i32
    %226 = vector.broadcast %c64_i32_14 : i32 to vector<8x128xi32>
    %227 = arith.addi %223, %226 : vector<8x128xi32>
    %228 = arith.cmpi slt, %224, %227 : vector<8x128xi32>
    %229 = arith.andi %225, %228 : vector<8x128xi1>
    %230 = arith.extui %229 : vector<8x128xi1> to vector<8x128xi32>
    %231 = arith.sitofp %230 : vector<8x128xi32> to vector<8x128xf32>
    %232 = arith.truncf %231 : vector<8x128xf32> to vector<8x128xbf16>
    %cst_15 = arith.constant dense<0.000000e+00> : vector<16x128xf32>
    %233 = tpu.matmul %220, %232, %cst_15 {dimension_numbers = #tpu.dot_dimension_numbers<[1], [0], [0], [1], [0, 0, 1, 1], [], []>} : vector<16x8xbf16>, vector<8x128xbf16>, vector<16x128xf32> -> vector<16x128xf32>
    %c0_16 = arith.constant 0 : index
    %c0_17 = arith.constant 0 : index
    %234 = vector.load %arg5[%c0_16, %c0_17] : memref<4x128xf32, #tpu.memory_space<vmem>>, vector<1x128xf32>
    %c1 = arith.constant 1 : index
    %c0_18 = arith.constant 0 : index
    %235 = vector.load %arg5[%c1, %c0_18] : memref<4x128xf32, #tpu.memory_space<vmem>>, vector<1x128xf32>
    %c2 = arith.constant 2 : index
    %c0_19 = arith.constant 0 : index
    %236 = vector.load %arg5[%c2, %c0_19] : memref<4x128xf32, #tpu.memory_space<vmem>>, vector<1x128xf32>
    %c3 = arith.constant 3 : index
    %c0_20 = arith.constant 0 : index
    %237 = vector.load %arg5[%c3, %c0_20] : memref<4x128xf32, #tpu.memory_space<vmem>>, vector<1x128xf32>
    %238 = vector.broadcast %236 : vector<1x128xf32> to vector<16x128xf32>
    %239 = arith.mulf %233, %238 : vector<16x128xf32>
    %240 = vector.broadcast %234 : vector<1x128xf32> to vector<16x128xf32>
    %241 = arith.addf %240, %239 : vector<16x128xf32>
    %242 = vector.broadcast %237 : vector<1x128xf32> to vector<16x128xf32>
    %243 = arith.mulf %233, %242 : vector<16x128xf32>
    %244 = vector.broadcast %235 : vector<1x128xf32> to vector<16x128xf32>
    %245 = arith.addf %244, %243 : vector<16x128xf32>
    %246 = arith.mulf %3, %241 : vector<16x128xf32>
    %247 = arith.mulf %4, %245 : vector<16x128xf32>
    %248 = arith.subf %246, %247 : vector<16x128xf32>
    %249 = arith.truncf %248 : vector<16x128xf32> to vector<16x128xbf16>
    %250 = arith.mulf %3, %245 : vector<16x128xf32>
    %251 = arith.mulf %4, %241 : vector<16x128xf32>
    %252 = arith.addf %250, %251 : vector<16x128xf32>
    %253 = arith.truncf %252 : vector<16x128xf32> to vector<16x128xbf16>
    %c0_21 = arith.constant 0 : index
    %c0_22 = arith.constant 0 : index
    %254 = vector.load %arg3[%c0_21, %c0_22] : memref<16x16xbf16, #tpu.memory_space<vmem>>, vector<16x16xbf16>
    %cst_23 = arith.constant dense<0.000000e+00> : vector<16x128xf32>
    %255 = tpu.matmul %254, %249, %cst_23 {dimension_numbers = #tpu.dot_dimension_numbers<[1], [0], [0], [1], [0, 0, 1, 1], [], []>} : vector<16x16xbf16>, vector<16x128xbf16>, vector<16x128xf32> -> vector<16x128xf32>
    %c0_24 = arith.constant 0 : index
    %c0_25 = arith.constant 0 : index
    %256 = vector.load %arg4[%c0_24, %c0_25] : memref<16x16xbf16, #tpu.memory_space<vmem>>, vector<16x16xbf16>
    %cst_26 = arith.constant dense<0.000000e+00> : vector<16x128xf32>
    %257 = tpu.matmul %256, %253, %cst_26 {dimension_numbers = #tpu.dot_dimension_numbers<[1], [0], [0], [1], [0, 0, 1, 1], [], []>} : vector<16x16xbf16>, vector<16x128xbf16>, vector<16x128xf32> -> vector<16x128xf32>
    %258 = arith.addf %255, %257 : vector<16x128xf32>
    %c0_27 = arith.constant 0 : index
    %c0_28 = arith.constant 0 : index
    %259 = vector.load %arg7[%c0_27, %c0_28] : memref<16x128xf32, #tpu.memory_space<vmem>>, vector<16x128xf32>
    tpu.vector_store %arg7[%c0_27, %c0_28], %258 {strides = array<i32>} : memref<16x128xf32, #tpu.memory_space<vmem>>, vector<16x128xf32>,
    return
  }
  func.func @transform_0(%arg0: i32) -> (i32, i32) {
    %c0_i32 = arith.constant 0 : i32
    %c0_i32_0 = arith.constant 0 : i32
    return %c0_i32, %arg0 : i32, i32
  }
  func.func @transform_1(%arg0: i32) -> (i32, i32) {
    %c0_i32 = arith.constant 0 : i32
    %c0_i32_0 = arith.constant 0 : i32
    %c0_i32_1 = arith.constant 0 : i32
    return %c0_i32, %c0_i32_0 : i32, i32
  }
  func.func @transform_2(%arg0: i32) -> (i32, i32) {
    %c0_i32 = arith.constant 0 : i32
    %c0_i32_0 = arith.constant 0 : i32
    %c0_i32_1 = arith.constant 0 : i32
    return %c0_i32, %c0_i32_0 : i32, i32
  }
  func.func @transform_3(%arg0: i32) -> (i32, i32) {
    %c0_i32 = arith.constant 0 : i32
    %c0_i32_0 = arith.constant 0 : i32
    %c0_i32_1 = arith.constant 0 : i32
    return %c0_i32, %c0_i32_0 : i32, i32
  }
  func.func @transform_4(%arg0: i32) -> (i32, i32) {
    %c0_i32 = arith.constant 0 : i32
    %c0_i32_0 = arith.constant 0 : i32
    %c0_i32_1 = arith.constant 0 : i32
    return %c0_i32, %c0_i32_0 : i32, i32
  }
  func.func @transform_5(%arg0: i32) -> i32 {
    %c0_i32 = arith.constant 0 : i32
    %c0_i32_0 = arith.constant 0 : i32
    return %c0_i32 : i32
  }
  func.func @transform_6(%arg0: i32) -> (i32, i32) {
    %c0_i32 = arith.constant 0 : i32
    %c0_i32_0 = arith.constant 0 : i32
    return %c0_i32, %arg0 : i32, i32
  }
}

module attributes {stable_mosaic.version = 11 : i64} {
  func.func @kernel(%arg0: i32, %arg1: memref<16x128xf32, #tpu.memory_space<vmem>>, %arg2: memref<32x16xf32, #tpu.memory_space<vmem>>, %arg3: memref<16x16xbf16, #tpu.memory_space<vmem>>, %arg4: memref<16x16xbf16, #tpu.memory_space<vmem>>, %arg5: memref<4x128xf32, #tpu.memory_space<vmem>>, %arg6: memref<1xf32, #tpu.memory_space<smem>>, %arg7: memref<16x128xf32, #tpu.memory_space<vmem>>) attributes {dimension_semantics = [#tpu.dimension_semantics<parallel>], iteration_bounds = array<i64: 4>, scalar_prefetch = 0 : i64, scratch_operands = 0 : i64, tpu.core_type = #tpu.core_type<tc>, window_params = [{transform_indices = @transform_0, window_bounds = array<i64: 16, 128>}, {pipeline_mode = #tpu.pipeline_mode<synchronous>, transform_indices = @transform_1, window_bounds = array<i64: 32, 16>}, {pipeline_mode = #tpu.pipeline_mode<synchronous>, transform_indices = @transform_2, window_bounds = array<i64: 16, 16>}, {pipeline_mode = #tpu.pipeline_mode<synchronous>, transform_indices = @transform_3, window_bounds = array<i64: 16, 16>}, {pipeline_mode = #tpu.pipeline_mode<synchronous>, transform_indices = @transform_4, window_bounds = array<i64: 4, 128>}, {transform_indices = @transform_5, window_bounds = array<i64: 1>}, {transform_indices = @transform_6, window_bounds = array<i64: 16, 128>}]} {
    %c0 = arith.constant 0 : index
    %c0_0 = arith.constant 0 : index
    %0 = vector.load %arg1[%c0, %c0_0] : memref<16x128xf32, #tpu.memory_space<vmem>>, vector<16x128xf32>
    %c0_1 = arith.constant 0 : index
    %c0_2 = arith.constant 0 : index
    %1 = vector.load %arg2[%c0_1, %c0_2] : memref<32x16xf32, #tpu.memory_space<vmem>>, vector<32x16xf32>
    %cst = arith.constant dense<0.000000e+00> : vector<32x128xf32>
    %2 = tpu.matmul %1, %0, %cst {dimension_numbers = #tpu.dot_dimension_numbers<[1], [0], [0], [1], [0, 0, 1, 1], [], []>, precision = #tpu.contract_precision<fp32>} : vector<32x16xf32>, vector<16x128xf32>, vector<32x128xf32> -> vector<32x128xf32>
    %3 = vector.extract_strided_slice %2 {offsets = [0, 0], sizes = [16, 128], strides = [1, 1]} : vector<32x128xf32> to vector<16x128xf32>
    %4 = vector.extract_strided_slice %2 {offsets = [16, 0], sizes = [16, 128], strides = [1, 1]} : vector<32x128xf32> to vector<16x128xf32>
    %5 = arith.mulf %3, %3 : vector<16x128xf32>
    %6 = arith.mulf %4, %4 : vector<16x128xf32>
    %7 = arith.addf %5, %6 : vector<16x128xf32>
    %8 = tpu.iota {dimensions = array<i32: 0>} : vector<128x8xi32>
    %9 = tpu.iota {dimensions = array<i32: 1>} : vector<128x8xi32>
    %c64_i32 = arith.constant 64 : i32
    %10 = vector.broadcast %c64_i32 : i32 to vector<128x8xi32>
    %11 = arith.muli %9, %10 : vector<128x8xi32>
    %12 = arith.cmpi sge, %8, %11 : vector<128x8xi32>
    %c64_i32_3 = arith.constant 64 : i32
    %13 = vector.broadcast %c64_i32_3 : i32 to vector<128x8xi32>
    %14 = arith.addi %11, %13 : vector<128x8xi32>
    %15 = arith.cmpi slt, %8, %14 : vector<128x8xi32>
    %16 = arith.andi %12, %15 : vector<128x8xi1>
    %17 = arith.extui %16 : vector<128x8xi1> to vector<128x8xi32>
    %18 = arith.sitofp %17 : vector<128x8xi32> to vector<128x8xf32>
    %cst_4 = arith.constant dense<0.000000e+00> : vector<16x8xf32>
    %19 = tpu.matmul %7, %18, %cst_4 {dimension_numbers = #tpu.dot_dimension_numbers<[1], [0], [0], [1], [0, 0, 1, 1], [], []>, precision = #tpu.contract_precision<fp32>} : vector<16x128xf32>, vector<128x8xf32>, vector<16x8xf32> -> vector<16x8xf32>
    %20 = tpu.iota {dimensions = array<i32: 0>} : vector<16x8xi32>
    %c9_i32 = arith.constant 9 : i32
    %21 = vector.broadcast %c9_i32 : i32 to vector<16x8xi32>
    %22 = arith.cmpi slt, %20, %21 : vector<16x8xi32>
    %cst_5 = arith.constant 1.000000e+30 : f32
    %23 = vector.broadcast %cst_5 : f32 to vector<16x8xf32>
    %24 = arith.select %22, %19, %23 : vector<16x8xi1>, vector<16x8xf32>
    %cst_6 = arith.constant 0.000000e+00 : f32
    %25 = vector.broadcast %cst_6 : f32 to vector<16x8xf32>
    %26 = vector.extract_strided_slice %24 {offsets = [0, 0], sizes = [1, 8], strides = [1, 1]} : vector<16x8xf32> to vector<1x8xf32>
    %27 = vector.broadcast %26 : vector<1x8xf32> to vector<16x8xf32>
    %28 = arith.cmpf olt, %27, %24 : vector<16x8xf32>
    %29 = arith.extui %28 : vector<16x8xi1> to vector<16x8xi32>
    %30 = arith.sitofp %29 : vector<16x8xi32> to vector<16x8xf32>
    %31 = arith.addf %25, %30 : vector<16x8xf32>
    %32 = vector.broadcast %26 : vector<1x8xf32> to vector<16x8xf32>
    %33 = arith.cmpf ole, %32, %24 : vector<16x8xf32>
    %34 = arith.extui %33 : vector<16x8xi1> to vector<16x8xi32>
    %35 = arith.sitofp %34 : vector<16x8xi32> to vector<16x8xf32>
    %36 = arith.addf %25, %35 : vector<16x8xf32>
    %37 = vector.extract_strided_slice %24 {offsets = [1, 0], sizes = [1, 8], strides = [1, 1]} : vector<16x8xf32> to vector<1x8xf32>
    %38 = vector.broadcast %37 : vector<1x8xf32> to vector<16x8xf32>
    %39 = arith.cmpf olt, %38, %24 : vector<16x8xf32>
    %40 = arith.extui %39 : vector<16x8xi1> to vector<16x8xi32>
    %41 = arith.sitofp %40 : vector<16x8xi32> to vector<16x8xf32>
    %42 = arith.addf %31, %41 : vector<16x8xf32>
    %43 = vector.broadcast %37 : vector<1x8xf32> to vector<16x8xf32>
    %44 = arith.cmpf ole, %43, %24 : vector<16x8xf32>
    %45 = arith.extui %44 : vector<16x8xi1> to vector<16x8xi32>
    %46 = arith.sitofp %45 : vector<16x8xi32> to vector<16x8xf32>
    %47 = arith.addf %36, %46 : vector<16x8xf32>
    %48 = vector.extract_strided_slice %24 {offsets = [2, 0], sizes = [1, 8], strides = [1, 1]} : vector<16x8xf32> to vector<1x8xf32>
    %49 = vector.broadcast %48 : vector<1x8xf32> to vector<16x8xf32>
    %50 = arith.cmpf olt, %49, %24 : vector<16x8xf32>
    %51 = arith.extui %50 : vector<16x8xi1> to vector<16x8xi32>
    %52 = arith.sitofp %51 : vector<16x8xi32> to vector<16x8xf32>
    %53 = arith.addf %42, %52 : vector<16x8xf32>
    %54 = vector.broadcast %48 : vector<1x8xf32> to vector<16x8xf32>
    %55 = arith.cmpf ole, %54, %24 : vector<16x8xf32>
    %56 = arith.extui %55 : vector<16x8xi1> to vector<16x8xi32>
    %57 = arith.sitofp %56 : vector<16x8xi32> to vector<16x8xf32>
    %58 = arith.addf %47, %57 : vector<16x8xf32>
    %59 = vector.extract_strided_slice %24 {offsets = [3, 0], sizes = [1, 8], strides = [1, 1]} : vector<16x8xf32> to vector<1x8xf32>
    %60 = vector.broadcast %59 : vector<1x8xf32> to vector<16x8xf32>
    %61 = arith.cmpf olt, %60, %24 : vector<16x8xf32>
    %62 = arith.extui %61 : vector<16x8xi1> to vector<16x8xi32>
    %63 = arith.sitofp %62 : vector<16x8xi32> to vector<16x8xf32>
    %64 = arith.addf %53, %63 : vector<16x8xf32>
    %65 = vector.broadcast %59 : vector<1x8xf32> to vector<16x8xf32>
    %66 = arith.cmpf ole, %65, %24 : vector<16x8xf32>
    %67 = arith.extui %66 : vector<16x8xi1> to vector<16x8xi32>
    %68 = arith.sitofp %67 : vector<16x8xi32> to vector<16x8xf32>
    %69 = arith.addf %58, %68 : vector<16x8xf32>
    %70 = vector.extract_strided_slice %24 {offsets = [4, 0], sizes = [1, 8], strides = [1, 1]} : vector<16x8xf32> to vector<1x8xf32>
    %71 = vector.broadcast %70 : vector<1x8xf32> to vector<16x8xf32>
    %72 = arith.cmpf olt, %71, %24 : vector<16x8xf32>
    %73 = arith.extui %72 : vector<16x8xi1> to vector<16x8xi32>
    %74 = arith.sitofp %73 : vector<16x8xi32> to vector<16x8xf32>
    %75 = arith.addf %64, %74 : vector<16x8xf32>
    %76 = vector.broadcast %70 : vector<1x8xf32> to vector<16x8xf32>
    %77 = arith.cmpf ole, %76, %24 : vector<16x8xf32>
    %78 = arith.extui %77 : vector<16x8xi1> to vector<16x8xi32>
    %79 = arith.sitofp %78 : vector<16x8xi32> to vector<16x8xf32>
    %80 = arith.addf %69, %79 : vector<16x8xf32>
    %81 = vector.extract_strided_slice %24 {offsets = [5, 0], sizes = [1, 8], strides = [1, 1]} : vector<16x8xf32> to vector<1x8xf32>
    %82 = vector.broadcast %81 : vector<1x8xf32> to vector<16x8xf32>
    %83 = arith.cmpf olt, %82, %24 : vector<16x8xf32>
    %84 = arith.extui %83 : vector<16x8xi1> to vector<16x8xi32>
    %85 = arith.sitofp %84 : vector<16x8xi32> to vector<16x8xf32>
    %86 = arith.addf %75, %85 : vector<16x8xf32>
    %87 = vector.broadcast %81 : vector<1x8xf32> to vector<16x8xf32>
    %88 = arith.cmpf ole, %87, %24 : vector<16x8xf32>
    %89 = arith.extui %88 : vector<16x8xi1> to vector<16x8xi32>
    %90 = arith.sitofp %89 : vector<16x8xi32> to vector<16x8xf32>
    %91 = arith.addf %80, %90 : vector<16x8xf32>
    %92 = vector.extract_strided_slice %24 {offsets = [6, 0], sizes = [1, 8], strides = [1, 1]} : vector<16x8xf32> to vector<1x8xf32>
    %93 = vector.broadcast %92 : vector<1x8xf32> to vector<16x8xf32>
    %94 = arith.cmpf olt, %93, %24 : vector<16x8xf32>
    %95 = arith.extui %94 : vector<16x8xi1> to vector<16x8xi32>
    %96 = arith.sitofp %95 : vector<16x8xi32> to vector<16x8xf32>
    %97 = arith.addf %86, %96 : vector<16x8xf32>
    %98 = vector.broadcast %92 : vector<1x8xf32> to vector<16x8xf32>
    %99 = arith.cmpf ole, %98, %24 : vector<16x8xf32>
    %100 = arith.extui %99 : vector<16x8xi1> to vector<16x8xi32>
    %101 = arith.sitofp %100 : vector<16x8xi32> to vector<16x8xf32>
    %102 = arith.addf %91, %101 : vector<16x8xf32>
    %103 = vector.extract_strided_slice %24 {offsets = [7, 0], sizes = [1, 8], strides = [1, 1]} : vector<16x8xf32> to vector<1x8xf32>
    %104 = vector.broadcast %103 : vector<1x8xf32> to vector<16x8xf32>
    %105 = arith.cmpf olt, %104, %24 : vector<16x8xf32>
    %106 = arith.extui %105 : vector<16x8xi1> to vector<16x8xi32>
    %107 = arith.sitofp %106 : vector<16x8xi32> to vector<16x8xf32>
    %108 = arith.addf %97, %107 : vector<16x8xf32>
    %109 = vector.broadcast %103 : vector<1x8xf32> to vector<16x8xf32>
    %110 = arith.cmpf ole, %109, %24 : vector<16x8xf32>
    %111 = arith.extui %110 : vector<16x8xi1> to vector<16x8xi32>
    %112 = arith.sitofp %111 : vector<16x8xi32> to vector<16x8xf32>
    %113 = arith.addf %102, %112 : vector<16x8xf32>
    %114 = vector.extract_strided_slice %24 {offsets = [8, 0], sizes = [1, 8], strides = [1, 1]} : vector<16x8xf32> to vector<1x8xf32>
    %115 = vector.broadcast %114 : vector<1x8xf32> to vector<16x8xf32>
    %116 = arith.cmpf olt, %115, %24 : vector<16x8xf32>
    %117 = arith.extui %116 : vector<16x8xi1> to vector<16x8xi32>
    %118 = arith.sitofp %117 : vector<16x8xi32> to vector<16x8xf32>
    %119 = arith.addf %108, %118 : vector<16x8xf32>
    %120 = vector.broadcast %114 : vector<1x8xf32> to vector<16x8xf32>
    %121 = arith.cmpf ole, %120, %24 : vector<16x8xf32>
    %122 = arith.extui %121 : vector<16x8xi1> to vector<16x8xi32>
    %123 = arith.sitofp %122 : vector<16x8xi32> to vector<16x8xf32>
    %124 = arith.addf %113, %123 : vector<16x8xf32>
    %125 = vector.extract_strided_slice %24 {offsets = [9, 0], sizes = [1, 8], strides = [1, 1]} : vector<16x8xf32> to vector<1x8xf32>
    %126 = vector.broadcast %125 : vector<1x8xf32> to vector<16x8xf32>
    %127 = arith.cmpf olt, %126, %24 : vector<16x8xf32>
    %128 = arith.extui %127 : vector<16x8xi1> to vector<16x8xi32>
    %129 = arith.sitofp %128 : vector<16x8xi32> to vector<16x8xf32>
    %130 = arith.addf %119, %129 : vector<16x8xf32>
    %131 = vector.broadcast %125 : vector<1x8xf32> to vector<16x8xf32>
    %132 = arith.cmpf ole, %131, %24 : vector<16x8xf32>
    %133 = arith.extui %132 : vector<16x8xi1> to vector<16x8xi32>
    %134 = arith.sitofp %133 : vector<16x8xi32> to vector<16x8xf32>
    %135 = arith.addf %124, %134 : vector<16x8xf32>
    %136 = vector.extract_strided_slice %24 {offsets = [10, 0], sizes = [1, 8], strides = [1, 1]} : vector<16x8xf32> to vector<1x8xf32>
    %137 = vector.broadcast %136 : vector<1x8xf32> to vector<16x8xf32>
    %138 = arith.cmpf olt, %137, %24 : vector<16x8xf32>
    %139 = arith.extui %138 : vector<16x8xi1> to vector<16x8xi32>
    %140 = arith.sitofp %139 : vector<16x8xi32> to vector<16x8xf32>
    %141 = arith.addf %130, %140 : vector<16x8xf32>
    %142 = vector.broadcast %136 : vector<1x8xf32> to vector<16x8xf32>
    %143 = arith.cmpf ole, %142, %24 : vector<16x8xf32>
    %144 = arith.extui %143 : vector<16x8xi1> to vector<16x8xi32>
    %145 = arith.sitofp %144 : vector<16x8xi32> to vector<16x8xf32>
    %146 = arith.addf %135, %145 : vector<16x8xf32>
    %147 = vector.extract_strided_slice %24 {offsets = [11, 0], sizes = [1, 8], strides = [1, 1]} : vector<16x8xf32> to vector<1x8xf32>
    %148 = vector.broadcast %147 : vector<1x8xf32> to vector<16x8xf32>
    %149 = arith.cmpf olt, %148, %24 : vector<16x8xf32>
    %150 = arith.extui %149 : vector<16x8xi1> to vector<16x8xi32>
    %151 = arith.sitofp %150 : vector<16x8xi32> to vector<16x8xf32>
    %152 = arith.addf %141, %151 : vector<16x8xf32>
    %153 = vector.broadcast %147 : vector<1x8xf32> to vector<16x8xf32>
    %154 = arith.cmpf ole, %153, %24 : vector<16x8xf32>
    %155 = arith.extui %154 : vector<16x8xi1> to vector<16x8xi32>
    %156 = arith.sitofp %155 : vector<16x8xi32> to vector<16x8xf32>
    %157 = arith.addf %146, %156 : vector<16x8xf32>
    %158 = vector.extract_strided_slice %24 {offsets = [12, 0], sizes = [1, 8], strides = [1, 1]} : vector<16x8xf32> to vector<1x8xf32>
    %159 = vector.broadcast %158 : vector<1x8xf32> to vector<16x8xf32>
    %160 = arith.cmpf olt, %159, %24 : vector<16x8xf32>
    %161 = arith.extui %160 : vector<16x8xi1> to vector<16x8xi32>
    %162 = arith.sitofp %161 : vector<16x8xi32> to vector<16x8xf32>
    %163 = arith.addf %152, %162 : vector<16x8xf32>
    %164 = vector.broadcast %158 : vector<1x8xf32> to vector<16x8xf32>
    %165 = arith.cmpf ole, %164, %24 : vector<16x8xf32>
    %166 = arith.extui %165 : vector<16x8xi1> to vector<16x8xi32>
    %167 = arith.sitofp %166 : vector<16x8xi32> to vector<16x8xf32>
    %168 = arith.addf %157, %167 : vector<16x8xf32>
    %169 = vector.extract_strided_slice %24 {offsets = [13, 0], sizes = [1, 8], strides = [1, 1]} : vector<16x8xf32> to vector<1x8xf32>
    %170 = vector.broadcast %169 : vector<1x8xf32> to vector<16x8xf32>
    %171 = arith.cmpf olt, %170, %24 : vector<16x8xf32>
    %172 = arith.extui %171 : vector<16x8xi1> to vector<16x8xi32>
    %173 = arith.sitofp %172 : vector<16x8xi32> to vector<16x8xf32>
    %174 = arith.addf %163, %173 : vector<16x8xf32>
    %175 = vector.broadcast %169 : vector<1x8xf32> to vector<16x8xf32>
    %176 = arith.cmpf ole, %175, %24 : vector<16x8xf32>
    %177 = arith.extui %176 : vector<16x8xi1> to vector<16x8xi32>
    %178 = arith.sitofp %177 : vector<16x8xi32> to vector<16x8xf32>
    %179 = arith.addf %168, %178 : vector<16x8xf32>
    %180 = vector.extract_strided_slice %24 {offsets = [14, 0], sizes = [1, 8], strides = [1, 1]} : vector<16x8xf32> to vector<1x8xf32>
    %181 = vector.broadcast %180 : vector<1x8xf32> to vector<16x8xf32>
    %182 = arith.cmpf olt, %181, %24 : vector<16x8xf32>
    %183 = arith.extui %182 : vector<16x8xi1> to vector<16x8xi32>
    %184 = arith.sitofp %183 : vector<16x8xi32> to vector<16x8xf32>
    %185 = arith.addf %174, %184 : vector<16x8xf32>
    %186 = vector.broadcast %180 : vector<1x8xf32> to vector<16x8xf32>
    %187 = arith.cmpf ole, %186, %24 : vector<16x8xf32>
    %188 = arith.extui %187 : vector<16x8xi1> to vector<16x8xi32>
    %189 = arith.sitofp %188 : vector<16x8xi32> to vector<16x8xf32>
    %190 = arith.addf %179, %189 : vector<16x8xf32>
    %191 = vector.extract_strided_slice %24 {offsets = [15, 0], sizes = [1, 8], strides = [1, 1]} : vector<16x8xf32> to vector<1x8xf32>
    %192 = vector.broadcast %191 : vector<1x8xf32> to vector<16x8xf32>
    %193 = arith.cmpf olt, %192, %24 : vector<16x8xf32>
    %194 = arith.extui %193 : vector<16x8xi1> to vector<16x8xi32>
    %195 = arith.sitofp %194 : vector<16x8xi32> to vector<16x8xf32>
    %196 = arith.addf %185, %195 : vector<16x8xf32>
    %197 = vector.broadcast %191 : vector<1x8xf32> to vector<16x8xf32>
    %198 = arith.cmpf ole, %197, %24 : vector<16x8xf32>
    %199 = arith.extui %198 : vector<16x8xi1> to vector<16x8xi32>
    %200 = arith.sitofp %199 : vector<16x8xi32> to vector<16x8xf32>
    %201 = arith.addf %190, %200 : vector<16x8xf32>
    %cst_7 = arith.constant 4.000000e+00 : f32
    %202 = vector.broadcast %cst_7 : f32 to vector<16x8xf32>
    %203 = arith.cmpf ole, %196, %202 : vector<16x8xf32>
    %cst_8 = arith.constant 4.000000e+00 : f32
    %204 = vector.broadcast %cst_8 : f32 to vector<16x8xf32>
    %205 = arith.cmpf ogt, %201, %204 : vector<16x8xf32>
    %206 = arith.andi %203, %205 : vector<16x8xi1>
    %cst_9 = arith.constant -1.000000e+00 : f32
    %207 = vector.broadcast %cst_9 : f32 to vector<16x8xf32>
    %208 = arith.select %206, %24, %207 : vector<16x8xi1>, vector<16x8xf32>
    %cst_10 = arith.constant dense<0xFF800000> : vector<8xf32>
    %209 = vector.multi_reduction <maximumf>, %208, %cst_10 [0] : vector<16x8xf32> to vector<8xf32>
    %210 = vector.shape_cast %209 : vector<8xf32> to vector<1x8xf32>
    %c0_11 = arith.constant 0 : index
    %211 = memref.load %arg6[%c0_11] : memref<1xf32, #tpu.memory_space<smem>>
    %cst_12 = arith.constant 9.99999997E-7 : f32
    %212 = vector.broadcast %cst_12 : f32 to vector<1x8xf32>
    %213 = arith.addf %210, %212 : vector<1x8xf32>
    %214 = vector.broadcast %211 : f32 to vector<1x8xf32>
    %215 = arith.mulf %214, %213 : vector<1x8xf32>
    %216 = vector.broadcast %215 : vector<1x8xf32> to vector<16x8xf32>
    %217 = arith.cmpf ogt, %19, %216 : vector<16x8xf32>
    %218 = arith.extui %217 : vector<16x8xi1> to vector<16x8xi32>
    %219 = arith.sitofp %218 : vector<16x8xi32> to vector<16x8xf32>
    %220 = arith.truncf %219 : vector<16x8xf32> to vector<16x8xbf16>
    %221 = tpu.iota {dimensions = array<i32: 0>} : vector<8x128xi32>
    %c64_i32_13 = arith.constant 64 : i32
    %222 = vector.broadcast %c64_i32_13 : i32 to vector<8x128xi32>
    %223 = arith.muli %221, %222 : vector<8x128xi32>
    %224 = tpu.iota {dimensions = array<i32: 1>} : vector<8x128xi32>
    %225 = arith.cmpi sge, %224, %223 : vector<8x128xi32>
    %c64_i32_14 = arith.constant 64 : i32
    %226 = vector.broadcast %c64_i32_14 : i32 to vector<8x128xi32>
    %227 = arith.addi %223, %226 : vector<8x128xi32>
    %228 = arith.cmpi slt, %224, %227 : vector<8x128xi32>
    %229 = arith.andi %225, %228 : vector<8x128xi1>
    %230 = arith.extui %229 : vector<8x128xi1> to vector<8x128xi32>
    %231 = arith.sitofp %230 : vector<8x128xi32> to vector<8x128xf32>
    %232 = arith.truncf %231 : vector<8x128xf32> to vector<8x128xbf16>
    %cst_15 = arith.constant dense<0.000000e+00> : vector<16x128xf32>
    %233 = tpu.matmul %220, %232, %cst_15 {dimension_numbers = #tpu.dot_dimension_numbers<[1], [0], [0], [1], [0, 0, 1, 1], [], []>} : vector<16x8xbf16>, vector<8x128xbf16>, vector<16x128xf32> -> vector<16x128xf32>
    %c0_16 = arith.constant 0 : index
    %c0_17 = arith.constant 0 : index
    %234 = vector.load %arg5[%c0_16, %c0_17] : memref<4x128xf32, #tpu.memory_space<vmem>>, vector<1x128xf32>
    %c1 = arith.constant 1 : index
    %c0_18 = arith.constant 0 : index
    %235 = vector.load %arg5[%c1, %c0_18] : memref<4x128xf32, #tpu.memory_space<vmem>>, vector<1x128xf32>
    %c2 = arith.constant 2 : index
    %c0_19 = arith.constant 0 : index
    %236 = vector.load %arg5[%c2, %c0_19] : memref<4x128xf32, #tpu.memory_space<vmem>>, vector<1x128xf32>
    %c3 = arith.constant 3 : index
    %c0_20 = arith.constant 0 : index
    %237 = vector.load %arg5[%c3, %c0_20] : memref<4x128xf32, #tpu.memory_space<vmem>>, vector<1x128xf32>
    %238 = vector.broadcast %236 : vector<1x128xf32> to vector<16x128xf32>
    %239 = arith.mulf %233, %238 : vector<16x128xf32>
    %240 = vector.broadcast %234 : vector<1x128xf32> to vector<16x128xf32>
    %241 = arith.addf %240, %239 : vector<16x128xf32>
    %242 = vector.broadcast %237 : vector<1x128xf32> to vector<16x128xf32>
    %243 = arith.mulf %233, %242 : vector<16x128xf32>
    %244 = vector.broadcast %235 : vector<1x128xf32> to vector<16x128xf32>
    %245 = arith.addf %244, %243 : vector<16x128xf32>
    %246 = arith.mulf %3, %241 : vector<16x128xf32>
    %247 = arith.mulf %4, %245 : vector<16x128xf32>
    %248 = arith.subf %246, %247 : vector<16x128xf32>
    %249 = arith.truncf %248 : vector<16x128xf32> to vector<16x128xbf16>
    %250 = arith.mulf %3, %245 : vector<16x128xf32>
    %251 = arith.mulf %4, %241 : vector<16x128xf32>
    %252 = arith.addf %250, %251 : vector<16x128xf32>
    %253 = arith.truncf %252 : vector<16x128xf32> to vector<16x128xbf16>
    %c0_21 = arith.constant 0 : index
    %c0_22 = arith.constant 0 : index
    %254 = vector.load %arg3[%c0_21, %c0_22] : memref<16x16xbf16, #tpu.memory_space<vmem>>, vector<16x16xbf16>
    %cst_23 = arith.constant dense<0.000000e+00> : vector<16x128xf32>
    %255 = tpu.matmul %254, %249, %cst_23 {dimension_numbers = #tpu.dot_dimension_numbers<[1], [0], [0], [1], [0, 0, 1, 1], [], []>} : vector<16x16xbf16>, vector<16x128xbf16>, vector<16x128xf32> -> vector<16x128xf32>
    %c0_24 = arith.constant 0 : index
    %c0_25 = arith.constant 0 : index
    %256 = vector.load %arg4[%c0_24, %c0_25] : memref<16x16xbf16, #tpu.memory_space<vmem>>, vector<16x16xbf16>
    %cst_26 = arith.constant dense<0.000000e+00> : vector<16x128xf32>
    %257 = tpu.matmul %256, %253, %cst_26 {dimension_numbers = #tpu.dot_dimension_numbers<[1], [0], [0], [1], [0, 0, 1, 1], [], []>} : vector<16x16xbf16>, vector<16x128xbf16>, vector<16x128xf32> -> vector<16x128xf32>
    %258 = arith.addf %255, %257 : vector<16x128xf32>
    %c0_27 = arith.constant 0 : index
    %c0_28 = arith.constant 0 : index
    %259 = vector.load %arg7[%c0_27, %c0_28] : memref<16x128xf32, #tpu.memory_space<vmem>>, vector<16x128xf32>
    tpu.vector_store %arg7[%c0_27, %c0_28], %258 {strides = array<i32>} : memref<16x128xf32, #tpu.memory_space<vmem>>, vector<16x128xf32>,
    return
  }
  func.func @transform_0(%arg0: i32) -> (i32, i32) {
    %c0_i32 = arith.constant 0 : i32
    %c0_i32_0 = arith.constant 0 : i32
    return %c0_i32, %arg0 : i32, i32
  }
  func.func @transform_1(%arg0: i32) -> (i32, i32) {
    %c0_i32 = arith.constant 0 : i32
    %c0_i32_0 = arith.constant 0 : i32
    %c0_i32_1 = arith.constant 0 : i32
    return %c0_i32, %c0_i32_0 : i32, i32
  }
  func.func @transform_2(%arg0: i32) -> (i32, i32) {
    %c0_i32 = arith.constant 0 : i32
    %c0_i32_0 = arith.constant 0 : i32
    %c0_i32_1 = arith.constant 0 : i32
    return %c0_i32, %c0_i32_0 : i32, i32
  }
  func.func @transform_3(%arg0: i32) -> (i32, i32) {
    %c0_i32 = arith.constant 0 : i32
    %c0_i32_0 = arith.constant 0 : i32
    %c0_i32_1 = arith.constant 0 : i32
    return %c0_i32, %c0_i32_0 : i32, i32
  }
  func.func @transform_4(%arg0: i32) -> (i32, i32) {
    %c0_i32 = arith.constant 0 : i32
    %c0_i32_0 = arith.constant 0 : i32
    %c0_i32_1 = arith.constant 0 : i32
    return %c0_i32, %c0_i32_0 : i32, i32
  }
  func.func @transform_5(%arg0: i32) -> i32 {
    %c0_i32 = arith.constant 0 : i32
    %c0_i32_0 = arith.constant 0 : i32
    return %c0_i32 : i32
  }
  func.func @transform_6(%arg0: i32) -> (i32, i32) {
    %c0_i32 = arith.constant 0 : i32
    %c0_i32_0 = arith.constant 0 : i32
    return %c0_i32, %arg0 : i32, i32
  }
}

</mosaic_0001>

<llo_original>
// kernel: tpu_custom_call.1
$region0: #{tpu_custom_call.1}
  #allocation0 [shape = 'u32[]', space=smem, size = 0x4, offset = 0x4, fixed_abs, tag = 'smem constant byte address 0x4 - core index']
  #allocation1 [shape = 'u32[144,128]{1,0:T(1,128)}', space=vmem, size = 0x12000, scoped, tag = 'internal scratch']
  #allocation2 [shape = 'f32[1]{0:T(128)S(6)}', space=smem, size = 0x200, scoped, tag = 'scoped memory for tpu_custom_call.1']
  %s0 = inlined_call_operand.hbm [shape: f32[16,512], index: 0, kind: input, shape index: {}]
  %s1 = inlined_call_operand.hbm [shape: f32[32,16], index: 1, kind: input, shape index: {}]
  %s2 = inlined_call_operand.hbm [shape: bf16[16,16], index: 2, kind: input, shape index: {}]
  %s3 = inlined_call_operand.hbm [shape: bf16[16,16], index: 3, kind: input, shape index: {}]
  %s4 = inlined_call_operand.hbm [shape: f32[4,128], index: 4, kind: input, shape index: {}]
  %s5 = inlined_call_operand.<no memory space> [shape: f32[1], index: 5, kind: input, shape index: {}]
  %s6 = inlined_call_operand.hbm [shape: f32[16,512], index: 6, kind: output, shape index: {}]
  %s7 = sld [smem:[#allocation0]]
  $region77: #{tpu_custom_call.1} parent=0
    _
  %s9 = ssub.s32 1, %s7
  %s10 = scalar_select 0, %s9, %s7
  %11 = sst [smem:[#allocation2]] %s5
  $region1: #{tpu_custom_call.1} parent=0
    #allocation3 [shape = 'u8[16384]{0}', space=vmem, size = 0x4000, scoped, tag = 'input window, operand 0']
    #allocation4 [shape = 's32[2]{0}', space=sflag, size = 0x8, scoped, tag = 'scoped memory for tpu_custom_call.1']
    #allocation5 [shape = 's32[2]{0}', space=sflag, size = 0x8, scoped, tag = 'scoped memory for tpu_custom_call.1']
    #allocation6 [shape = 'u8[16384]{0}', space=vmem, size = 0x4000, scoped, tag = 'input window, operand 1, single buffered']
    #allocation7 [shape = 's32[1]{0}', space=sflag, size = 0x4, scoped, tag = 'scoped memory for tpu_custom_call.1']
    #allocation8 [shape = 'u8[4096]{0}', space=vmem, size = 0x1000, scoped, tag = 'input window, operand 2, single buffered']
    #allocation9 [shape = 'u8[4096]{0}', space=vmem, size = 0x1000, scoped, tag = 'input window, operand 3, single buffered']
    #allocation10 [shape = 's32[1]{0}', space=sflag, size = 0x4, scoped, tag = 'scoped memory for tpu_custom_call.1']
    #allocation11 [shape = 'u8[2048]{0}', space=vmem, size = 0x800, scoped, tag = 'input window, operand 4, single buffered']
    #allocation12 [shape = 'u8[16384]{0}', space=vmem, size = 0x4000, scoped, tag = 'output window, operand 0']
    %12 = vsyncpa [#allocation4], 0
    %s13 = scalar_lea.sflag [#allocation4], 1
    %14 = vsyncpa %s13, 0
    %15 = vsyncpa [#allocation7], 0
    %16 = vsyncpa [#allocation10], 0
    %17 = vsyncpa [#allocation5], 0
    %s18 = scalar_lea.sflag [#allocation5], 1
    %19 = vsyncpa %s18, 0
    loop: start=0, step=1, limit=6
    $region2: #{tpu_custom_call.1} parent=1 // loop_pre_header
      _
    $region3: #{tpu_custom_call.1} parent=1 // loop_header
      %s21 = sphi 0, %s25
      %p22 = scmp.ge.s32.totalorder %s21, 6
      %s31 = sphi 0, %s33
      %s34 = sphi 0, %s31
      %s35 = sphi 0, %s34
      %s51 = sphi 0, %s35
      %s55 = sphi 0, %s55
      %s57 = sphi 0, %s55
      %s58 = sphi 0, %s57
      %s72 = sphi 0, %s58
      %s76 = sphi 0, %s76
      %s78 = sphi 0, %s76
      %s79 = sphi 0, %s78
      %s93 = sphi 0, %s79
      %s97 = sphi 0, %s97
      %s99 = sphi 0, %s97
      %s100 = sphi 0, %s99
      %s114 = sphi 0, %s100
      %s118 = sphi 0, %s118
      %s120 = sphi 0, %s118
      %s121 = sphi 0, %s120
      %s135 = sphi 0, %s121
      %s139 = sphi 0, %s139
      %s141 = sphi 0, %s139
      %s142 = sphi 0, %s141
      %s156 = sphi 0, %s142
      %s162 = sphi 0, %s164
      %s165 = sphi 0, %s162
      %s166 = sphi 0, %s165
      %s182 = sphi 0, %s166
    $region4: #{tpu_custom_call.1} parent=1 // loop_header_branch
      %24 = sbr.rel (%p22) target = $region8
    $region5: #{tpu_custom_call.1} parent=1 // loop_body
      %s26 = ssub.s32 %s21, 1
      %s27 = ssub.s32 %s21, 2
      %s28 = sadd.s32 %s21, 1
      %s29 = ssub.s32 %s21, %s28
      %p30 = scmp.eq.s32.totalorder %s29, 0
      %s32 = sadd.s32 %s31, 1
      %s33 = scalar_select %p30, %s31, %s32
      %p36 = pneg %p30
      %p37 = scmp.eq.s32.totalorder %s21, 3
      %p38 = por %p36, %p37
      %p39 = scmp.ne.s32.totalorder %s31, %s34
      %p40 = scmp.eq.s32.totalorder %s21, 0
      %p41 = por %p39, %p40
      %p42 = scmp.ne.s32.totalorder %s31, %s34
      %p43 = scmp.eq.s32.totalorder %s26, 3
      %p44 = por %p42, %p43
      %p45 = scmp.ne.s32.totalorder %s34, %s35
      %p46 = scmp.eq.s32.totalorder %s26, 0
      %p47 = por %p45, %p46
      %p48 = scmp.ne.s32.totalorder %s34, %s35
      %p49 = scmp.eq.s32.totalorder %s27, 3
      %p50 = por %p48, %p49
      %p52 = scmp.ne.s32.totalorder %s35, %s51
      %p53 = scmp.eq.s32.totalorder %s27, 0
      %p54 = por %p52, %p53
      %s56 = sadd.s32 %s55, 1
      %p59 = scmp.eq.s32.totalorder %s21, 3
      %p60 = scmp.ne.s32.totalorder %s55, %s57
      %p61 = scmp.eq.s32.totalorder %s21, 0
      %p62 = por %p60, %p61
      %p63 = scmp.ne.s32.totalorder %s55, %s57
      %p64 = scmp.eq.s32.totalorder %s26, 3
      %p65 = por %p63, %p64
      %p66 = scmp.ne.s32.totalorder %s57, %s58
      %p67 = scmp.eq.s32.totalorder %s26, 0
      %p68 = por %p66, %p67
      %p69 = scmp.ne.s32.totalorder %s57, %s58
      %p70 = scmp.eq.s32.totalorder %s27, 3
      %p71 = por %p69, %p70
      %p73 = scmp.ne.s32.totalorder %s58, %s72
      %p74 = scmp.eq.s32.totalorder %s27, 0
      %p75 = por %p73, %p74
      %s77 = sadd.s32 %s76, 1
      %p80 = scmp.eq.s32.totalorder %s21, 3
      %p81 = scmp.ne.s32.totalorder %s76, %s78
      %p82 = scmp.eq.s32.totalorder %s21, 0
      %p83 = por %p81, %p82
      %p84 = scmp.ne.s32.totalorder %s76, %s78
      %p85 = scmp.eq.s32.totalorder %s26, 3
      %p86 = por %p84, %p85
      %p87 = scmp.ne.s32.totalorder %s78, %s79
      %p88 = scmp.eq.s32.totalorder %s26, 0
      %p89 = por %p87, %p88
      %p90 = scmp.ne.s32.totalorder %s78, %s79
      %p91 = scmp.eq.s32.totalorder %s27, 3
      %p92 = por %p90, %p91
      %p94 = scmp.ne.s32.totalorder %s79, %s93
      %p95 = scmp.eq.s32.totalorder %s27, 0
      %p96 = por %p94, %p95
      %s98 = sadd.s32 %s97, 1
      %p101 = scmp.eq.s32.totalorder %s21, 3
      %p102 = scmp.ne.s32.totalorder %s97, %s99
      %p103 = scmp.eq.s32.totalorder %s21, 0
      %p104 = por %p102, %p103
      %p105 = scmp.ne.s32.totalorder %s97, %s99
      %p106 = scmp.eq.s32.totalorder %s26, 3
      %p107 = por %p105, %p106
      %p108 = scmp.ne.s32.totalorder %s99, %s100
      %p109 = scmp.eq.s32.totalorder %s26, 0
      %p110 = por %p108, %p109
      %p111 = scmp.ne.s32.totalorder %s99, %s100
      %p112 = scmp.eq.s32.totalorder %s27, 3
      %p113 = por %p111, %p112
      %p115 = scmp.ne.s32.totalorder %s100, %s114
      %p116 = scmp.eq.s32.totalorder %s27, 0
      %p117 = por %p115, %p116
      %s119 = sadd.s32 %s118, 1
      %p122 = scmp.eq.s32.totalorder %s21, 3
      %p123 = scmp.ne.s32.totalorder %s118, %s120
      %p124 = scmp.eq.s32.totalorder %s21, 0
      %p125 = por %p123, %p124
      %p126 = scmp.ne.s32.totalorder %s118, %s120
      %p127 = scmp.eq.s32.totalorder %s26, 3
      %p128 = por %p126, %p127
      %p129 = scmp.ne.s32.totalorder %s120, %s121
      %p130 = scmp.eq.s32.totalorder %s26, 0
      %p131 = por %p129, %p130
      %p132 = scmp.ne.s32.totalorder %s120, %s121
      %p133 = scmp.eq.s32.totalorder %s27, 3
      %p134 = por %p132, %p133
      %p136 = scmp.ne.s32.totalorder %s121, %s135
      %p137 = scmp.eq.s32.totalorder %s27, 0
      %p138 = por %p136, %p137
      %s140 = sadd.s32 %s139, 1
      %p143 = scmp.eq.s32.totalorder %s21, 3
      %p144 = scmp.ne.s32.totalorder %s139, %s141
      %p145 = scmp.eq.s32.totalorder %s21, 0
      %p146 = por %p144, %p145
      %p147 = scmp.ne.s32.totalorder %s139, %s141
      %p148 = scmp.eq.s32.totalorder %s26, 3
      %p149 = por %p147, %p148
      %p150 = scmp.ne.s32.totalorder %s141, %s142
      %p151 = scmp.eq.s32.totalorder %s26, 0
      %p152 = por %p150, %p151
      %p153 = scmp.ne.s32.totalorder %s141, %s142
      %p154 = scmp.eq.s32.totalorder %s27, 3
      %p155 = por %p153, %p154
      %p157 = scmp.ne.s32.totalorder %s142, %s156
      %p158 = scmp.eq.s32.totalorder %s27, 0
      %p159 = por %p157, %p158
      %s160 = ssub.s32 %s21, %s28
      %p161 = scmp.eq.s32.totalorder %s160, 0
      %s163 = sadd.s32 %s162, 1
      %s164 = scalar_select %p161, %s162, %s163
      %p167 = pneg %p161
      %p168 = scmp.eq.s32.totalorder %s21, 3
      %p169 = por %p167, %p168
      %p170 = scmp.ne.s32.totalorder %s162, %s165
      %p171 = scmp.eq.s32.totalorder %s21, 0
      %p172 = por %p170, %p171
      %p173 = scmp.ne.s32.totalorder %s162, %s165
      %p174 = scmp.eq.s32.totalorder %s26, 3
      %p175 = por %p173, %p174
      %p176 = scmp.ne.s32.totalorder %s165, %s166
      %p177 = scmp.eq.s32.totalorder %s26, 0
      %p178 = por %p176, %p177
      %p179 = scmp.ne.s32.totalorder %s165, %s166
      %p180 = scmp.eq.s32.totalorder %s27, 3
      %p181 = por %p179, %p180
      %p183 = scmp.ne.s32.totalorder %s166, %s182
      %p184 = scmp.eq.s32.totalorder %s27, 0
      %p185 = por %p183, %p184
      %p186 = scmp.le.s32.totalorder 1, %s21
      %p187 = scmp.lt.s32.totalorder %s21, 5
      %p188 = pnand %p186, %p187
      %p189 = pneg %p188
      // Predicated region
      $region9: #{tpu_custom_call.1} parent=5 // pred_check
        _
      $region10: #{tpu_custom_call.1} parent=5 // pred_check_branch
        %191 = sbr.rel (%p188) target = $region12
      $region11: #{tpu_custom_call.1} parent=5 // pred_region
        %s192 = ssub.s32 %s21, 1
        // Predicated region
        $region13: #{tpu_custom_call.1} parent=11 // pred_check
          %p193 = pneg %p68
        $region14: #{tpu_custom_call.1} parent=11 // pred_check_branch
          %195 = sbr.rel (%p193) target = $region16
        $region15: #{tpu_custom_call.1} parent=11 // pred_region
          %s197 = ssub.s32 512, 512
          %198 = vsyncadd [#allocation7], %s197
          %s199 = sshll.u32 [#allocation6], 4
          %s200 = int_to_ptr.vmem [resolvable:$true] %s199
          %205 = dma.hbm_to_vmem [thread:$0]  %s1, 512, %s200, [#allocation7], 128, 128, 8
        $region16: #{tpu_custom_call.1} parent=11 // pred_fallthru
          _
        // Predicated region
        $region17: #{tpu_custom_call.1} parent=11 // pred_check
          %p206 = pneg %p89
        $region18: #{tpu_custom_call.1} parent=11 // pred_check_branch
          %208 = sbr.rel (%p206) target = $region20
        $region19: #{tpu_custom_call.1} parent=11 // pred_region
          %s210 = ssub.s32 128, 128
          %211 = vsyncadd [#allocation7], %s210
          %s212 = sshll.u32 [#allocation8], 4
          %s213 = int_to_ptr.vmem [resolvable:$true] %s212
          %218 = dma.hbm_to_vmem [thread:$0]  %s2, 128, %s213, [#allocation7], 64, 64, 4
        $region20: #{tpu_custom_call.1} parent=11 // pred_fallthru
          _
        // Predicated region
        $region21: #{tpu_custom_call.1} parent=11 // pred_check
          %p219 = pneg %p110
        $region22: #{tpu_custom_call.1} parent=11 // pred_check_branch
          %221 = sbr.rel (%p219) target = $region24
        $region23: #{tpu_custom_call.1} parent=11 // pred_region
          %s223 = ssub.s32 128, 128
          %224 = vsyncadd [#allocation10], %s223
          %s225 = sshll.u32 [#allocation9], 4
          %s226 = int_to_ptr.vmem [resolvable:$true] %s225
          %231 = dma.hbm_to_vmem [thread:$0]  %s3, 128, %s226, [#allocation10], 64, 64, 4
        $region24: #{tpu_custom_call.1} parent=11 // pred_fallthru
          _
        // Predicated region
        $region25: #{tpu_custom_call.1} parent=11 // pred_check
          %p232 = pneg %p131
        $region26: #{tpu_custom_call.1} parent=11 // pred_check_branch
          %234 = sbr.rel (%p232) target = $region28
        $region27: #{tpu_custom_call.1} parent=11 // pred_region
          %s236 = ssub.s32 64, 64
          %237 = vsyncadd [#allocation10], %s236
          %s239 = sshll.u32 [#allocation11], 4
          %s240 = int_to_ptr.vmem [resolvable:$true] %s239
          %242 = dma.hbm_to_vmem [thread:$0]  %s4, 64, %s240, [#allocation10]
        $region28: #{tpu_custom_call.1} parent=11 // pred_fallthru
          _
        // Predicated region
        $region29: #{tpu_custom_call.1} parent=11 // pred_check
          %p243 = pneg %p152
        $region30: #{tpu_custom_call.1} parent=11 // pred_check_branch
          %245 = sbr.rel (%p243) target = $region32
        $region31: #{tpu_custom_call.1} parent=11 // pred_region
          _
        $region32: #{tpu_custom_call.1} parent=11 // pred_fallthru
          _
      $region12: #{tpu_custom_call.1} parent=5 // pred_fallthru
        _
      %p246 = scmp.lt.s32.totalorder %s21, 4
      // Predicated region
      $region33: #{tpu_custom_call.1} parent=5 // pred_check
        %p247 = pneg %p246
      $region34: #{tpu_custom_call.1} parent=5 // pred_check_branch
        %249 = sbr.rel (%p247) target = $region36
      $region35: #{tpu_custom_call.1} parent=5 // pred_region
        // Predicated region
        $region37: #{tpu_custom_call.1} parent=35 // pred_check
          %p250 = pneg %p41
        $region38: #{tpu_custom_call.1} parent=35 // pred_check_branch
          %252 = sbr.rel (%p250) target = $region40
        $region39: #{tpu_custom_call.1} parent=35 // pred_region
          %s253 = sand.u32 %s31, 1
          %s254 = scalar_lea.sflag [#allocation4], %s253
          %s255 = sand.u32 %s31, 1
          %s256 = smul.addr %s255, 16
          %s257 = scalar_lea.vmem [#allocation3], %s256
          %s259 = ssub.s32 256, 256
          %260 = vsyncadd %s254, %s259
          %s261 = smul.addr %s21, 128
          %s262 = scalar_lea.hbm %s0, %s261
          %s263 = sshll.u32 %s257, 4
          %s264 = int_to_ptr.vmem [resolvable:$true] %s263
          %269 = dma.hbm_to_vmem [thread:$0]  %s262, 256, %s264, %s254, 512, 128, 8
        $region40: #{tpu_custom_call.1} parent=35 // pred_fallthru
          _
      $region36: #{tpu_custom_call.1} parent=5 // pred_fallthru
        _
      %p270 = scmp.le.s32.totalorder 1, %s21
      %p271 = scmp.lt.s32.totalorder %s21, 5
      %p272 = pnand %p270, %p271
      %p273 = pneg %p272
      // Predicated region
      $region41: #{tpu_custom_call.1} parent=5 // pred_check
        _
      $region42: #{tpu_custom_call.1} parent=5 // pred_check_branch
        %275 = sbr.rel (%p272) target = $region44
      $region43: #{tpu_custom_call.1} parent=5 // pred_region
        %s276 = ssub.s32 %s21, 1
        %s277 = sand.u32 %s34, 1
        %s278 = scalar_lea.sflag [#allocation4], %s277
        %s279 = sand.u32 %s34, 1
        %s280 = smul.addr %s279, 16
        %s281 = scalar_lea.vmem [#allocation3], %s280
        // Predicated region
        $region45: #{tpu_custom_call.1} parent=43 // pred_check
          %p282 = pneg %p47
        $region46: #{tpu_custom_call.1} parent=43 // pred_check_branch
          %284 = sbr.rel (%p282) target = $region48
        $region47: #{tpu_custom_call.1} parent=43 // pred_region
          %285 = dma.done %s278, 256
        $region48: #{tpu_custom_call.1} parent=43 // pred_fallthru
          _
        // Predicated region
        $region49: #{tpu_custom_call.1} parent=43 // pred_check
          %p286 = pneg %p68
        $region50: #{tpu_custom_call.1} parent=43 // pred_check_branch
          %288 = sbr.rel (%p286) target = $region52
        $region51: #{tpu_custom_call.1} parent=43 // pred_region
          %289 = dma.done [#allocation7], 512
        $region52: #{tpu_custom_call.1} parent=43 // pred_fallthru
          _
        // Predicated region
        $region53: #{tpu_custom_call.1} parent=43 // pred_check
          %p290 = pneg %p89
        $region54: #{tpu_custom_call.1} parent=43 // pred_check_branch
          %292 = sbr.rel (%p290) target = $region56
        $region55: #{tpu_custom_call.1} parent=43 // pred_region
          %293 = dma.done [#allocation7], 128
        $region56: #{tpu_custom_call.1} parent=43 // pred_fallthru
          _
        // Predicated region
        $region57: #{tpu_custom_call.1} parent=43 // pred_check
          %p294 = pneg %p110
        $region58: #{tpu_custom_call.1} parent=43 // pred_check_branch
          %296 = sbr.rel (%p294) target = $region60
        $region59: #{tpu_custom_call.1} parent=43 // pred_region
          %297 = dma.done [#allocation10], 128
        $region60: #{tpu_custom_call.1} parent=43 // pred_fallthru
          _
        // Predicated region
        $region61: #{tpu_custom_call.1} parent=43 // pred_check
          %p298 = pneg %p131
        $region62: #{tpu_custom_call.1} parent=43 // pred_check_branch
          %300 = sbr.rel (%p298) target = $region64
        $region63: #{tpu_custom_call.1} parent=43 // pred_region
          %301 = dma.done [#allocation10], 64
        $region64: #{tpu_custom_call.1} parent=43 // pred_fallthru
          _
        %s302 = sand.u32 %s34, 1
        %s303 = scalar_lea.sflag [#allocation4], %s302
        %s304 = sand.u32 %s34, 1
        %s305 = smul.addr %s304, 16
        %s306 = scalar_lea.vmem [#allocation3], %s305
        %p307 = pneg %p47
        %p308 = pneg %p44
        %p309 = pneg %p68
        %p310 = pneg %p65
        %p311 = pneg %p89
        %p312 = pneg %p86
        %p313 = pneg %p110
        %p314 = pneg %p107
        %p315 = pneg %p131
        %p316 = pneg %p128
        %p317 = pneg %p152
        %p318 = pneg %p149
        %p319 = pneg %p178
        %p320 = pneg %p175
        %s321 = sand.u32 %s165, 1
        %s322 = scalar_lea.sflag [#allocation5], %s321
        %s323 = sand.u32 %s165, 1
        %s324 = smul.addr %s323, 16
        %s325 = scalar_lea.vmem [#allocation12], %s324
        %v327 = vld [vmem:[%s281] sm:$0xff]
        %v328 = vld [vmem:[%s281 + $0x8] sm:$0xff]
        %v329 = vld [vmem:[#allocation6] sm:$0xff]
        %v330 = vld [vmem:[#allocation6 + $0x8] sm:$0xff]
        %v331 = vld [vmem:[#allocation6 + $0x10] sm:$0xff]
        %v332 = vld [vmem:[#allocation6 + $0x18] sm:$0xff]
        %vm333 = vcmask 130048
        %v335 = vsel %vm333, %v329, 0
        %v338 = vsel %vm333, %v330, 0
        %v341 = vsel %vm333, %v331, 0
        %v344 = vsel %vm333, %v332, 0
        %346 = vmatprep.subr.mxu0 0.0
        %v347 = vand.u32 %v327, 4294901760
        %348 = vmatpush1.msra.mxu0 %v347
        %349 = vmatprep.subr.mxu0 0.0
        %v350 = vand.u32 %v328, 4294901760
        %351 = vmatpush1.msra.mxu0 %v350
        %352 = vmatprep.subr.mxu0 0.0
        %353 = vmatpush1.msra.mxu0 0.0
        %354 = vmatprep.subr.mxu0 0.0
        %355 = vmatpush1.msra.mxu0 0.0
        %356 = vmatprep.subr.mxu0 0.0
        %357 = vmatpush1.msra.mxu0 0.0
        %358 = vmatprep.subr.mxu0 0.0
        %359 = vmatpush1.msra.mxu0 0.0
        %360 = vmatprep.subr.mxu0 0.0
        %361 = vmatpush1.msra.mxu0 0.0
        %362 = vmatprep.subr.mxu0 0.0
        %363 = vmatpush1.msra.mxu0 0.0
        %364 = vmatprep.subr.mxu0 0.0
        %365 = vmatpush1.msra.mxu0 0.0
        %366 = vmatprep.subr.mxu0 0.0
        %367 = vmatpush1.msra.mxu0 0.0
        %368 = vmatprep.subr.mxu0 0.0
        %369 = vmatpush1.msra.mxu0 0.0
        %370 = vmatprep.subr.mxu0 0.0
        %371 = vmatpush1.msra.mxu0 0.0
        %372 = vmatprep.subr.mxu0 0.0
        %373 = vmatpush1.msra.mxu0 0.0
        %374 = vmatprep.subr.mxu0 0.0
        %375 = vmatpush1.msra.mxu0 0.0
        %376 = vmatprep.subr.mxu0 0.0
        %377 = vmatpush1.msra.mxu0 0.0
        %378 = vmatprep.subr.mxu0 0.0
        %379 = vmatpush1.msra.mxu0 0.0
        %380 = vmatprep.subr.mxu0 0.0
        %381 = vmatpush1.msra.mxu0 0.0
        %382 = vmatprep.subr.mxu0 0.0
        %383 = vmatpush1.msra.mxu0 0.0
        %384 = vmatprep.subr.mxu0 0.0
        %385 = vmatpush1.msra.mxu0 0.0
        %386 = vmatprep.subr.mxu0 0.0
        %387 = vmatpush1.msra.mxu0 0.0
        %388 = vmatprep.subr.mxu0 0.0
        %389 = vmatpush1.msra.mxu0 0.0
        %390 = vmatprep.subr.mxu0 0.0
        %391 = vmatpush1.msra.mxu0 0.0
        %392 = vmatprep.subr.mxu0 0.0
        %393 = vmatpush1.msra.mxu0 0.0
        %394 = vmatprep.subr.mxu0 0.0
        %395 = vmatpush1.msra.mxu0 0.0
        %396 = vmatprep.subr.mxu0 0.0
        %397 = vmatpush1.msra.mxu0 0.0
        %398 = vmatprep.subr.mxu0 0.0
        %399 = vmatpush1.msra.mxu0 0.0
        %400 = vmatprep.subr.mxu0 0.0
        %401 = vmatpush1.msra.mxu0 0.0
        %402 = vmatprep.subr.mxu0 0.0
        %403 = vmatpush1.msra.mxu0 0.0
        %404 = vmatprep.subr.mxu0 0.0
        %405 = vmatpush1.msra.mxu0 0.0
        %406 = vmatprep.subr.mxu0 0.0
        %407 = vmatpush1.msra.mxu0 0.0
        %408 = vmatprep.subr.mxu0 0.0
        %409 = vmatpush1.msra.mxu0 0.0
        %410 = vmatprep.subr.mxu0 0.0
        %411 = vmatpush1.msra.mxu0 0.0
        %412 = vmatprep.mubr.f32.mxu0 0.0
        %v413 = vand.u32 %v335, 4294901760
        %v414 = vsub.f32 %v335, %v413
        %v415 = vand.u32 %v414, 4294901760
        %v416 = vsub.f32 %v414, %v415
        %v417 = vand.u32 %v416, 4294901760
        %418 = vmatmul.mubr.f32.gmra.mrb[0].mxu0 %v417
        %v419 = vpop.f32.mrb[0].mxu0
        %v420 = vadd.f32 0.0, %v419
        %v421 = vpop.f32.mrb[0].mxu0
        %422 = vmatprep.mubr.f32.mxu0 0.0
        %v423 = vand.u32 %v338, 4294901760
        %v424 = vsub.f32 %v338, %v423
        %v425 = vand.u32 %v424, 4294901760
        %v426 = vsub.f32 %v424, %v425
        %v427 = vand.u32 %v426, 4294901760
        %428 = vmatmul.mubr.f32.gmra.mrb[0].mxu0 %v427
        %v429 = vpop.f32.mrb[0].mxu0
        %v430 = vadd.f32 0.0, %v429
        %v431 = vpop.f32.mrb[0].mxu0
        %432 = vmatprep.mubr.f32.mxu0 0.0
        %v433 = vand.u32 %v341, 4294901760
        %v434 = vsub.f32 %v341, %v433
        %v435 = vand.u32 %v434, 4294901760
        %v436 = vsub.f32 %v434, %v435
        %v437 = vand.u32 %v436, 4294901760
        %438 = vmatmul.mubr.f32.gmra.mrb[0].mxu0 %v437
        %v439 = vpop.f32.mrb[0].mxu0
        %v440 = vadd.f32 0.0, %v439
        %v441 = vpop.f32.mrb[0].mxu0
        %442 = vmatprep.mubr.f32.mxu0 0.0
        %v443 = vand.u32 %v344, 4294901760
        %v444 = vsub.f32 %v344, %v443
        %v445 = vand.u32 %v444, 4294901760
        %v446 = vsub.f32 %v444, %v445
        %v447 = vand.u32 %v446, 4294901760
        %448 = vmatmul.mubr.f32.gmra.mrb[0].mxu0 %v447
        %v449 = vpop.f32.mrb[0].mxu0
        %v450 = vadd.f32 0.0, %v449
        %v451 = vpop.f32.mrb[0].mxu0
        %452 = vdwg.mxu0
        %453 = vmatprep.subr.mxu0 0.0
        %v454 = vand.u32 %v327, 4294901760
        %v455 = vsub.f32 %v327, %v454
        %v456 = vand.u32 %v455, 4294901760
        %v457 = vsub.f32 %v455, %v456
        %v458 = vand.u32 %v457, 4294901760
        %459 = vmatpush1.msra.mxu0 %v458
        %460 = vmatprep.subr.mxu0 0.0
        %v461 = vand.u32 %v328, 4294901760
        %v462 = vsub.f32 %v328, %v461
        %v463 = vand.u32 %v462, 4294901760
        %v464 = vsub.f32 %v462, %v463
        %v465 = vand.u32 %v464, 4294901760
        %466 = vmatpush1.msra.mxu0 %v465
        %467 = vmatprep.subr.mxu0 0.0
        %468 = vmatpush1.msra.mxu0 0.0
        %469 = vmatprep.subr.mxu0 0.0
        %470 = vmatpush1.msra.mxu0 0.0
        %471 = vmatprep.subr.mxu0 0.0
        %472 = vmatpush1.msra.mxu0 0.0
        %473 = vmatprep.subr.mxu0 0.0
        %474 = vmatpush1.msra.mxu0 0.0
        %475 = vmatprep.subr.mxu0 0.0
        %476 = vmatpush1.msra.mxu0 0.0
        %477 = vmatprep.subr.mxu0 0.0
        %478 = vmatpush1.msra.mxu0 0.0
        %479 = vmatprep.subr.mxu0 0.0
        %480 = vmatpush1.msra.mxu0 0.0
        %481 = vmatprep.subr.mxu0 0.0
        %482 = vmatpush1.msra.mxu0 0.0
        %483 = vmatprep.subr.mxu0 0.0
        %484 = vmatpush1.msra.mxu0 0.0
        %485 = vmatprep.subr.mxu0 0.0
        %486 = vmatpush1.msra.mxu0 0.0
        %487 = vmatprep.subr.mxu0 0.0
        %488 = vmatpush1.msra.mxu0 0.0
        %489 = vmatprep.subr.mxu0 0.0
        %490 = vmatpush1.msra.mxu0 0.0
        %491 = vmatprep.subr.mxu0 0.0
        %492 = vmatpush1.msra.mxu0 0.0
        %493 = vmatprep.subr.mxu0 0.0
        %494 = vmatpush1.msra.mxu0 0.0
        %495 = vmatprep.subr.mxu0 0.0
        %496 = vmatpush1.msra.mxu0 0.0
        %497 = vmatprep.subr.mxu0 0.0
        %498 = vmatpush1.msra.mxu0 0.0
        %499 = vmatprep.subr.mxu0 0.0
        %500 = vmatpush1.msra.mxu0 0.0
        %501 = vmatprep.subr.mxu0 0.0
        %502 = vmatpush1.msra.mxu0 0.0
        %503 = vmatprep.subr.mxu0 0.0
        %504 = vmatpush1.msra.mxu0 0.0
        %505 = vmatprep.subr.mxu0 0.0
        %506 = vmatpush1.msra.mxu0 0.0
        %507 = vmatprep.subr.mxu0 0.0
        %508 = vmatpush1.msra.mxu0 0.0
        %509 = vmatprep.subr.mxu0 0.0
        %510 = vmatpush1.msra.mxu0 0.0
        %511 = vmatprep.subr.mxu0 0.0
        %512 = vmatpush1.msra.mxu0 0.0
        %513 = vmatprep.subr.mxu0 0.0
        %514 = vmatpush1.msra.mxu0 0.0
        %515 = vmatprep.subr.mxu0 0.0
        %516 = vmatpush1.msra.mxu0 0.0
        %517 = vmatprep.subr.mxu0 0.0
        %518 = vmatpush1.msra.mxu0 0.0
        %519 = vmatprep.subr.mxu0 0.0
        %520 = vmatpush1.msra.mxu0 0.0
        %521 = vmatprep.subr.mxu0 0.0
        %522 = vmatpush1.msra.mxu0 0.0
        %523 = vmatprep.subr.mxu0 0.0
        %524 = vmatpush1.msra.mxu0 0.0
        %525 = vmatprep.subr.mxu0 0.0
        %526 = vmatpush1.msra.mxu0 0.0
        %527 = vmatprep.mubr.f32.mxu0 0.0
        %v528 = vand.u32 %v335, 4294901760
        %529 = vmatmul.mubr.f32.gmra.mrb[0].mxu0 %v528
        %v530 = vpop.f32.mrb[0].mxu0
        %v531 = vadd.f32 %v420, %v530
        %v532 = vpop.f32.mrb[0].mxu0
        %533 = vmatprep.mubr.f32.mxu0 0.0
        %v534 = vand.u32 %v338, 4294901760
        %535 = vmatmul.mubr.f32.gmra.mrb[0].mxu0 %v534
        %v536 = vpop.f32.mrb[0].mxu0
        %v537 = vadd.f32 %v430, %v536
        %v538 = vpop.f32.mrb[0].mxu0
        %539 = vmatprep.mubr.f32.mxu0 0.0
        %v540 = vand.u32 %v341, 4294901760
        %541 = vmatmul.mubr.f32.gmra.mrb[0].mxu0 %v540
        %v542 = vpop.f32.mrb[0].mxu0
        %v543 = vadd.f32 %v440, %v542
        %v544 = vpop.f32.mrb[0].mxu0
        %545 = vmatprep.mubr.f32.mxu0 0.0
        %v546 = vand.u32 %v344, 4294901760
        %547 = vmatmul.mubr.f32.gmra.mrb[0].mxu0 %v546
        %v548 = vpop.f32.mrb[0].mxu0
        %v549 = vadd.f32 %v450, %v548
        %v550 = vpop.f32.mrb[0].mxu0
        %551 = vdwg.mxu0
        %552 = vmatprep.subr.mxu0 0.0
        %v553 = vand.u32 %v327, 4294901760
        %v554 = vsub.f32 %v327, %v553
        %555 = vmatpush1.msra.mxu0 %v554
        %556 = vmatprep.subr.mxu0 0.0
        %v557 = vand.u32 %v328, 4294901760
        %v558 = vsub.f32 %v328, %v557
        %559 = vmatpush1.msra.mxu0 %v558
        %560 = vmatprep.subr.mxu0 0.0
        %561 = vmatpush1.msra.mxu0 0.0
        %562 = vmatprep.subr.mxu0 0.0
        %563 = vmatpush1.msra.mxu0 0.0
        %564 = vmatprep.subr.mxu0 0.0
        %565 = vmatpush1.msra.mxu0 0.0
        %566 = vmatprep.subr.mxu0 0.0
        %567 = vmatpush1.msra.mxu0 0.0
        %568 = vmatprep.subr.mxu0 0.0
        %569 = vmatpush1.msra.mxu0 0.0
        %570 = vmatprep.subr.mxu0 0.0
        %571 = vmatpush1.msra.mxu0 0.0
        %572 = vmatprep.subr.mxu0 0.0
        %573 = vmatpush1.msra.mxu0 0.0
        %574 = vmatprep.subr.mxu0 0.0
        %575 = vmatpush1.msra.mxu0 0.0
        %576 = vmatprep.subr.mxu0 0.0
        %577 = vmatpush1.msra.mxu0 0.0
        %578 = vmatprep.subr.mxu0 0.0
        %579 = vmatpush1.msra.mxu0 0.0
        %580 = vmatprep.subr.mxu0 0.0
        %581 = vmatpush1.msra.mxu0 0.0
        %582 = vmatprep.subr.mxu0 0.0
        %583 = vmatpush1.msra.mxu0 0.0
        %584 = vmatprep.subr.mxu0 0.0
        %585 = vmatpush1.msra.mxu0 0.0
        %586 = vmatprep.subr.mxu0 0.0
        %587 = vmatpush1.msra.mxu0 0.0
        %588 = vmatprep.subr.mxu0 0.0
        %589 = vmatpush1.msra.mxu0 0.0
        %590 = vmatprep.subr.mxu0 0.0
        %591 = vmatpush1.msra.mxu0 0.0
        %592 = vmatprep.subr.mxu0 0.0
        %593 = vmatpush1.msra.mxu0 0.0
        %594 = vmatprep.subr.mxu0 0.0
        %595 = vmatpush1.msra.mxu0 0.0
        %596 = vmatprep.subr.mxu0 0.0
        %597 = vmatpush1.msra.mxu0 0.0
        %598 = vmatprep.subr.mxu0 0.0
        %599 = vmatpush1.msra.mxu0 0.0
        %600 = vmatprep.subr.mxu0 0.0
        %601 = vmatpush1.msra.mxu0 0.0
        %602 = vmatprep.subr.mxu0 0.0
        %603 = vmatpush1.msra.mxu0 0.0
        %604 = vmatprep.subr.mxu0 0.0
        %605 = vmatpush1.msra.mxu0 0.0
        %606 = vmatprep.subr.mxu0 0.0
        %607 = vmatpush1.msra.mxu0 0.0
        %608 = vmatprep.subr.mxu0 0.0
        %609 = vmatpush1.msra.mxu0 0.0
        %610 = vmatprep.subr.mxu0 0.0
        %611 = vmatpush1.msra.mxu0 0.0
        %612 = vmatprep.subr.mxu0 0.0
        %613 = vmatpush1.msra.mxu0 0.0
        %614 = vmatprep.subr.mxu0 0.0
        %615 = vmatpush1.msra.mxu0 0.0
        %616 = vmatprep.subr.mxu0 0.0
        %617 = vmatpush1.msra.mxu0 0.0
        %618 = vmatprep.subr.mxu0 0.0
        %619 = vmatpush1.msra.mxu0 0.0
        %620 = vmatprep.mubr.f32.mxu0 0.0
        %v621 = vand.u32 %v335, 4294901760
        %v622 = vsub.f32 %v335, %v621
        %623 = vmatmul.mubr.f32.gmra.mrb[0].mxu0 %v622
        %v624 = vpop.f32.mrb[0].mxu0
        %v625 = vadd.f32 %v531, %v624
        %v626 = vpop.f32.mrb[0].mxu0
        %627 = vmatprep.mubr.f32.mxu0 0.0
        %v628 = vand.u32 %v338, 4294901760
        %v629 = vsub.f32 %v338, %v628
        %630 = vmatmul.mubr.f32.gmra.mrb[0].mxu0 %v629
        %v631 = vpop.f32.mrb[0].mxu0
        %v632 = vadd.f32 %v537, %v631
        %v633 = vpop.f32.mrb[0].mxu0
        %634 = vmatprep.mubr.f32.mxu0 0.0
        %v635 = vand.u32 %v341, 4294901760
        %v636 = vsub.f32 %v341, %v635
        %637 = vmatmul.mubr.f32.gmra.mrb[0].mxu0 %v636
        %v638 = vpop.f32.mrb[0].mxu0
        %v639 = vadd.f32 %v543, %v638
        %v640 = vpop.f32.mrb[0].mxu0
        %641 = vmatprep.mubr.f32.mxu0 0.0
        %v642 = vand.u32 %v344, 4294901760
        %v643 = vsub.f32 %v344, %v642
        %644 = vmatmul.mubr.f32.gmra.mrb[0].mxu0 %v643
        %v645 = vpop.f32.mrb[0].mxu0
        %v646 = vadd.f32 %v549, %v645
        %v647 = vpop.f32.mrb[0].mxu0
        %648 = vdwg.mxu0
        %649 = vmatprep.subr.mxu0 0.0
        %v650 = vand.u32 %v327, 4294901760
        %651 = vmatpush1.msra.mxu0 %v650
        %652 = vmatprep.subr.mxu0 0.0
        %v653 = vand.u32 %v328, 4294901760
        %654 = vmatpush1.msra.mxu0 %v653
        %655 = vmatprep.subr.mxu0 0.0
        %656 = vmatpush1.msra.mxu0 0.0
        %657 = vmatprep.subr.mxu0 0.0
        %658 = vmatpush1.msra.mxu0 0.0
        %659 = vmatprep.subr.mxu0 0.0
        %660 = vmatpush1.msra.mxu0 0.0
        %661 = vmatprep.subr.mxu0 0.0
        %662 = vmatpush1.msra.mxu0 0.0
        %663 = vmatprep.subr.mxu0 0.0
        %664 = vmatpush1.msra.mxu0 0.0
        %665 = vmatprep.subr.mxu0 0.0
        %666 = vmatpush1.msra.mxu0 0.0
        %667 = vmatprep.subr.mxu0 0.0
        %668 = vmatpush1.msra.mxu0 0.0
        %669 = vmatprep.subr.mxu0 0.0
        %670 = vmatpush1.msra.mxu0 0.0
        %671 = vmatprep.subr.mxu0 0.0
        %672 = vmatpush1.msra.mxu0 0.0
        %673 = vmatprep.subr.mxu0 0.0
        %674 = vmatpush1.msra.mxu0 0.0
        %675 = vmatprep.subr.mxu0 0.0
        %676 = vmatpush1.msra.mxu0 0.0
        %677 = vmatprep.subr.mxu0 0.0
        %678 = vmatpush1.msra.mxu0 0.0
        %679 = vmatprep.subr.mxu0 0.0
        %680 = vmatpush1.msra.mxu0 0.0
        %681 = vmatprep.subr.mxu0 0.0
        %682 = vmatpush1.msra.mxu0 0.0
        %683 = vmatprep.subr.mxu0 0.0
        %684 = vmatpush1.msra.mxu0 0.0
        %685 = vmatprep.subr.mxu0 0.0
        %686 = vmatpush1.msra.mxu0 0.0
        %687 = vmatprep.subr.mxu0 0.0
        %688 = vmatpush1.msra.mxu0 0.0
        %689 = vmatprep.subr.mxu0 0.0
        %690 = vmatpush1.msra.mxu0 0.0
        %691 = vmatprep.subr.mxu0 0.0
        %692 = vmatpush1.msra.mxu0 0.0
        %693 = vmatprep.subr.mxu0 0.0
        %694 = vmatpush1.msra.mxu0 0.0
        %695 = vmatprep.subr.mxu0 0.0
        %696 = vmatpush1.msra.mxu0 0.0
        %697 = vmatprep.subr.mxu0 0.0
        %698 = vmatpush1.msra.mxu0 0.0
        %699 = vmatprep.subr.mxu0 0.0
        %700 = vmatpush1.msra.mxu0 0.0
        %701 = vmatprep.subr.mxu0 0.0
        %702 = vmatpush1.msra.mxu0 0.0
        %703 = vmatprep.subr.mxu0 0.0
        %704 = vmatpush1.msra.mxu0 0.0
        %705 = vmatprep.subr.mxu0 0.0
        %706 = vmatpush1.msra.mxu0 0.0
        %707 = vmatprep.subr.mxu0 0.0
        %708 = vmatpush1.msra.mxu0 0.0
        %709 = vmatprep.subr.mxu0 0.0
        %710 = vmatpush1.msra.mxu0 0.0
        %711 = vmatprep.subr.mxu0 0.0
        %712 = vmatpush1.msra.mxu0 0.0
        %713 = vmatprep.subr.mxu0 0.0
        %714 = vmatpush1.msra.mxu0 0.0
        %715 = vmatprep.mubr.f32.mxu0 0.0
        %v716 = vand.u32 %v335, 4294901760
        %v717 = vsub.f32 %v335, %v716
        %v718 = vand.u32 %v717, 4294901760
        %719 = vmatmul.mubr.f32.gmra.mrb[0].mxu0 %v718
        %v720 = vpop.f32.mrb[0].mxu0
        %v721 = vadd.f32 %v625, %v720
        %v722 = vpop.f32.mrb[0].mxu0
        %723 = vmatprep.mubr.f32.mxu0 0.0
        %v724 = vand.u32 %v338, 4294901760
        %v725 = vsub.f32 %v338, %v724
        %v726 = vand.u32 %v725, 4294901760
        %727 = vmatmul.mubr.f32.gmra.mrb[0].mxu0 %v726
        %v728 = vpop.f32.mrb[0].mxu0
        %v729 = vadd.f32 %v632, %v728
        %v730 = vpop.f32.mrb[0].mxu0
        %731 = vmatprep.mubr.f32.mxu0 0.0
        %v732 = vand.u32 %v341, 4294901760
        %v733 = vsub.f32 %v341, %v732
        %v734 = vand.u32 %v733, 4294901760
        %735 = vmatmul.mubr.f32.gmra.mrb[0].mxu0 %v734
        %v736 = vpop.f32.mrb[0].mxu0
        %v737 = vadd.f32 %v639, %v736
        %v738 = vpop.f32.mrb[0].mxu0
        %739 = vmatprep.mubr.f32.mxu0 0.0
        %v740 = vand.u32 %v344, 4294901760
        %v741 = vsub.f32 %v344, %v740
        %v742 = vand.u32 %v741, 4294901760
        %743 = vmatmul.mubr.f32.gmra.mrb[0].mxu0 %v742
        %v744 = vpop.f32.mrb[0].mxu0
        %v745 = vadd.f32 %v646, %v744
        %v746 = vpop.f32.mrb[0].mxu0
        %747 = vdwg.mxu0
        %748 = vmatprep.subr.mxu0 0.0
        %v749 = vand.u32 %v327, 4294901760
        %v750 = vsub.f32 %v327, %v749
        %v751 = vand.u32 %v750, 4294901760
        %752 = vmatpush1.msra.mxu0 %v751
        %753 = vmatprep.subr.mxu0 0.0
        %v754 = vand.u32 %v328, 4294901760
        %v755 = vsub.f32 %v328, %v754
        %v756 = vand.u32 %v755, 4294901760
        %757 = vmatpush1.msra.mxu0 %v756
        %758 = vmatprep.subr.mxu0 0.0
        %759 = vmatpush1.msra.mxu0 0.0
        %760 = vmatprep.subr.mxu0 0.0
        %761 = vmatpush1.msra.mxu0 0.0
        %762 = vmatprep.subr.mxu0 0.0
        %763 = vmatpush1.msra.mxu0 0.0
        %764 = vmatprep.subr.mxu0 0.0
        %765 = vmatpush1.msra.mxu0 0.0
        %766 = vmatprep.subr.mxu0 0.0
        %767 = vmatpush1.msra.mxu0 0.0
        %768 = vmatprep.subr.mxu0 0.0
        %769 = vmatpush1.msra.mxu0 0.0
        %770 = vmatprep.subr.mxu0 0.0
        %771 = vmatpush1.msra.mxu0 0.0
        %772 = vmatprep.subr.mxu0 0.0
        %773 = vmatpush1.msra.mxu0 0.0
        %774 = vmatprep.subr.mxu0 0.0
        %775 = vmatpush1.msra.mxu0 0.0
        %776 = vmatprep.subr.mxu0 0.0
        %777 = vmatpush1.msra.mxu0 0.0
        %778 = vmatprep.subr.mxu0 0.0
        %779 = vmatpush1.msra.mxu0 0.0
        %780 = vmatprep.subr.mxu0 0.0
        %781 = vmatpush1.msra.mxu0 0.0
        %782 = vmatprep.subr.mxu0 0.0
        %783 = vmatpush1.msra.mxu0 0.0
        %784 = vmatprep.subr.mxu0 0.0
        %785 = vmatpush1.msra.mxu0 0.0
        %786 = vmatprep.subr.mxu0 0.0
        %787 = vmatpush1.msra.mxu0 0.0
        %788 = vmatprep.subr.mxu0 0.0
        %789 = vmatpush1.msra.mxu0 0.0
        %790 = vmatprep.subr.mxu0 0.0
        %791 = vmatpush1.msra.mxu0 0.0
        %792 = vmatprep.subr.mxu0 0.0
        %793 = vmatpush1.msra.mxu0 0.0
        %794 = vmatprep.subr.mxu0 0.0
        %795 = vmatpush1.msra.mxu0 0.0
        %796 = vmatprep.subr.mxu0 0.0
        %797 = vmatpush1.msra.mxu0 0.0
        %798 = vmatprep.subr.mxu0 0.0
        %799 = vmatpush1.msra.mxu0 0.0
        %800 = vmatprep.subr.mxu0 0.0
        %801 = vmatpush1.msra.mxu0 0.0
        %802 = vmatprep.subr.mxu0 0.0
        %803 = vmatpush1.msra.mxu0 0.0
        %804 = vmatprep.subr.mxu0 0.0
        %805 = vmatpush1.msra.mxu0 0.0
        %806 = vmatprep.subr.mxu0 0.0
        %807 = vmatpush1.msra.mxu0 0.0
        %808 = vmatprep.subr.mxu0 0.0
        %809 = vmatpush1.msra.mxu0 0.0
        %810 = vmatprep.subr.mxu0 0.0
        %811 = vmatpush1.msra.mxu0 0.0
        %812 = vmatprep.subr.mxu0 0.0
        %813 = vmatpush1.msra.mxu0 0.0
        %814 = vmatprep.subr.mxu0 0.0
        %815 = vmatpush1.msra.mxu0 0.0
        %816 = vmatprep.subr.mxu0 0.0
        %817 = vmatpush1.msra.mxu0 0.0
        %818 = vmatprep.mubr.f32.mxu0 0.0
        %v819 = vand.u32 %v335, 4294901760
        %820 = vmatmul.mubr.f32.gmra.mrb[0].mxu0 %v819
        %v821 = vpop.f32.mrb[0].mxu0
        %v822 = vadd.f32 %v721, %v821
        %v823 = vpop.f32.mrb[0].mxu0
        %824 = vmatprep.mubr.f32.mxu0 0.0
        %v825 = vand.u32 %v338, 4294901760
        %826 = vmatmul.mubr.f32.gmra.mrb[0].mxu0 %v825
        %v827 = vpop.f32.mrb[0].mxu0
        %v828 = vadd.f32 %v729, %v827
        %v829 = vpop.f32.mrb[0].mxu0
        %830 = vmatprep.mubr.f32.mxu0 0.0
        %v831 = vand.u32 %v341, 4294901760
        %832 = vmatmul.mubr.f32.gmra.mrb[0].mxu0 %v831
        %v833 = vpop.f32.mrb[0].mxu0
        %v834 = vadd.f32 %v737, %v833
        %v835 = vpop.f32.mrb[0].mxu0
        %836 = vmatprep.mubr.f32.mxu0 0.0
        %v837 = vand.u32 %v344, 4294901760
        %838 = vmatmul.mubr.f32.gmra.mrb[0].mxu0 %v837
        %v839 = vpop.f32.mrb[0].mxu0
        %v840 = vadd.f32 %v745, %v839
        %v841 = vpop.f32.mrb[0].mxu0
        %842 = vdwg.mxu0
        %843 = vmatprep.subr.mxu0 0.0
        %v844 = vand.u32 %v327, 4294901760
        %845 = vmatpush1.msra.mxu0 %v844
        %846 = vmatprep.subr.mxu0 0.0
        %v847 = vand.u32 %v328, 4294901760
        %848 = vmatpush1.msra.mxu0 %v847
        %849 = vmatprep.subr.mxu0 0.0
        %850 = vmatpush1.msra.mxu0 0.0
        %851 = vmatprep.subr.mxu0 0.0
        %852 = vmatpush1.msra.mxu0 0.0
        %853 = vmatprep.subr.mxu0 0.0
        %854 = vmatpush1.msra.mxu0 0.0
        %855 = vmatprep.subr.mxu0 0.0
        %856 = vmatpush1.msra.mxu0 0.0
        %857 = vmatprep.subr.mxu0 0.0
        %858 = vmatpush1.msra.mxu0 0.0
        %859 = vmatprep.subr.mxu0 0.0
        %860 = vmatpush1.msra.mxu0 0.0
        %861 = vmatprep.subr.mxu0 0.0
        %862 = vmatpush1.msra.mxu0 0.0
        %863 = vmatprep.subr.mxu0 0.0
        %864 = vmatpush1.msra.mxu0 0.0
        %865 = vmatprep.subr.mxu0 0.0
        %866 = vmatpush1.msra.mxu0 0.0
        %867 = vmatprep.subr.mxu0 0.0
        %868 = vmatpush1.msra.mxu0 0.0
        %869 = vmatprep.subr.mxu0 0.0
        %870 = vmatpush1.msra.mxu0 0.0
        %871 = vmatprep.subr.mxu0 0.0
        %872 = vmatpush1.msra.mxu0 0.0
        %873 = vmatprep.subr.mxu0 0.0
        %874 = vmatpush1.msra.mxu0 0.0
        %875 = vmatprep.subr.mxu0 0.0
        %876 = vmatpush1.msra.mxu0 0.0
        %877 = vmatprep.subr.mxu0 0.0
        %878 = vmatpush1.msra.mxu0 0.0
        %879 = vmatprep.subr.mxu0 0.0
        %880 = vmatpush1.msra.mxu0 0.0
        %881 = vmatprep.subr.mxu0 0.0
        %882 = vmatpush1.msra.mxu0 0.0
        %883 = vmatprep.subr.mxu0 0.0
        %884 = vmatpush1.msra.mxu0 0.0
        %885 = vmatprep.subr.mxu0 0.0
        %886 = vmatpush1.msra.mxu0 0.0
        %887 = vmatprep.subr.mxu0 0.0
        %888 = vmatpush1.msra.mxu0 0.0
        %889 = vmatprep.subr.mxu0 0.0
        %890 = vmatpush1.msra.mxu0 0.0
        %891 = vmatprep.subr.mxu0 0.0
        %892 = vmatpush1.msra.mxu0 0.0
        %893 = vmatprep.subr.mxu0 0.0
        %894 = vmatpush1.msra.mxu0 0.0
        %895 = vmatprep.subr.mxu0 0.0
        %896 = vmatpush1.msra.mxu0 0.0
        %897 = vmatprep.subr.mxu0 0.0
        %898 = vmatpush1.msra.mxu0 0.0
        %899 = vmatprep.subr.mxu0 0.0
        %900 = vmatpush1.msra.mxu0 0.0
        %901 = vmatprep.subr.mxu0 0.0
        %902 = vmatpush1.msra.mxu0 0.0
        %903 = vmatprep.subr.mxu0 0.0
        %904 = vmatpush1.msra.mxu0 0.0
        %905 = vmatprep.subr.mxu0 0.0
        %906 = vmatpush1.msra.mxu0 0.0
        %907 = vmatprep.subr.mxu0 0.0
        %908 = vmatpush1.msra.mxu0 0.0
        %909 = vmatprep.mubr.f32.mxu0 0.0
        %v910 = vand.u32 %v335, 4294901760
        %911 = vmatmul.mubr.f32.gmra.mrb[0].mxu0 %v910
        %v912 = vpop.f32.mrb[0].mxu0
        %v913 = vadd.f32 %v822, %v912
        %v914 = vpop.f32.mrb[0].mxu0
        %915 = vmatprep.mubr.f32.mxu0 0.0
        %v916 = vand.u32 %v338, 4294901760
        %917 = vmatmul.mubr.f32.gmra.mrb[0].mxu0 %v916
        %v918 = vpop.f32.mrb[0].mxu0
        %v919 = vadd.f32 %v828, %v918
        %v920 = vpop.f32.mrb[0].mxu0
        %921 = vmatprep.mubr.f32.mxu0 0.0
        %v922 = vand.u32 %v341, 4294901760
        %923 = vmatmul.mubr.f32.gmra.mrb[0].mxu0 %v922
        %v924 = vpop.f32.mrb[0].mxu0
        %v925 = vadd.f32 %v834, %v924
        %v926 = vpop.f32.mrb[0].mxu0
        %927 = vmatprep.mubr.f32.mxu0 0.0
        %v928 = vand.u32 %v344, 4294901760
        %929 = vmatmul.mubr.f32.gmra.mrb[0].mxu0 %v928
        %v930 = vpop.f32.mrb[0].mxu0
        %v931 = vadd.f32 %v840, %v930
        %v932 = vpop.f32.mrb[0].mxu0
        %933 = vdwg.mxu0
        %v934 = vmul.f32 %v913, %v913
        %v935 = vmul.f32 %v919, %v919
        %v936 = vmul.f32 %v925, %v925
        %v937 = vmul.f32 %v931, %v931
        %v938 = vadd.f32 %v934, %v936
        %v939 = vadd.f32 %v935, %v937
        %v940 = vlaneseq
        %v941 = vshrl.u32 %v940, 7
        %v942 = vadd.s32 %v941, 8
        %v943 = vadd.s32 %v941, 16
        %v944 = vadd.s32 %v941, 24
        %v945 = vadd.s32 %v941, 32
        %v946 = vadd.s32 %v941, 40
        %v947 = vadd.s32 %v941, 48
        %v948 = vadd.s32 %v941, 56
        %v949 = vadd.s32 %v941, 64
        %v950 = vadd.s32 %v941, 72
        %v951 = vadd.s32 %v941, 80
        %v952 = vadd.s32 %v941, 88
        %v953 = vadd.s32 %v941, 96
        %v954 = vadd.s32 %v941, 104
        %v955 = vadd.s32 %v941, 112
        %v956 = vadd.s32 %v941, 120
        %v957 = vlaneseq
        %v958 = vand.u32 %v957, 127
        %v959 = vmul.u32 %v958, 64
        %vm960 = vcmp.ge.s32.totalorder %v941, %v959
        %vm961 = vcmp.ge.s32.totalorder %v942, %v959
        %vm962 = vcmp.ge.s32.totalorder %v943, %v959
        %vm963 = vcmp.ge.s32.totalorder %v944, %v959
        %vm964 = vcmp.ge.s32.totalorder %v945, %v959
        %vm965 = vcmp.ge.s32.totalorder %v946, %v959
        %vm966 = vcmp.ge.s32.totalorder %v947, %v959
        %vm967 = vcmp.ge.s32.totalorder %v948, %v959
        %vm968 = vcmp.ge.s32.totalorder %v949, %v959
        %vm969 = vcmp.ge.s32.totalorder %v950, %v959
        %vm970 = vcmp.ge.s32.totalorder %v951, %v959
        %vm971 = vcmp.ge.s32.totalorder %v952, %v959
        %vm972 = vcmp.ge.s32.totalorder %v953, %v959
        %vm973 = vcmp.ge.s32.totalorder %v954, %v959
        %vm974 = vcmp.ge.s32.totalorder %v955, %v959
        %vm975 = vcmp.ge.s32.totalorder %v956, %v959
        %v976 = vadd.s32 %v959, 64
        %vm977 = vcmp.lt.s32.totalorder %v941, %v976
        %vm978 = vcmp.lt.s32.totalorder %v942, %v976
        %vm979 = vcmp.lt.s32.totalorder %v943, %v976
        %vm980 = vcmp.lt.s32.totalorder %v944, %v976
        %vm981 = vcmp.lt.s32.totalorder %v945, %v976
        %vm982 = vcmp.lt.s32.totalorder %v946, %v976
        %vm983 = vcmp.lt.s32.totalorder %v947, %v976
        %vm984 = vcmp.lt.s32.totalorder %v948, %v976
        %vm985 = vcmp.lt.s32.totalorder %v949, %v976
        %vm986 = vcmp.lt.s32.totalorder %v950, %v976
        %vm987 = vcmp.lt.s32.totalorder %v951, %v976
        %vm988 = vcmp.lt.s32.totalorder %v952, %v976
        %vm989 = vcmp.lt.s32.totalorder %v953, %v976
        %vm990 = vcmp.lt.s32.totalorder %v954, %v976
        %vm991 = vcmp.lt.s32.totalorder %v955, %v976
        %vm992 = vcmp.lt.s32.totalorder %v956, %v976
        %vm993 = vmand %vm960, %vm977
        %vm994 = vmand %vm961, %vm978
        %vm995 = vmand %vm962, %vm979
        %vm996 = vmand %vm963, %vm980
        %vm997 = vmand %vm964, %vm981
        %vm998 = vmand %vm965, %vm982
        %vm999 = vmand %vm966, %vm983
        %vm1000 = vmand %vm967, %vm984
        %vm1001 = vmand %vm968, %vm985
        %vm1002 = vmand %vm969, %vm986
        %vm1003 = vmand %vm970, %vm987
        %vm1004 = vmand %vm971, %vm988
        %vm1005 = vmand %vm972, %vm989
        %vm1006 = vmand %vm973, %vm990
        %vm1007 = vmand %vm974, %vm991
        %vm1008 = vmand %vm975, %vm992
        %v1009 = vsel %vm993, 1, 0
        %v1010 = vsel %vm994, 1, 0
        %v1011 = vsel %vm995, 1, 0
        %v1012 = vsel %vm996, 1, 0
        %v1013 = vsel %vm997, 1, 0
        %v1014 = vsel %vm998, 1, 0
        %v1015 = vsel %vm999, 1, 0
        %v1016 = vsel %vm1000, 1, 0
        %v1017 = vsel %vm1001, 1, 0
        %v1018 = vsel %vm1002, 1, 0
        %v1019 = vsel %vm1003, 1, 0
        %v1020 = vsel %vm1004, 1, 0
        %v1021 = vsel %vm1005, 1, 0
        %v1022 = vsel %vm1006, 1, 0
        %v1023 = vsel %vm1007, 1, 0
        %v1024 = vsel %vm1008, 1, 0
        %v1025 = vcvt.s32.f32 %v1009
        %v1026 = vcvt.s32.f32 %v1010
        %v1027 = vcvt.s32.f32 %v1011
        %v1028 = vcvt.s32.f32 %v1012
        %v1029 = vcvt.s32.f32 %v1013
        %v1030 = vcvt.s32.f32 %v1014
        %v1031 = vcvt.s32.f32 %v1015
        %v1032 = vcvt.s32.f32 %v1016
        %v1033 = vcvt.s32.f32 %v1017
        %v1034 = vcvt.s32.f32 %v1018
        %v1035 = vcvt.s32.f32 %v1019
        %v1036 = vcvt.s32.f32 %v1020
        %v1037 = vcvt.s32.f32 %v1021
        %v1038 = vcvt.s32.f32 %v1022
        %v1039 = vcvt.s32.f32 %v1023
        %v1040 = vcvt.s32.f32 %v1024
        %1041 = vmatprep.subr.mxu0 0.0
        %v1042 = vand.u32 %v1025, 4294901760
        %1043 = vmatpush1.msra.mxu0 %v1042
        %1044 = vmatprep.subr.mxu0 0.0
        %v1045 = vand.u32 %v1026, 4294901760
        %1046 = vmatpush1.msra.mxu0 %v1045
        %1047 = vmatprep.subr.mxu0 0.0
        %v1048 = vand.u32 %v1027, 4294901760
        %1049 = vmatpush1.msra.mxu0 %v1048
        %1050 = vmatprep.subr.mxu0 0.0
        %v1051 = vand.u32 %v1028, 4294901760
        %1052 = vmatpush1.msra.mxu0 %v1051
        %1053 = vmatprep.subr.mxu0 0.0
        %v1054 = vand.u32 %v1029, 4294901760
        %1055 = vmatpush1.msra.mxu0 %v1054
        %1056 = vmatprep.subr.mxu0 0.0
        %v1057 = vand.u32 %v1030, 4294901760
        %1058 = vmatpush1.msra.mxu0 %v1057
        %1059 = vmatprep.subr.mxu0 0.0
        %v1060 = vand.u32 %v1031, 4294901760
        %1061 = vmatpush1.msra.mxu0 %v1060
        %1062 = vmatprep.subr.mxu0 0.0
        %v1063 = vand.u32 %v1032, 4294901760
        %1064 = vmatpush1.msra.mxu0 %v1063
        %1065 = vmatprep.subr.mxu0 0.0
        %v1066 = vand.u32 %v1033, 4294901760
        %1067 = vmatpush1.msra.mxu0 %v1066
        %1068 = vmatprep.subr.mxu0 0.0
        %v1069 = vand.u32 %v1034, 4294901760
        %1070 = vmatpush1.msra.mxu0 %v1069
        %1071 = vmatprep.subr.mxu0 0.0
        %v1072 = vand.u32 %v1035, 4294901760
        %1073 = vmatpush1.msra.mxu0 %v1072
        %1074 = vmatprep.subr.mxu0 0.0
        %v1075 = vand.u32 %v1036, 4294901760
        %1076 = vmatpush1.msra.mxu0 %v1075
        %1077 = vmatprep.subr.mxu0 0.0
        %v1078 = vand.u32 %v1037, 4294901760
        %1079 = vmatpush1.msra.mxu0 %v1078
        %1080 = vmatprep.subr.mxu0 0.0
        %v1081 = vand.u32 %v1038, 4294901760
        %1082 = vmatpush1.msra.mxu0 %v1081
        %1083 = vmatprep.subr.mxu0 0.0
        %v1084 = vand.u32 %v1039, 4294901760
        %1085 = vmatpush1.msra.mxu0 %v1084
        %1086 = vmatprep.subr.mxu0 0.0
        %v1087 = vand.u32 %v1040, 4294901760
        %1088 = vmatpush1.msra.mxu0 %v1087
        %1089 = vmatprep.subr.mxu0 0.0
        %1090 = vmatpush1.msra.mxu0 0.0
        %1091 = vmatprep.subr.mxu0 0.0
        %1092 = vmatpush1.msra.mxu0 0.0
        %1093 = vmatprep.subr.mxu0 0.0
        %1094 = vmatpush1.msra.mxu0 0.0
        %1095 = vmatprep.subr.mxu0 0.0
        %1096 = vmatpush1.msra.mxu0 0.0
        %1097 = vmatprep.subr.mxu0 0.0
        %1098 = vmatpush1.msra.mxu0 0.0
        %1099 = vmatprep.subr.mxu0 0.0
        %1100 = vmatpush1.msra.mxu0 0.0
        %1101 = vmatprep.subr.mxu0 0.0
        %1102 = vmatpush1.msra.mxu0 0.0
        %1103 = vmatprep.subr.mxu0 0.0
        %1104 = vmatpush1.msra.mxu0 0.0
        %1105 = vmatprep.subr.mxu0 0.0
        %1106 = vmatpush1.msra.mxu0 0.0
        %1107 = vmatprep.subr.mxu0 0.0
        %1108 = vmatpush1.msra.mxu0 0.0
        %1109 = vmatprep.subr.mxu0 0.0
        %1110 = vmatpush1.msra.mxu0 0.0
        %1111 = vmatprep.subr.mxu0 0.0
        %1112 = vmatpush1.msra.mxu0 0.0
        %1113 = vmatprep.subr.mxu0 0.0
        %1114 = vmatpush1.msra.mxu0 0.0
        %1115 = vmatprep.subr.mxu0 0.0
        %1116 = vmatpush1.msra.mxu0 0.0
        %1117 = vmatprep.subr.mxu0 0.0
        %1118 = vmatpush1.msra.mxu0 0.0
        %1119 = vmatprep.subr.mxu0 0.0
        %1120 = vmatpush1.msra.mxu0 0.0
        %1121 = vmatprep.mubr.f32.mxu0 0.0
        %v1122 = vand.u32 %v938, 4294901760
        %v1123 = vsub.f32 %v938, %v1122
        %v1124 = vand.u32 %v1123, 4294901760
        %v1125 = vsub.f32 %v1123, %v1124
        %v1126 = vand.u32 %v1125, 4294901760
        %1127 = vmatmul.mubr.f32.gmra.mrb[0].mxu0 %v1126
        %v1128 = vpop.f32.mrb[0].mxu0
        %v1129 = vadd.f32 0.0, %v1128
        %v1130 = vpop.f32.mrb[0].mxu0
        %1131 = vmatprep.mubr.f32.mxu0 0.0
        %v1132 = vand.u32 %v939, 4294901760
        %v1133 = vsub.f32 %v939, %v1132
        %v1134 = vand.u32 %v1133, 4294901760
        %v1135 = vsub.f32 %v1133, %v1134
        %v1136 = vand.u32 %v1135, 4294901760
        %1137 = vmatmul.mubr.f32.gmra.mrb[0].mxu0 %v1136
        %v1138 = vpop.f32.mrb[0].mxu0
        %v1139 = vadd.f32 0.0, %v1138
        %v1140 = vpop.f32.mrb[0].mxu0
        %1141 = vdwg.mxu0
        %1142 = vmatprep.subr.mxu0 0.0
        %v1143 = vand.u32 %v1025, 4294901760
        %v1144 = vsub.f32 %v1025, %v1143
        %v1145 = vand.u32 %v1144, 4294901760
        %v1146 = vsub.f32 %v1144, %v1145
        %v1147 = vand.u32 %v1146, 4294901760
        %1148 = vmatpush1.msra.mxu0 %v1147
        %1149 = vmatprep.subr.mxu0 0.0
        %v1150 = vand.u32 %v1026, 4294901760
        %v1151 = vsub.f32 %v1026, %v1150
        %v1152 = vand.u32 %v1151, 4294901760
        %v1153 = vsub.f32 %v1151, %v1152
        %v1154 = vand.u32 %v1153, 4294901760
        %1155 = vmatpush1.msra.mxu0 %v1154
        %1156 = vmatprep.subr.mxu0 0.0
        %v1157 = vand.u32 %v1027, 4294901760
        %v1158 = vsub.f32 %v1027, %v1157
        %v1159 = vand.u32 %v1158, 4294901760
        %v1160 = vsub.f32 %v1158, %v1159
        %v1161 = vand.u32 %v1160, 4294901760
        %1162 = vmatpush1.msra.mxu0 %v1161
        %1163 = vmatprep.subr.mxu0 0.0
        %v1164 = vand.u32 %v1028, 4294901760
        %v1165 = vsub.f32 %v1028, %v1164
        %v1166 = vand.u32 %v1165, 4294901760
        %v1167 = vsub.f32 %v1165, %v1166
        %v1168 = vand.u32 %v1167, 4294901760
        %1169 = vmatpush1.msra.mxu0 %v1168
        %1170 = vmatprep.subr.mxu0 0.0
        %v1171 = vand.u32 %v1029, 4294901760
        %v1172 = vsub.f32 %v1029, %v1171
        %v1173 = vand.u32 %v1172, 4294901760
        %v1174 = vsub.f32 %v1172, %v1173
        %v1175 = vand.u32 %v1174, 4294901760
        %1176 = vmatpush1.msra.mxu0 %v1175
        %1177 = vmatprep.subr.mxu0 0.0
        %v1178 = vand.u32 %v1030, 4294901760
        %v1179 = vsub.f32 %v1030, %v1178
        %v1180 = vand.u32 %v1179, 4294901760
        %v1181 = vsub.f32 %v1179, %v1180
        %v1182 = vand.u32 %v1181, 4294901760
        %1183 = vmatpush1.msra.mxu0 %v1182
        %1184 = vmatprep.subr.mxu0 0.0
        %v1185 = vand.u32 %v1031, 4294901760
        %v1186 = vsub.f32 %v1031, %v1185
        %v1187 = vand.u32 %v1186, 4294901760
        %v1188 = vsub.f32 %v1186, %v1187
        %v1189 = vand.u32 %v1188, 4294901760
        %1190 = vmatpush1.msra.mxu0 %v1189
        %1191 = vmatprep.subr.mxu0 0.0
        %v1192 = vand.u32 %v1032, 4294901760
        %v1193 = vsub.f32 %v1032, %v1192
        %v1194 = vand.u32 %v1193, 4294901760
        %v1195 = vsub.f32 %v1193, %v1194
        %v1196 = vand.u32 %v1195, 4294901760
        %1197 = vmatpush1.msra.mxu0 %v1196
        %1198 = vmatprep.subr.mxu0 0.0
        %v1199 = vand.u32 %v1033, 4294901760
        %v1200 = vsub.f32 %v1033, %v1199
        %v1201 = vand.u32 %v1200, 4294901760
        %v1202 = vsub.f32 %v1200, %v1201
        %v1203 = vand.u32 %v1202, 4294901760
        %1204 = vmatpush1.msra.mxu0 %v1203
        %1205 = vmatprep.subr.mxu0 0.0
        %v1206 = vand.u32 %v1034, 4294901760
        %v1207 = vsub.f32 %v1034, %v1206
        %v1208 = vand.u32 %v1207, 4294901760
        %v1209 = vsub.f32 %v1207, %v1208
        %v1210 = vand.u32 %v1209, 4294901760
        %1211 = vmatpush1.msra.mxu0 %v1210
        %1212 = vmatprep.subr.mxu0 0.0
        %v1213 = vand.u32 %v1035, 4294901760
        %v1214 = vsub.f32 %v1035, %v1213
        %v1215 = vand.u32 %v1214, 4294901760
        %v1216 = vsub.f32 %v1214, %v1215
        %v1217 = vand.u32 %v1216, 4294901760
        %1218 = vmatpush1.msra.mxu0 %v1217
        %1219 = vmatprep.subr.mxu0 0.0
        %v1220 = vand.u32 %v1036, 4294901760
        %v1221 = vsub.f32 %v1036, %v1220
        %v1222 = vand.u32 %v1221, 4294901760
        %v1223 = vsub.f32 %v1221, %v1222
        %v1224 = vand.u32 %v1223, 4294901760
        %1225 = vmatpush1.msra.mxu0 %v1224
        %1226 = vmatprep.subr.mxu0 0.0
        %v1227 = vand.u32 %v1037, 4294901760
        %v1228 = vsub.f32 %v1037, %v1227
        %v1229 = vand.u32 %v1228, 4294901760
        %v1230 = vsub.f32 %v1228, %v1229
        %v1231 = vand.u32 %v1230, 4294901760
        %1232 = vmatpush1.msra.mxu0 %v1231
        %1233 = vmatprep.subr.mxu0 0.0
        %v1234 = vand.u32 %v1038, 4294901760
        %v1235 = vsub.f32 %v1038, %v1234
        %v1236 = vand.u32 %v1235, 4294901760
        %v1237 = vsub.f32 %v1235, %v1236
        %v1238 = vand.u32 %v1237, 4294901760
        %1239 = vmatpush1.msra.mxu0 %v1238
        %1240 = vmatprep.subr.mxu0 0.0
        %v1241 = vand.u32 %v1039, 4294901760
        %v1242 = vsub.f32 %v1039, %v1241
        %v1243 = vand.u32 %v1242, 4294901760
        %v1244 = vsub.f32 %v1242, %v1243
        %v1245 = vand.u32 %v1244, 4294901760
        %1246 = vmatpush1.msra.mxu0 %v1245
        %1247 = vmatprep.subr.mxu0 0.0
        %v1248 = vand.u32 %v1040, 4294901760
        %v1249 = vsub.f32 %v1040, %v1248
        %v1250 = vand.u32 %v1249, 4294901760
        %v1251 = vsub.f32 %v1249, %v1250
        %v1252 = vand.u32 %v1251, 4294901760
        %1253 = vmatpush1.msra.mxu0 %v1252
        %1254 = vmatprep.subr.mxu0 0.0
        %1255 = vmatpush1.msra.mxu0 0.0
        %1256 = vmatprep.subr.mxu0 0.0
        %1257 = vmatpush1.msra.mxu0 0.0
        %1258 = vmatprep.subr.mxu0 0.0
        %1259 = vmatpush1.msra.mxu0 0.0
        %1260 = vmatprep.subr.mxu0 0.0
        %1261 = vmatpush1.msra.mxu0 0.0
        %1262 = vmatprep.subr.mxu0 0.0
        %1263 = vmatpush1.msra.mxu0 0.0
        %1264 = vmatprep.subr.mxu0 0.0
        %1265 = vmatpush1.msra.mxu0 0.0
        %1266 = vmatprep.subr.mxu0 0.0
        %1267 = vmatpush1.msra.mxu0 0.0
        %1268 = vmatprep.subr.mxu0 0.0
        %1269 = vmatpush1.msra.mxu0 0.0
        %1270 = vmatprep.subr.mxu0 0.0
        %1271 = vmatpush1.msra.mxu0 0.0
        %1272 = vmatprep.subr.mxu0 0.0
        %1273 = vmatpush1.msra.mxu0 0.0
        %1274 = vmatprep.subr.mxu0 0.0
        %1275 = vmatpush1.msra.mxu0 0.0
        %1276 = vmatprep.subr.mxu0 0.0
        %1277 = vmatpush1.msra.mxu0 0.0
        %1278 = vmatprep.subr.mxu0 0.0
        %1279 = vmatpush1.msra.mxu0 0.0
        %1280 = vmatprep.subr.mxu0 0.0
        %1281 = vmatpush1.msra.mxu0 0.0
        %1282 = vmatprep.subr.mxu0 0.0
        %1283 = vmatpush1.msra.mxu0 0.0
        %1284 = vmatprep.subr.mxu0 0.0
        %1285 = vmatpush1.msra.mxu0 0.0
        %1286 = vmatprep.mubr.f32.mxu0 0.0
        %v1287 = vand.u32 %v938, 4294901760
        %1288 = vmatmul.mubr.f32.gmra.mrb[0].mxu0 %v1287
        %v1289 = vpop.f32.mrb[0].mxu0
        %v1290 = vadd.f32 %v1129, %v1289
        %v1291 = vpop.f32.mrb[0].mxu0
        %1292 = vmatprep.mubr.f32.mxu0 0.0
        %v1293 = vand.u32 %v939, 4294901760
        %1294 = vmatmul.mubr.f32.gmra.mrb[0].mxu0 %v1293
        %v1295 = vpop.f32.mrb[0].mxu0
        %v1296 = vadd.f32 %v1139, %v1295
        %v1297 = vpop.f32.mrb[0].mxu0
        %1298 = vdwg.mxu0
        %1299 = vmatprep.subr.mxu0 0.0
        %v1300 = vand.u32 %v1025, 4294901760
        %v1301 = vsub.f32 %v1025, %v1300
        %1302 = vmatpush1.msra.mxu0 %v1301
        %1303 = vmatprep.subr.mxu0 0.0
        %v1304 = vand.u32 %v1026, 4294901760
        %v1305 = vsub.f32 %v1026, %v1304
        %1306 = vmatpush1.msra.mxu0 %v1305
        %1307 = vmatprep.subr.mxu0 0.0
        %v1308 = vand.u32 %v1027, 4294901760
        %v1309 = vsub.f32 %v1027, %v1308
        %1310 = vmatpush1.msra.mxu0 %v1309
        %1311 = vmatprep.subr.mxu0 0.0
        %v1312 = vand.u32 %v1028, 4294901760
        %v1313 = vsub.f32 %v1028, %v1312
        %1314 = vmatpush1.msra.mxu0 %v1313
        %1315 = vmatprep.subr.mxu0 0.0
        %v1316 = vand.u32 %v1029, 4294901760
        %v1317 = vsub.f32 %v1029, %v1316
        %1318 = vmatpush1.msra.mxu0 %v1317
        %1319 = vmatprep.subr.mxu0 0.0
        %v1320 = vand.u32 %v1030, 4294901760
        %v1321 = vsub.f32 %v1030, %v1320
        %1322 = vmatpush1.msra.mxu0 %v1321
        %1323 = vmatprep.subr.mxu0 0.0
        %v1324 = vand.u32 %v1031, 4294901760
        %v1325 = vsub.f32 %v1031, %v1324
        %1326 = vmatpush1.msra.mxu0 %v1325
        %1327 = vmatprep.subr.mxu0 0.0
        %v1328 = vand.u32 %v1032, 4294901760
        %v1329 = vsub.f32 %v1032, %v1328
        %1330 = vmatpush1.msra.mxu0 %v1329
        %1331 = vmatprep.subr.mxu0 0.0
        %v1332 = vand.u32 %v1033, 4294901760
        %v1333 = vsub.f32 %v1033, %v1332
        %1334 = vmatpush1.msra.mxu0 %v1333
        %1335 = vmatprep.subr.mxu0 0.0
        %v1336 = vand.u32 %v1034, 4294901760
        %v1337 = vsub.f32 %v1034, %v1336
        %1338 = vmatpush1.msra.mxu0 %v1337
        %1339 = vmatprep.subr.mxu0 0.0
        %v1340 = vand.u32 %v1035, 4294901760
        %v1341 = vsub.f32 %v1035, %v1340
        %1342 = vmatpush1.msra.mxu0 %v1341
        %1343 = vmatprep.subr.mxu0 0.0
        %v1344 = vand.u32 %v1036, 4294901760
        %v1345 = vsub.f32 %v1036, %v1344
        %1346 = vmatpush1.msra.mxu0 %v1345
        %1347 = vmatprep.subr.mxu0 0.0
        %v1348 = vand.u32 %v1037, 4294901760
        %v1349 = vsub.f32 %v1037, %v1348
        %1350 = vmatpush1.msra.mxu0 %v1349
        %1351 = vmatprep.subr.mxu0 0.0
        %v1352 = vand.u32 %v1038, 4294901760
        %v1353 = vsub.f32 %v1038, %v1352
        %1354 = vmatpush1.msra.mxu0 %v1353
        %1355 = vmatprep.subr.mxu0 0.0
        %v1356 = vand.u32 %v1039, 4294901760
        %v1357 = vsub.f32 %v1039, %v1356
        %1358 = vmatpush1.msra.mxu0 %v1357
        %1359 = vmatprep.subr.mxu0 0.0
        %v1360 = vand.u32 %v1040, 4294901760
        %v1361 = vsub.f32 %v1040, %v1360
        %1362 = vmatpush1.msra.mxu0 %v1361
        %1363 = vmatprep.subr.mxu0 0.0
        %1364 = vmatpush1.msra.mxu0 0.0
        %1365 = vmatprep.subr.mxu0 0.0
        %1366 = vmatpush1.msra.mxu0 0.0
        %1367 = vmatprep.subr.mxu0 0.0
        %1368 = vmatpush1.msra.mxu0 0.0
        %1369 = vmatprep.subr.mxu0 0.0
        %1370 = vmatpush1.msra.mxu0 0.0
        %1371 = vmatprep.subr.mxu0 0.0
        %1372 = vmatpush1.msra.mxu0 0.0
        %1373 = vmatprep.subr.mxu0 0.0
        %1374 = vmatpush1.msra.mxu0 0.0
        %1375 = vmatprep.subr.mxu0 0.0
        %1376 = vmatpush1.msra.mxu0 0.0
        %1377 = vmatprep.subr.mxu0 0.0
        %1378 = vmatpush1.msra.mxu0 0.0
        %1379 = vmatprep.subr.mxu0 0.0
        %1380 = vmatpush1.msra.mxu0 0.0
        %1381 = vmatprep.subr.mxu0 0.0
        %1382 = vmatpush1.msra.mxu0 0.0
        %1383 = vmatprep.subr.mxu0 0.0
        %1384 = vmatpush1.msra.mxu0 0.0
        %1385 = vmatprep.subr.mxu0 0.0
        %1386 = vmatpush1.msra.mxu0 0.0
        %1387 = vmatprep.subr.mxu0 0.0
        %1388 = vmatpush1.msra.mxu0 0.0
        %1389 = vmatprep.subr.mxu0 0.0
        %1390 = vmatpush1.msra.mxu0 0.0
        %1391 = vmatprep.subr.mxu0 0.0
        %1392 = vmatpush1.msra.mxu0 0.0
        %1393 = vmatprep.subr.mxu0 0.0
        %1394 = vmatpush1.msra.mxu0 0.0
        %1395 = vmatprep.mubr.f32.mxu0 0.0
        %v1396 = vand.u32 %v938, 4294901760
        %v1397 = vsub.f32 %v938, %v1396
        %1398 = vmatmul.mubr.f32.gmra.mrb[0].mxu0 %v1397
        %v1399 = vpop.f32.mrb[0].mxu0
        %v1400 = vadd.f32 %v1290, %v1399
        %v1401 = vpop.f32.mrb[0].mxu0
        %1402 = vmatprep.mubr.f32.mxu0 0.0
        %v1403 = vand.u32 %v939, 4294901760
        %v1404 = vsub.f32 %v939, %v1403
        %1405 = vmatmul.mubr.f32.gmra.mrb[0].mxu0 %v1404
        %v1406 = vpop.f32.mrb[0].mxu0
        %v1407 = vadd.f32 %v1296, %v1406
        %v1408 = vpop.f32.mrb[0].mxu0
        %1409 = vdwg.mxu0
        %1410 = vmatprep.subr.mxu0 0.0
        %v1411 = vand.u32 %v1025, 4294901760
        %1412 = vmatpush1.msra.mxu0 %v1411
        %1413 = vmatprep.subr.mxu0 0.0
        %v1414 = vand.u32 %v1026, 4294901760
        %1415 = vmatpush1.msra.mxu0 %v1414
        %1416 = vmatprep.subr.mxu0 0.0
        %v1417 = vand.u32 %v1027, 4294901760
        %1418 = vmatpush1.msra.mxu0 %v1417
        %1419 = vmatprep.subr.mxu0 0.0
        %v1420 = vand.u32 %v1028, 4294901760
        %1421 = vmatpush1.msra.mxu0 %v1420
        %1422 = vmatprep.subr.mxu0 0.0
        %v1423 = vand.u32 %v1029, 4294901760
        %1424 = vmatpush1.msra.mxu0 %v1423
        %1425 = vmatprep.subr.mxu0 0.0
        %v1426 = vand.u32 %v1030, 4294901760
        %1427 = vmatpush1.msra.mxu0 %v1426
        %1428 = vmatprep.subr.mxu0 0.0
        %v1429 = vand.u32 %v1031, 4294901760
        %1430 = vmatpush1.msra.mxu0 %v1429
        %1431 = vmatprep.subr.mxu0 0.0
        %v1432 = vand.u32 %v1032, 4294901760
        %1433 = vmatpush1.msra.mxu0 %v1432
        %1434 = vmatprep.subr.mxu0 0.0
        %v1435 = vand.u32 %v1033, 4294901760
        %1436 = vmatpush1.msra.mxu0 %v1435
        %1437 = vmatprep.subr.mxu0 0.0
        %v1438 = vand.u32 %v1034, 4294901760
        %1439 = vmatpush1.msra.mxu0 %v1438
        %1440 = vmatprep.subr.mxu0 0.0
        %v1441 = vand.u32 %v1035, 4294901760
        %1442 = vmatpush1.msra.mxu0 %v1441
        %1443 = vmatprep.subr.mxu0 0.0
        %v1444 = vand.u32 %v1036, 4294901760
        %1445 = vmatpush1.msra.mxu0 %v1444
        %1446 = vmatprep.subr.mxu0 0.0
        %v1447 = vand.u32 %v1037, 4294901760
        %1448 = vmatpush1.msra.mxu0 %v1447
        %1449 = vmatprep.subr.mxu0 0.0
        %v1450 = vand.u32 %v1038, 4294901760
        %1451 = vmatpush1.msra.mxu0 %v1450
        %1452 = vmatprep.subr.mxu0 0.0
        %v1453 = vand.u32 %v1039, 4294901760
        %1454 = vmatpush1.msra.mxu0 %v1453
        %1455 = vmatprep.subr.mxu0 0.0
        %v1456 = vand.u32 %v1040, 4294901760
        %1457 = vmatpush1.msra.mxu0 %v1456
        %1458 = vmatprep.subr.mxu0 0.0
        %1459 = vmatpush1.msra.mxu0 0.0
        %1460 = vmatprep.subr.mxu0 0.0
        %1461 = vmatpush1.msra.mxu0 0.0
        %1462 = vmatprep.subr.mxu0 0.0
        %1463 = vmatpush1.msra.mxu0 0.0
        %1464 = vmatprep.subr.mxu0 0.0
        %1465 = vmatpush1.msra.mxu0 0.0
        %1466 = vmatprep.subr.mxu0 0.0
        %1467 = vmatpush1.msra.mxu0 0.0
        %1468 = vmatprep.subr.mxu0 0.0
        %1469 = vmatpush1.msra.mxu0 0.0
        %1470 = vmatprep.subr.mxu0 0.0
        %1471 = vmatpush1.msra.mxu0 0.0
        %1472 = vmatprep.subr.mxu0 0.0
        %1473 = vmatpush1.msra.mxu0 0.0
        %1474 = vmatprep.subr.mxu0 0.0
        %1475 = vmatpush1.msra.mxu0 0.0
        %1476 = vmatprep.subr.mxu0 0.0
        %1477 = vmatpush1.msra.mxu0 0.0
        %1478 = vmatprep.subr.mxu0 0.0
        %1479 = vmatpush1.msra.mxu0 0.0
        %1480 = vmatprep.subr.mxu0 0.0
        %1481 = vmatpush1.msra.mxu0 0.0
        %1482 = vmatprep.subr.mxu0 0.0
        %1483 = vmatpush1.msra.mxu0 0.0
        %1484 = vmatprep.subr.mxu0 0.0
        %1485 = vmatpush1.msra.mxu0 0.0
        %1486 = vmatprep.subr.mxu0 0.0
        %1487 = vmatpush1.msra.mxu0 0.0
        %1488 = vmatprep.subr.mxu0 0.0
        %1489 = vmatpush1.msra.mxu0 0.0
        %1490 = vmatprep.mubr.f32.mxu0 0.0
        %v1491 = vand.u32 %v938, 4294901760
        %v1492 = vsub.f32 %v938, %v1491
        %v1493 = vand.u32 %v1492, 4294901760
        %1494 = vmatmul.mubr.f32.gmra.mrb[0].mxu0 %v1493
        %v1495 = vpop.f32.mrb[0].mxu0
        %v1496 = vadd.f32 %v1400, %v1495
        %v1497 = vpop.f32.mrb[0].mxu0
        %1498 = vmatprep.mubr.f32.mxu0 0.0
        %v1499 = vand.u32 %v939, 4294901760
        %v1500 = vsub.f32 %v939, %v1499
        %v1501 = vand.u32 %v1500, 4294901760
        %1502 = vmatmul.mubr.f32.gmra.mrb[0].mxu0 %v1501
        %v1503 = vpop.f32.mrb[0].mxu0
        %v1504 = vadd.f32 %v1407, %v1503
        %v1505 = vpop.f32.mrb[0].mxu0
        %1506 = vdwg.mxu0
        %1507 = vmatprep.subr.mxu0 0.0
        %v1508 = vand.u32 %v1025, 4294901760
        %v1509 = vsub.f32 %v1025, %v1508
        %v1510 = vand.u32 %v1509, 4294901760
        %1511 = vmatpush1.msra.mxu0 %v1510
        %1512 = vmatprep.subr.mxu0 0.0
        %v1513 = vand.u32 %v1026, 4294901760
        %v1514 = vsub.f32 %v1026, %v1513
        %v1515 = vand.u32 %v1514, 4294901760
        %1516 = vmatpush1.msra.mxu0 %v1515
        %1517 = vmatprep.subr.mxu0 0.0
        %v1518 = vand.u32 %v1027, 4294901760
        %v1519 = vsub.f32 %v1027, %v1518
        %v1520 = vand.u32 %v1519, 4294901760
        %1521 = vmatpush1.msra.mxu0 %v1520
        %1522 = vmatprep.subr.mxu0 0.0
        %v1523 = vand.u32 %v1028, 4294901760
        %v1524 = vsub.f32 %v1028, %v1523
        %v1525 = vand.u32 %v1524, 4294901760
        %1526 = vmatpush1.msra.mxu0 %v1525
        %1527 = vmatprep.subr.mxu0 0.0
        %v1528 = vand.u32 %v1029, 4294901760
        %v1529 = vsub.f32 %v1029, %v1528
        %v1530 = vand.u32 %v1529, 4294901760
        %1531 = vmatpush1.msra.mxu0 %v1530
        %1532 = vmatprep.subr.mxu0 0.0
        %v1533 = vand.u32 %v1030, 4294901760
        %v1534 = vsub.f32 %v1030, %v1533
        %v1535 = vand.u32 %v1534, 4294901760
        %1536 = vmatpush1.msra.mxu0 %v1535
        %1537 = vmatprep.subr.mxu0 0.0
        %v1538 = vand.u32 %v1031, 4294901760
        %v1539 = vsub.f32 %v1031, %v1538
        %v1540 = vand.u32 %v1539, 4294901760
        %1541 = vmatpush1.msra.mxu0 %v1540
        %1542 = vmatprep.subr.mxu0 0.0
        %v1543 = vand.u32 %v1032, 4294901760
        %v1544 = vsub.f32 %v1032, %v1543
        %v1545 = vand.u32 %v1544, 4294901760
        %1546 = vmatpush1.msra.mxu0 %v1545
        %1547 = vmatprep.subr.mxu0 0.0
        %v1548 = vand.u32 %v1033, 4294901760
        %v1549 = vsub.f32 %v1033, %v1548
        %v1550 = vand.u32 %v1549, 4294901760
        %1551 = vmatpush1.msra.mxu0 %v1550
        %1552 = vmatprep.subr.mxu0 0.0
        %v1553 = vand.u32 %v1034, 4294901760
        %v1554 = vsub.f32 %v1034, %v1553
        %v1555 = vand.u32 %v1554, 4294901760
        %1556 = vmatpush1.msra.mxu0 %v1555
        %1557 = vmatprep.subr.mxu0 0.0
        %v1558 = vand.u32 %v1035, 4294901760
        %v1559 = vsub.f32 %v1035, %v1558
        %v1560 = vand.u32 %v1559, 4294901760
        %1561 = vmatpush1.msra.mxu0 %v1560
        %1562 = vmatprep.subr.mxu0 0.0
        %v1563 = vand.u32 %v1036, 4294901760
        %v1564 = vsub.f32 %v1036, %v1563
        %v1565 = vand.u32 %v1564, 4294901760
        %1566 = vmatpush1.msra.mxu0 %v1565
        %1567 = vmatprep.subr.mxu0 0.0
        %v1568 = vand.u32 %v1037, 4294901760
        %v1569 = vsub.f32 %v1037, %v1568
        %v1570 = vand.u32 %v1569, 4294901760
        %1571 = vmatpush1.msra.mxu0 %v1570
        %1572 = vmatprep.subr.mxu0 0.0
        %v1573 = vand.u32 %v1038, 4294901760
        %v1574 = vsub.f32 %v1038, %v1573
        %v1575 = vand.u32 %v1574, 4294901760
        %1576 = vmatpush1.msra.mxu0 %v1575
        %1577 = vmatprep.subr.mxu0 0.0
        %v1578 = vand.u32 %v1039, 4294901760
        %v1579 = vsub.f32 %v1039, %v1578
        %v1580 = vand.u32 %v1579, 4294901760
        %1581 = vmatpush1.msra.mxu0 %v1580
        %1582 = vmatprep.subr.mxu0 0.0
        %v1583 = vand.u32 %v1040, 4294901760
        %v1584 = vsub.f32 %v1040, %v1583
        %v1585 = vand.u32 %v1584, 4294901760
        %1586 = vmatpush1.msra.mxu0 %v1585
        %1587 = vmatprep.subr.mxu0 0.0
        %1588 = vmatpush1.msra.mxu0 0.0
        %1589 = vmatprep.subr.mxu0 0.0
        %1590 = vmatpush1.msra.mxu0 0.0
        %1591 = vmatprep.subr.mxu0 0.0
        %1592 = vmatpush1.msra.mxu0 0.0
        %1593 = vmatprep.subr.mxu0 0.0
        %1594 = vmatpush1.msra.mxu0 0.0
        %1595 = vmatprep.subr.mxu0 0.0
        %1596 = vmatpush1.msra.mxu0 0.0
        %1597 = vmatprep.subr.mxu0 0.0
        %1598 = vmatpush1.msra.mxu0 0.0
        %1599 = vmatprep.subr.mxu0 0.0
        %1600 = vmatpush1.msra.mxu0 0.0
        %1601 = vmatprep.subr.mxu0 0.0
        %1602 = vmatpush1.msra.mxu0 0.0
        %1603 = vmatprep.subr.mxu0 0.0
        %1604 = vmatpush1.msra.mxu0 0.0
        %1605 = vmatprep.subr.mxu0 0.0
        %1606 = vmatpush1.msra.mxu0 0.0
        %1607 = vmatprep.subr.mxu0 0.0
        %1608 = vmatpush1.msra.mxu0 0.0
        %1609 = vmatprep.subr.mxu0 0.0
        %1610 = vmatpush1.msra.mxu0 0.0
        %1611 = vmatprep.subr.mxu0 0.0
        %1612 = vmatpush1.msra.mxu0 0.0
        %1613 = vmatprep.subr.mxu0 0.0
        %1614 = vmatpush1.msra.mxu0 0.0
        %1615 = vmatprep.subr.mxu0 0.0
        %1616 = vmatpush1.msra.mxu0 0.0
        %1617 = vmatprep.subr.mxu0 0.0
        %1618 = vmatpush1.msra.mxu0 0.0
        %1619 = vmatprep.mubr.f32.mxu0 0.0
        %v1620 = vand.u32 %v938, 4294901760
        %1621 = vmatmul.mubr.f32.gmra.mrb[0].mxu0 %v1620
        %v1622 = vpop.f32.mrb[0].mxu0
        %v1623 = vadd.f32 %v1496, %v1622
        %v1624 = vpop.f32.mrb[0].mxu0
        %1625 = vmatprep.mubr.f32.mxu0 0.0
        %v1626 = vand.u32 %v939, 4294901760
        %1627 = vmatmul.mubr.f32.gmra.mrb[0].mxu0 %v1626
        %v1628 = vpop.f32.mrb[0].mxu0
        %v1629 = vadd.f32 %v1504, %v1628
        %v1630 = vpop.f32.mrb[0].mxu0
        %1631 = vdwg.mxu0
        %1632 = vmatprep.subr.mxu0 0.0
        %v1633 = vand.u32 %v1025, 4294901760
        %1634 = vmatpush1.msra.mxu0 %v1633
        %1635 = vmatprep.subr.mxu0 0.0
        %v1636 = vand.u32 %v1026, 4294901760
        %1637 = vmatpush1.msra.mxu0 %v1636
        %1638 = vmatprep.subr.mxu0 0.0
        %v1639 = vand.u32 %v1027, 4294901760
        %1640 = vmatpush1.msra.mxu0 %v1639
        %1641 = vmatprep.subr.mxu0 0.0
        %v1642 = vand.u32 %v1028, 4294901760
        %1643 = vmatpush1.msra.mxu0 %v1642
        %1644 = vmatprep.subr.mxu0 0.0
        %v1645 = vand.u32 %v1029, 4294901760
        %1646 = vmatpush1.msra.mxu0 %v1645
        %1647 = vmatprep.subr.mxu0 0.0
        %v1648 = vand.u32 %v1030, 4294901760
        %1649 = vmatpush1.msra.mxu0 %v1648
        %1650 = vmatprep.subr.mxu0 0.0
        %v1651 = vand.u32 %v1031, 4294901760
        %1652 = vmatpush1.msra.mxu0 %v1651
        %1653 = vmatprep.subr.mxu0 0.0
        %v1654 = vand.u32 %v1032, 4294901760
        %1655 = vmatpush1.msra.mxu0 %v1654
        %1656 = vmatprep.subr.mxu0 0.0
        %v1657 = vand.u32 %v1033, 4294901760
        %1658 = vmatpush1.msra.mxu0 %v1657
        %1659 = vmatprep.subr.mxu0 0.0
        %v1660 = vand.u32 %v1034, 4294901760
        %1661 = vmatpush1.msra.mxu0 %v1660
        %1662 = vmatprep.subr.mxu0 0.0
        %v1663 = vand.u32 %v1035, 4294901760
        %1664 = vmatpush1.msra.mxu0 %v1663
        %1665 = vmatprep.subr.mxu0 0.0
        %v1666 = vand.u32 %v1036, 4294901760
        %1667 = vmatpush1.msra.mxu0 %v1666
        %1668 = vmatprep.subr.mxu0 0.0
        %v1669 = vand.u32 %v1037, 4294901760
        %1670 = vmatpush1.msra.mxu0 %v1669
        %1671 = vmatprep.subr.mxu0 0.0
        %v1672 = vand.u32 %v1038, 4294901760
        %1673 = vmatpush1.msra.mxu0 %v1672
        %1674 = vmatprep.subr.mxu0 0.0
        %v1675 = vand.u32 %v1039, 4294901760
        %1676 = vmatpush1.msra.mxu0 %v1675
        %1677 = vmatprep.subr.mxu0 0.0
        %v1678 = vand.u32 %v1040, 4294901760
        %1679 = vmatpush1.msra.mxu0 %v1678
        %1680 = vmatprep.subr.mxu0 0.0
        %1681 = vmatpush1.msra.mxu0 0.0
        %1682 = vmatprep.subr.mxu0 0.0
        %1683 = vmatpush1.msra.mxu0 0.0
        %1684 = vmatprep.subr.mxu0 0.0
        %1685 = vmatpush1.msra.mxu0 0.0
        %1686 = vmatprep.subr.mxu0 0.0
        %1687 = vmatpush1.msra.mxu0 0.0
        %1688 = vmatprep.subr.mxu0 0.0
        %1689 = vmatpush1.msra.mxu0 0.0
        %1690 = vmatprep.subr.mxu0 0.0
        %1691 = vmatpush1.msra.mxu0 0.0
        %1692 = vmatprep.subr.mxu0 0.0
        %1693 = vmatpush1.msra.mxu0 0.0
        %1694 = vmatprep.subr.mxu0 0.0
        %1695 = vmatpush1.msra.mxu0 0.0
        %1696 = vmatprep.subr.mxu0 0.0
        %1697 = vmatpush1.msra.mxu0 0.0
        %1698 = vmatprep.subr.mxu0 0.0
        %1699 = vmatpush1.msra.mxu0 0.0
        %1700 = vmatprep.subr.mxu0 0.0
        %1701 = vmatpush1.msra.mxu0 0.0
        %1702 = vmatprep.subr.mxu0 0.0
        %1703 = vmatpush1.msra.mxu0 0.0
        %1704 = vmatprep.subr.mxu0 0.0
        %1705 = vmatpush1.msra.mxu0 0.0
        %1706 = vmatprep.subr.mxu0 0.0
        %1707 = vmatpush1.msra.mxu0 0.0
        %1708 = vmatprep.subr.mxu0 0.0
        %1709 = vmatpush1.msra.mxu0 0.0
        %1710 = vmatprep.subr.mxu0 0.0
        %1711 = vmatpush1.msra.mxu0 0.0
        %1712 = vmatprep.mubr.f32.mxu0 0.0
        %v1713 = vand.u32 %v938, 4294901760
        %1714 = vmatmul.mubr.f32.gmra.mrb[0].mxu0 %v1713
        %v1715 = vpop.f32.mrb[0].mxu0
        %v1716 = vadd.f32 %v1623, %v1715
        %v1717 = vpop.f32.mrb[0].mxu0
        %1718 = vmatprep.mubr.f32.mxu0 0.0
        %v1719 = vand.u32 %v939, 4294901760
        %1720 = vmatmul.mubr.f32.gmra.mrb[0].mxu0 %v1719
        %v1721 = vpop.f32.mrb[0].mxu0
        %v1722 = vadd.f32 %v1629, %v1721
        %v1723 = vpop.f32.mrb[0].mxu0
        %1724 = vdwg.mxu0
        %vm1725 = vcmp.lt.s32.totalorder %v941, 9
        %vm1726 = vcmp.lt.s32.totalorder %v942, 9
        %v1727 = vsel %vm1725, %v1716, 1e+30
        %v1728 = vsel %vm1726, %v1722, 1e+30
        %v1729 = vlaneseq
        %v1730 = vshrl.u32 %v1729, 7
        %v1731 = vsub.s32 0, %v1730
        %v1732 = vrot.slane %v1727, %v1731
        %vm1733 = vcmp.lt.f32.partialorder %v1732, %v1727
        %vm1734 = vcmp.lt.f32.partialorder %v1732, %v1728
        %v1735 = vsel %vm1733, 1, 0
        %v1736 = vsel %vm1734, 1, 0
        %v1737 = vcvt.s32.f32 %v1735
        %v1738 = vcvt.s32.f32 %v1736
        %v1739 = vadd.f32 %v1737, 0.0
        %v1740 = vadd.f32 %v1738, 0.0
        %vm1741 = vcmp.le.f32.partialorder %v1732, %v1727
        %vm1742 = vcmp.le.f32.partialorder %v1732, %v1728
        %v1743 = vsel %vm1741, 1, 0
        %v1744 = vsel %vm1742, 1, 0
        %v1745 = vcvt.s32.f32 %v1743
        %v1746 = vcvt.s32.f32 %v1744
        %v1747 = vadd.f32 %v1745, 0.0
        %v1748 = vadd.f32 %v1746, 0.0
        %v1749 = vlaneseq
        %v1750 = vshrl.u32 %v1749, 7
        %v1751 = vsub.s32 1, %v1750
        %v1752 = vrot.slane %v1727, %v1751
        %vm1753 = vcmp.lt.f32.partialorder %v1752, %v1727
        %vm1754 = vcmp.lt.f32.partialorder %v1752, %v1728
        %v1755 = vsel %vm1753, 1, 0
        %v1756 = vsel %vm1754, 1, 0
        %v1757 = vcvt.s32.f32 %v1755
        %v1758 = vcvt.s32.f32 %v1756
        %v1759 = vadd.f32 %v1739, %v1757
        %v1760 = vadd.f32 %v1740, %v1758
        %vm1761 = vcmp.le.f32.partialorder %v1752, %v1727
        %vm1762 = vcmp.le.f32.partialorder %v1752, %v1728
        %v1763 = vsel %vm1761, 1, 0
        %v1764 = vsel %vm1762, 1, 0
        %v1765 = vcvt.s32.f32 %v1763
        %v1766 = vcvt.s32.f32 %v1764
        %v1767 = vadd.f32 %v1747, %v1765
        %v1768 = vadd.f32 %v1748, %v1766
        %v1769 = vlaneseq
        %v1770 = vshrl.u32 %v1769, 7
        %v1771 = vsub.s32 2, %v1770
        %v1772 = vrot.slane %v1727, %v1771
        %vm1773 = vcmp.lt.f32.partialorder %v1772, %v1727
        %vm1774 = vcmp.lt.f32.partialorder %v1772, %v1728
        %v1775 = vsel %vm1773, 1, 0
        %v1776 = vsel %vm1774, 1, 0
        %v1777 = vcvt.s32.f32 %v1775
        %v1778 = vcvt.s32.f32 %v1776
        %v1779 = vadd.f32 %v1759, %v1777
        %v1780 = vadd.f32 %v1760, %v1778
        %vm1781 = vcmp.le.f32.partialorder %v1772, %v1727
        %vm1782 = vcmp.le.f32.partialorder %v1772, %v1728
        %v1783 = vsel %vm1781, 1, 0
        %v1784 = vsel %vm1782, 1, 0
        %v1785 = vcvt.s32.f32 %v1783
        %v1786 = vcvt.s32.f32 %v1784
        %v1787 = vadd.f32 %v1767, %v1785
        %v1788 = vadd.f32 %v1768, %v1786
        %v1789 = vlaneseq
        %v1790 = vshrl.u32 %v1789, 7
        %v1791 = vsub.s32 3, %v1790
        %v1792 = vrot.slane %v1727, %v1791
        %vm1793 = vcmp.lt.f32.partialorder %v1792, %v1727
        %vm1794 = vcmp.lt.f32.partialorder %v1792, %v1728
        %v1795 = vsel %vm1793, 1, 0
        %v1796 = vsel %vm1794, 1, 0
        %v1797 = vcvt.s32.f32 %v1795
        %v1798 = vcvt.s32.f32 %v1796
        %v1799 = vadd.f32 %v1779, %v1797
        %v1800 = vadd.f32 %v1780, %v1798
        %vm1801 = vcmp.le.f32.partialorder %v1792, %v1727
        %vm1802 = vcmp.le.f32.partialorder %v1792, %v1728
        %v1803 = vsel %vm1801, 1, 0
        %v1804 = vsel %vm1802, 1, 0
        %v1805 = vcvt.s32.f32 %v1803
        %v1806 = vcvt.s32.f32 %v1804
        %v1807 = vadd.f32 %v1787, %v1805
        %v1808 = vadd.f32 %v1788, %v1806
        %v1809 = vlaneseq
        %v1810 = vshrl.u32 %v1809, 7
        %v1811 = vsub.s32 4, %v1810
        %v1812 = vrot.slane %v1727, %v1811
        %vm1813 = vcmp.lt.f32.partialorder %v1812, %v1727
        %vm1814 = vcmp.lt.f32.partialorder %v1812, %v1728
        %v1815 = vsel %vm1813, 1, 0
        %v1816 = vsel %vm1814, 1, 0
        %v1817 = vcvt.s32.f32 %v1815
        %v1818 = vcvt.s32.f32 %v1816
        %v1819 = vadd.f32 %v1799, %v1817
        %v1820 = vadd.f32 %v1800, %v1818
        %vm1821 = vcmp.le.f32.partialorder %v1812, %v1727
        %vm1822 = vcmp.le.f32.partialorder %v1812, %v1728
        %v1823 = vsel %vm1821, 1, 0
        %v1824 = vsel %vm1822, 1, 0
        %v1825 = vcvt.s32.f32 %v1823
        %v1826 = vcvt.s32.f32 %v1824
        %v1827 = vadd.f32 %v1807, %v1825
        %v1828 = vadd.f32 %v1808, %v1826
        %v1829 = vlaneseq
        %v1830 = vshrl.u32 %v1829, 7
        %v1831 = vsub.s32 5, %v1830
        %v1832 = vrot.slane %v1727, %v1831
        %vm1833 = vcmp.lt.f32.partialorder %v1832, %v1727
        %vm1834 = vcmp.lt.f32.partialorder %v1832, %v1728
        %v1835 = vsel %vm1833, 1, 0
        %v1836 = vsel %vm1834, 1, 0
        %v1837 = vcvt.s32.f32 %v1835
        %v1838 = vcvt.s32.f32 %v1836
        %v1839 = vadd.f32 %v1819, %v1837
        %v1840 = vadd.f32 %v1820, %v1838
        %vm1841 = vcmp.le.f32.partialorder %v1832, %v1727
        %vm1842 = vcmp.le.f32.partialorder %v1832, %v1728
        %v1843 = vsel %vm1841, 1, 0
        %v1844 = vsel %vm1842, 1, 0
        %v1845 = vcvt.s32.f32 %v1843
        %v1846 = vcvt.s32.f32 %v1844
        %v1847 = vadd.f32 %v1827, %v1845
        %v1848 = vadd.f32 %v1828, %v1846
        %v1849 = vlaneseq
        %v1850 = vshrl.u32 %v1849, 7
        %v1851 = vsub.s32 6, %v1850
        %v1852 = vrot.slane %v1727, %v1851
        %vm1853 = vcmp.lt.f32.partialorder %v1852, %v1727
        %vm1854 = vcmp.lt.f32.partialorder %v1852, %v1728
        %v1855 = vsel %vm1853, 1, 0
        %v1856 = vsel %vm1854, 1, 0
        %v1857 = vcvt.s32.f32 %v1855
        %v1858 = vcvt.s32.f32 %v1856
        %v1859 = vadd.f32 %v1839, %v1857
        %v1860 = vadd.f32 %v1840, %v1858
        %vm1861 = vcmp.le.f32.partialorder %v1852, %v1727
        %vm1862 = vcmp.le.f32.partialorder %v1852, %v1728
        %v1863 = vsel %vm1861, 1, 0
        %v1864 = vsel %vm1862, 1, 0
        %v1865 = vcvt.s32.f32 %v1863
        %v1866 = vcvt.s32.f32 %v1864
        %v1867 = vadd.f32 %v1847, %v1865
        %v1868 = vadd.f32 %v1848, %v1866
        %v1869 = vlaneseq
        %v1870 = vshrl.u32 %v1869, 7
        %v1871 = vsub.s32 7, %v1870
        %v1872 = vrot.slane %v1727, %v1871
        %vm1873 = vcmp.lt.f32.partialorder %v1872, %v1727
        %vm1874 = vcmp.lt.f32.partialorder %v1872, %v1728
        %v1875 = vsel %vm1873, 1, 0
        %v1876 = vsel %vm1874, 1, 0
        %v1877 = vcvt.s32.f32 %v1875
        %v1878 = vcvt.s32.f32 %v1876
        %v1879 = vadd.f32 %v1859, %v1877
        %v1880 = vadd.f32 %v1860, %v1878
        %vm1881 = vcmp.le.f32.partialorder %v1872, %v1727
        %vm1882 = vcmp.le.f32.partialorder %v1872, %v1728
        %v1883 = vsel %vm1881, 1, 0
        %v1884 = vsel %vm1882, 1, 0
        %v1885 = vcvt.s32.f32 %v1883
        %v1886 = vcvt.s32.f32 %v1884
        %v1887 = vadd.f32 %v1867, %v1885
        %v1888 = vadd.f32 %v1868, %v1886
        %v1889 = vlaneseq
        %v1890 = vshrl.u32 %v1889, 7
        %v1891 = vsub.s32 0, %v1890
        %v1892 = vrot.slane %v1728, %v1891
        %vm1893 = vcmp.lt.f32.partialorder %v1892, %v1727
        %vm1894 = vcmp.lt.f32.partialorder %v1892, %v1728
        %v1895 = vsel %vm1893, 1, 0
        %v1896 = vsel %vm1894, 1, 0
        %v1897 = vcvt.s32.f32 %v1895
        %v1898 = vcvt.s32.f32 %v1896
        %v1899 = vadd.f32 %v1879, %v1897
        %v1900 = vadd.f32 %v1880, %v1898
        %vm1901 = vcmp.le.f32.partialorder %v1892, %v1727
        %vm1902 = vcmp.le.f32.partialorder %v1892, %v1728
        %v1903 = vsel %vm1901, 1, 0
        %v1904 = vsel %vm1902, 1, 0
        %v1905 = vcvt.s32.f32 %v1903
        %v1906 = vcvt.s32.f32 %v1904
        %v1907 = vadd.f32 %v1887, %v1905
        %v1908 = vadd.f32 %v1888, %v1906
        %v1909 = vlaneseq
        %v1910 = vshrl.u32 %v1909, 7
        %v1911 = vsub.s32 1, %v1910
        %v1912 = vrot.slane %v1728, %v1911
        %vm1913 = vcmp.lt.f32.partialorder %v1912, %v1727
        %vm1914 = vcmp.lt.f32.partialorder %v1912, %v1728
        %v1915 = vsel %vm1913, 1, 0
        %v1916 = vsel %vm1914, 1, 0
        %v1917 = vcvt.s32.f32 %v1915
        %v1918 = vcvt.s32.f32 %v1916
        %v1919 = vadd.f32 %v1899, %v1917
        %v1920 = vadd.f32 %v1900, %v1918
        %vm1921 = vcmp.le.f32.partialorder %v1912, %v1727
        %vm1922 = vcmp.le.f32.partialorder %v1912, %v1728
        %v1923 = vsel %vm1921, 1, 0
        %v1924 = vsel %vm1922, 1, 0
        %v1925 = vcvt.s32.f32 %v1923
        %v1926 = vcvt.s32.f32 %v1924
        %v1927 = vadd.f32 %v1907, %v1925
        %v1928 = vadd.f32 %v1908, %v1926
        %v1929 = vlaneseq
        %v1930 = vshrl.u32 %v1929, 7
        %v1931 = vsub.s32 2, %v1930
        %v1932 = vrot.slane %v1728, %v1931
        %vm1933 = vcmp.lt.f32.partialorder %v1932, %v1727
        %vm1934 = vcmp.lt.f32.partialorder %v1932, %v1728
        %v1935 = vsel %vm1933, 1, 0
        %v1936 = vsel %vm1934, 1, 0
        %v1937 = vcvt.s32.f32 %v1935
        %v1938 = vcvt.s32.f32 %v1936
        %v1939 = vadd.f32 %v1919, %v1937
        %v1940 = vadd.f32 %v1920, %v1938
        %vm1941 = vcmp.le.f32.partialorder %v1932, %v1727
        %vm1942 = vcmp.le.f32.partialorder %v1932, %v1728
        %v1943 = vsel %vm1941, 1, 0
        %v1944 = vsel %vm1942, 1, 0
        %v1945 = vcvt.s32.f32 %v1943
        %v1946 = vcvt.s32.f32 %v1944
        %v1947 = vadd.f32 %v1927, %v1945
        %v1948 = vadd.f32 %v1928, %v1946
        %v1949 = vlaneseq
        %v1950 = vshrl.u32 %v1949, 7
        %v1951 = vsub.s32 3, %v1950
        %v1952 = vrot.slane %v1728, %v1951
        %vm1953 = vcmp.lt.f32.partialorder %v1952, %v1727
        %vm1954 = vcmp.lt.f32.partialorder %v1952, %v1728
        %v1955 = vsel %vm1953, 1, 0
        %v1956 = vsel %vm1954, 1, 0
        %v1957 = vcvt.s32.f32 %v1955
        %v1958 = vcvt.s32.f32 %v1956
        %v1959 = vadd.f32 %v1939, %v1957
        %v1960 = vadd.f32 %v1940, %v1958
        %vm1961 = vcmp.le.f32.partialorder %v1952, %v1727
        %vm1962 = vcmp.le.f32.partialorder %v1952, %v1728
        %v1963 = vsel %vm1961, 1, 0
        %v1964 = vsel %vm1962, 1, 0
        %v1965 = vcvt.s32.f32 %v1963
        %v1966 = vcvt.s32.f32 %v1964
        %v1967 = vadd.f32 %v1947, %v1965
        %v1968 = vadd.f32 %v1948, %v1966
        %v1969 = vlaneseq
        %v1970 = vshrl.u32 %v1969, 7
        %v1971 = vsub.s32 4, %v1970
        %v1972 = vrot.slane %v1728, %v1971
        %vm1973 = vcmp.lt.f32.partialorder %v1972, %v1727
        %vm1974 = vcmp.lt.f32.partialorder %v1972, %v1728
        %v1975 = vsel %vm1973, 1, 0
        %v1976 = vsel %vm1974, 1, 0
        %v1977 = vcvt.s32.f32 %v1975
        %v1978 = vcvt.s32.f32 %v1976
        %v1979 = vadd.f32 %v1959, %v1977
        %v1980 = vadd.f32 %v1960, %v1978
        %vm1981 = vcmp.le.f32.partialorder %v1972, %v1727
        %vm1982 = vcmp.le.f32.partialorder %v1972, %v1728
        %v1983 = vsel %vm1981, 1, 0
        %v1984 = vsel %vm1982, 1, 0
        %v1985 = vcvt.s32.f32 %v1983
        %v1986 = vcvt.s32.f32 %v1984
        %v1987 = vadd.f32 %v1967, %v1985
        %v1988 = vadd.f32 %v1968, %v1986
        %v1989 = vlaneseq
        %v1990 = vshrl.u32 %v1989, 7
        %v1991 = vsub.s32 5, %v1990
        %v1992 = vrot.slane %v1728, %v1991
        %vm1993 = vcmp.lt.f32.partialorder %v1992, %v1727
        %vm1994 = vcmp.lt.f32.partialorder %v1992, %v1728
        %v1995 = vsel %vm1993, 1, 0
        %v1996 = vsel %vm1994, 1, 0
        %v1997 = vcvt.s32.f32 %v1995
        %v1998 = vcvt.s32.f32 %v1996
        %v1999 = vadd.f32 %v1979, %v1997
        %v2000 = vadd.f32 %v1980, %v1998
        %vm2001 = vcmp.le.f32.partialorder %v1992, %v1727
        %vm2002 = vcmp.le.f32.partialorder %v1992, %v1728
        %v2003 = vsel %vm2001, 1, 0
        %v2004 = vsel %vm2002, 1, 0
        %v2005 = vcvt.s32.f32 %v2003
        %v2006 = vcvt.s32.f32 %v2004
        %v2007 = vadd.f32 %v1987, %v2005
        %v2008 = vadd.f32 %v1988, %v2006
        %v2009 = vlaneseq
        %v2010 = vshrl.u32 %v2009, 7
        %v2011 = vsub.s32 6, %v2010
        %v2012 = vrot.slane %v1728, %v2011
        %vm2013 = vcmp.lt.f32.partialorder %v2012, %v1727
        %vm2014 = vcmp.lt.f32.partialorder %v2012, %v1728
        %v2015 = vsel %vm2013, 1, 0
        %v2016 = vsel %vm2014, 1, 0
        %v2017 = vcvt.s32.f32 %v2015
        %v2018 = vcvt.s32.f32 %v2016
        %v2019 = vadd.f32 %v1999, %v2017
        %v2020 = vadd.f32 %v2000, %v2018
        %vm2021 = vcmp.le.f32.partialorder %v2012, %v1727
        %vm2022 = vcmp.le.f32.partialorder %v2012, %v1728
        %v2023 = vsel %vm2021, 1, 0
        %v2024 = vsel %vm2022, 1, 0
        %v2025 = vcvt.s32.f32 %v2023
        %v2026 = vcvt.s32.f32 %v2024
        %v2027 = vadd.f32 %v2007, %v2025
        %v2028 = vadd.f32 %v2008, %v2026
        %v2029 = vlaneseq
        %v2030 = vshrl.u32 %v2029, 7
        %v2031 = vsub.s32 7, %v2030
        %v2032 = vrot.slane %v1728, %v2031
        %vm2033 = vcmp.lt.f32.partialorder %v2032, %v1727
        %vm2034 = vcmp.lt.f32.partialorder %v2032, %v1728
        %v2035 = vsel %vm2033, 1, 0
        %v2036 = vsel %vm2034, 1, 0
        %v2037 = vcvt.s32.f32 %v2035
        %v2038 = vcvt.s32.f32 %v2036
        %v2039 = vadd.f32 %v2019, %v2037
        %v2040 = vadd.f32 %v2020, %v2038
        %vm2041 = vcmp.le.f32.partialorder %v2032, %v1727
        %vm2042 = vcmp.le.f32.partialorder %v2032, %v1728
        %v2043 = vsel %vm2041, 1, 0
        %v2044 = vsel %vm2042, 1, 0
        %v2045 = vcvt.s32.f32 %v2043
        %v2046 = vcvt.s32.f32 %v2044
        %v2047 = vadd.f32 %v2027, %v2045
        %v2048 = vadd.f32 %v2028, %v2046
        %vm2049 = vcmp.le.f32.partialorder %v2039, 4.0
        %vm2050 = vcmp.le.f32.partialorder %v2040, 4.0
        %vm2051 = vcmp.gt.f32.partialorder %v2047, 4.0
        %vm2052 = vcmp.gt.f32.partialorder %v2048, 4.0
        %vm2053 = vmand %vm2049, %vm2051
        %vm2054 = vmand %vm2050, %vm2052
        %v2055 = vsel %vm2053, %v1727, -1.0
        %v2056 = vsel %vm2054, %v1728, -1.0
        %vm2057 = vcmask 64512
        %v2058 = vsel %vm2057, %v2055, -inf
        %v2059 = vsel %vm2057, %v2056, -inf
        %v2060 = vmax.f32 %v2058, %v2059
        %v2061 = vrot.slane %v2060, 4
        %v2062 = vmax.f32 %v2060, %v2061
        %v2063 = vrot.slane %v2062, 2
        %v2064 = vmax.f32 %v2062, %v2063
        %v2065 = vrot.slane %v2064, 1
        %v2066 = vmax.f32 %v2064, %v2065
        %s2067 = sld [smem:[#allocation2]]
        %v2068 = vadd.f32 %v2066, 1e-06
        %v2069 = vstv %s2067
        %v2070 = vmul.f32 %v2069, %v2068
        %vm2071 = vcmp.gt.f32.partialorder %v1716, %v2070
        %vm2072 = vcmp.gt.f32.partialorder %v1722, %v2070
        %v2073 = vsel %vm2071, 1, 0
        %v2074 = vsel %vm2072, 1, 0
        %v2075 = vcvt.s32.f32 %v2073
        %v2076 = vcvt.s32.f32 %v2074
        %v2077 = vpack.c.bf16 %v2076, %v2075
        %v2078 = vmul.u32 %v941, 64
        %vm2079 = vcmp.ge.s32.totalorder %v958, %v2078
        %v2080 = vadd.s32 %v2078, 64
        %vm2081 = vcmp.lt.s32.totalorder %v958, %v2080
        %vm2082 = vmand %vm2079, %vm2081
        %v2083 = vsel %vm2082, 1, 0
        %v2084 = vcvt.s32.f32 %v2083
        %v2085 = vpack.c.bf16 %v2084, %v2084
        %v2087 = vsel %vm2057, %v2077, 0
        %vm2089 = vcmask 1043456
        %v2091 = vsel %vm2089, %v2085, 0
        %2093 = vmatprep.subr.bf16.mxu0 0
        %2094 = vmatpush1.bf16.msra.mxu0 %v2091
        %2095 = vmatprep.subr.bf16.mxu0 0
        %2096 = vmatpush1.bf16.msra.mxu0 0
        %2097 = vmatprep.subr.bf16.mxu0 0
        %2098 = vmatpush1.bf16.msra.mxu0 0
        %2099 = vmatprep.subr.bf16.mxu0 0
        %2100 = vmatpush1.bf16.msra.mxu0 0
        %2101 = vmatprep.subr.bf16.mxu0 0
        %2102 = vmatpush1.bf16.msra.mxu0 0
        %2103 = vmatprep.subr.bf16.mxu0 0
        %2104 = vmatpush1.bf16.msra.mxu0 0
        %2105 = vmatprep.subr.bf16.mxu0 0
        %2106 = vmatpush1.bf16.msra.mxu0 0
        %2107 = vmatprep.subr.bf16.mxu0 0
        %2108 = vmatpush1.bf16.msra.mxu0 0
        %2109 = vmatprep.subr.bf16.mxu0 0
        %2110 = vmatpush1.bf16.msra.mxu0 0
        %2111 = vmatprep.subr.bf16.mxu0 0
        %2112 = vmatpush1.bf16.msra.mxu0 0
        %2113 = vmatprep.subr.bf16.mxu0 0
        %2114 = vmatpush1.bf16.msra.mxu0 0
        %2115 = vmatprep.subr.bf16.mxu0 0
        %2116 = vmatpush1.bf16.msra.mxu0 0
        %2117 = vmatprep.subr.bf16.mxu0 0
        %2118 = vmatpush1.bf16.msra.mxu0 0
        %2119 = vmatprep.subr.bf16.mxu0 0
        %2120 = vmatpush1.bf16.msra.mxu0 0
        %2121 = vmatprep.subr.bf16.mxu0 0
        %2122 = vmatpush1.bf16.msra.mxu0 0
        %2123 = vmatprep.subr.bf16.mxu0 0
        %2124 = vmatpush1.bf16.msra.mxu0 0
        %2125 = vmatprep.mubr.bf16.mxu0 0
        %2126 = vmatmul.mubr.bf16.gmra.mrb[0].mxu0 %v2087
        %v2127 = vpop.f32.mrb[0].mxu0
        %v2128 = vadd.f32 0.0, %v2127
        %v2129 = vpop.f32.mrb[0].mxu0
        %v2130 = vpop.f32.mrb[0].mxu0
        %v2131 = vadd.f32 0.0, %v2130
        %v2132 = vpop.f32.mrb[0].mxu0
        %2133 = vdwg.mxu0
        %v2134 = vld [vmem:[#allocation11] sm:$0x1]
        %v2135 = vld [vmem:[#allocation11 + $0x1] sm:$0x1]
        %v2136 = vld [vmem:[#allocation11 + $0x2] sm:$0x1]
        %v2137 = vld [vmem:[#allocation11 + $0x3] sm:$0x1]
        %v2138 = vlaneseq
        %v2139 = vshrl.u32 %v2138, 7
        %v2140 = vsub.s32 0, %v2139
        %v2141 = vrot.slane %v2136, %v2140
        %v2142 = vmul.f32 %v2128, %v2141
        %v2143 = vmul.f32 %v2131, %v2141
        %v2144 = vlaneseq
        %v2145 = vshrl.u32 %v2144, 7
        %v2146 = vsub.s32 0, %v2145
        %v2147 = vrot.slane %v2134, %v2146
        %v2148 = vadd.f32 %v2147, %v2142
        %v2149 = vadd.f32 %v2147, %v2143
        %v2150 = vlaneseq
        %v2151 = vshrl.u32 %v2150, 7
        %v2152 = vsub.s32 0, %v2151
        %v2153 = vrot.slane %v2137, %v2152
        %v2154 = vmul.f32 %v2128, %v2153
        %v2155 = vmul.f32 %v2131, %v2153
        %v2156 = vlaneseq
        %v2157 = vshrl.u32 %v2156, 7
        %v2158 = vsub.s32 0, %v2157
        %v2159 = vrot.slane %v2135, %v2158
        %v2160 = vadd.f32 %v2159, %v2154
        %v2161 = vadd.f32 %v2159, %v2155
        %v2162 = vmul.f32 %v913, %v2148
        %v2163 = vmul.f32 %v919, %v2149
        %v2164 = vmul.f32 %v925, %v2160
        %v2165 = vmul.f32 %v931, %v2161
        %v2166 = vsub.f32 %v2162, %v2164
        %v2167 = vsub.f32 %v2163, %v2165
        %v2168 = vpack.c.bf16 %v2167, %v2166
        %v2169 = vmul.f32 %v913, %v2160
        %v2170 = vmul.f32 %v919, %v2161
        %v2171 = vmul.f32 %v925, %v2148
        %v2172 = vmul.f32 %v931, %v2149
        %v2173 = vadd.f32 %v2169, %v2171
        %v2174 = vadd.f32 %v2170, %v2172
        %v2175 = vpack.c.bf16 %v2174, %v2173
        %v2176 = vld [vmem:[#allocation8] sm:$0xf]
        %v2177 = vld [vmem:[#allocation8 + $0x4] sm:$0xf]
        %v2178 = vld [vmem:[#allocation9] sm:$0xf]
        %v2179 = vld [vmem:[#allocation9 + $0x4] sm:$0xf]
        %v2182 = vunpack.c.l.b16 %v2178
        %v2183 = vunpack.c.l.b16 %v2179
        %v2184 = vpack.c.b16 %v2183, %v2182
        %v2186 = vsel %vm333, %v2184, 0
        %2188 = vmatprep.subr.bf16.mxu0 0
        %2189 = vmatpush1.bf16.msra.mxu0 %v2175
        %2190 = vmatprep.subr.bf16.mxu0 0
        %2191 = vmatpush1.bf16.msra.mxu0 0
        %2192 = vmatprep.subr.bf16.mxu0 0
        %2193 = vmatpush1.bf16.msra.mxu0 0
        %2194 = vmatprep.subr.bf16.mxu0 0
        %2195 = vmatpush1.bf16.msra.mxu0 0
        %2196 = vmatprep.subr.bf16.mxu0 0
        %2197 = vmatpush1.bf16.msra.mxu0 0
        %2198 = vmatprep.subr.bf16.mxu0 0
        %2199 = vmatpush1.bf16.msra.mxu0 0
        %2200 = vmatprep.subr.bf16.mxu0 0
        %2201 = vmatpush1.bf16.msra.mxu0 0
        %2202 = vmatprep.subr.bf16.mxu0 0
        %2203 = vmatpush1.bf16.msra.mxu0 0
        %2204 = vmatprep.subr.bf16.mxu0 0
        %2205 = vmatpush1.bf16.msra.mxu0 0
        %2206 = vmatprep.subr.bf16.mxu0 0
        %2207 = vmatpush1.bf16.msra.mxu0 0
        %2208 = vmatprep.subr.bf16.mxu0 0
        %2209 = vmatpush1.bf16.msra.mxu0 0
        %2210 = vmatprep.subr.bf16.mxu0 0
        %2211 = vmatpush1.bf16.msra.mxu0 0
        %2212 = vmatprep.subr.bf16.mxu0 0
        %2213 = vmatpush1.bf16.msra.mxu0 0
        %2214 = vmatprep.subr.bf16.mxu0 0
        %2215 = vmatpush1.bf16.msra.mxu0 0
        %2216 = vmatprep.subr.bf16.mxu0 0
        %2217 = vmatpush1.bf16.msra.mxu0 0
        %2218 = vmatprep.subr.bf16.mxu0 0
        %2219 = vmatpush1.bf16.msra.mxu0 0
        %2220 = vmatprep.mubr.bf16.mxu0 0
        %2221 = vmatmul.mubr.bf16.gmra.mrb[0].mxu0 %v2186
        %v2222 = vpop.f32.mrb[0].mxu0
        %v2223 = vadd.f32 0.0, %v2222
        %v2224 = vpop.f32.mrb[0].mxu0
        %v2225 = vpop.f32.mrb[0].mxu0
        %v2226 = vadd.f32 0.0, %v2225
        %v2227 = vpop.f32.mrb[0].mxu0
        %2228 = vdwg.mxu0
        %v2231 = vunpack.c.l.b16 %v2176
        %v2232 = vunpack.c.l.b16 %v2177
        %v2233 = vpack.c.b16 %v2232, %v2231
        %v2235 = vsel %vm333, %v2233, 0
        %2237 = vmatprep.subr.bf16.mxu0 0
        %2238 = vmatpush1.bf16.msra.mxu0 %v2168
        %2239 = vmatprep.subr.bf16.mxu0 0
        %2240 = vmatpush1.bf16.msra.mxu0 0
        %2241 = vmatprep.subr.bf16.mxu0 0
        %2242 = vmatpush1.bf16.msra.mxu0 0
        %2243 = vmatprep.subr.bf16.mxu0 0
        %2244 = vmatpush1.bf16.msra.mxu0 0
        %2245 = vmatprep.subr.bf16.mxu0 0
        %2246 = vmatpush1.bf16.msra.mxu0 0
        %2247 = vmatprep.subr.bf16.mxu0 0
        %2248 = vmatpush1.bf16.msra.mxu0 0
        %2249 = vmatprep.subr.bf16.mxu0 0
        %2250 = vmatpush1.bf16.msra.mxu0 0
        %2251 = vmatprep.subr.bf16.mxu0 0
        %2252 = vmatpush1.bf16.msra.mxu0 0
        %2253 = vmatprep.subr.bf16.mxu0 0
        %2254 = vmatpush1.bf16.msra.mxu0 0
        %2255 = vmatprep.subr.bf16.mxu0 0
        %2256 = vmatpush1.bf16.msra.mxu0 0
        %2257 = vmatprep.subr.bf16.mxu0 0
        %2258 = vmatpush1.bf16.msra.mxu0 0
        %2259 = vmatprep.subr.bf16.mxu0 0
        %2260 = vmatpush1.bf16.msra.mxu0 0
        %2261 = vmatprep.subr.bf16.mxu0 0
        %2262 = vmatpush1.bf16.msra.mxu0 0
        %2263 = vmatprep.subr.bf16.mxu0 0
        %2264 = vmatpush1.bf16.msra.mxu0 0
        %2265 = vmatprep.subr.bf16.mxu0 0
        %2266 = vmatpush1.bf16.msra.mxu0 0
        %2267 = vmatprep.subr.bf16.mxu0 0
        %2268 = vmatpush1.bf16.msra.mxu0 0
        %2269 = vmatprep.mubr.bf16.mxu0 0
        %2270 = vmatmul.mubr.bf16.gmra.mrb[0].mxu0 %v2235
        %v2271 = vpop.f32.mrb[0].mxu0
        %v2272 = vadd.f32 %v2223, %v2271
        %v2273 = vpop.f32.mrb[0].mxu0
        %v2274 = vpop.f32.mrb[0].mxu0
        %v2275 = vadd.f32 %v2226, %v2274
        %v2276 = vpop.f32.mrb[0].mxu0
        %2277 = vdwg.mxu0
        %2278 = vst [vmem:[%s325] sm:$0xff] %v2272
        %2279 = vst [vmem:[%s325 + $0x8] sm:$0xff] %v2275
        %s2280 = sand.u32 %s165, 1
        %s2281 = scalar_lea.sflag [#allocation5], %s2280
        %s2282 = sand.u32 %s165, 1
        %s2283 = smul.addr %s2282, 16
        %s2284 = scalar_lea.vmem [#allocation12], %s2283
        // Predicated region
        $region65: #{tpu_custom_call.1} parent=43 // pred_check
          %p2285 = pneg %p175
        $region66: #{tpu_custom_call.1} parent=43 // pred_check_branch
          %2287 = sbr.rel (%p2285) target = $region68
        $region67: #{tpu_custom_call.1} parent=43 // pred_region
          %s2289 = ssub.s32 256, 256
          %2290 = vsyncadd %s2281, %s2289
          %s2291 = smul.addr %s26, 128
          %s2292 = scalar_lea.hbm %s6, %s2291
          %s2293 = sshll.u32 %s2284, 4
          %s2294 = int_to_ptr.vmem [resolvable:$true] %s2293
          %2299 = dma.vmem_to_hbm [thread:$0]  %s2294, 256, %s2292, %s2281, 128, 512, 8
        $region68: #{tpu_custom_call.1} parent=43 // pred_fallthru
          _
      $region44: #{tpu_custom_call.1} parent=5 // pred_fallthru
        _
      %p2300 = scmp.le.s32.totalorder 2, %s21
      // Predicated region
      $region69: #{tpu_custom_call.1} parent=5 // pred_check
        %p2301 = pneg %p2300
      $region70: #{tpu_custom_call.1} parent=5 // pred_check_branch
        %2303 = sbr.rel (%p2301) target = $region72
      $region71: #{tpu_custom_call.1} parent=5 // pred_region
        %s2304 = ssub.s32 %s21, 2
        // Predicated region
        $region73: #{tpu_custom_call.1} parent=71 // pred_check
          %p2305 = pneg %p181
        $region74: #{tpu_custom_call.1} parent=71 // pred_check_branch
          %2307 = sbr.rel (%p2305) target = $region76
        $region75: #{tpu_custom_call.1} parent=71 // pred_region
          %s2308 = sand.u32 %s166, 1
          %s2309 = scalar_lea.sflag [#allocation5], %s2308
          %s2310 = sand.u32 %s166, 1
          %s2311 = smul.addr %s2310, 16
          %s2312 = scalar_lea.vmem [#allocation12], %s2311
          %2313 = dma.done %s2309, 256
        $region76: #{tpu_custom_call.1} parent=71 // pred_fallthru
          _
      $region72: #{tpu_custom_call.1} parent=5 // pred_fallthru
        _
    $region6: #{tpu_custom_call.1} parent=1 // loop_footer
      %s25 = sadd.s32 1, %s21
    $region7: #{tpu_custom_call.1} parent=1 // loop_footer_branch
      %20 = sbr.rel target = $region3
    $region8: #{tpu_custom_call.1} parent=1 // loop_exit
      _
    %2314 = vsyncpa [#allocation4], 1
    %s2315 = scalar_lea.sflag [#allocation4], 1
    %2316 = vsyncpa %s2315, 1
    %2317 = vsyncpa [#allocation7], 1
    %2318 = vsyncpa [#allocation10], 1
    %2319 = vsyncpa [#allocation5], 1
    %s2320 = scalar_lea.sflag [#allocation5], 1
    %2321 = vsyncpa %s2320, 1

// kernel: tpu_custom_call.1
$region0: #{tpu_custom_call.1}
  #allocation0 [shape = 'u32[]', space=smem, size = 0x4, offset = 0x4, fixed_abs, tag = 'smem constant byte address 0x4 - core index']
  #allocation1 [shape = 'u32[144,128]{1,0:T(1,128)}', space=vmem, size = 0x12000, scoped, tag = 'internal scratch']
  #allocation2 [shape = 'f32[1]{0:T(128)S(6)}', space=smem, size = 0x200, scoped, tag = 'scoped memory for tpu_custom_call.1']
  %s0 = inlined_call_operand.hbm [shape: f32[16,512], index: 0, kind: input, shape index: {}]
  %s1 = inlined_call_operand.hbm [shape: f32[32,16], index: 1, kind: input, shape index: {}]
  %s2 = inlined_call_operand.hbm [shape: bf16[16,16], index: 2, kind: input, shape index: {}]
  %s3 = inlined_call_operand.hbm [shape: bf16[16,16], index: 3, kind: input, shape index: {}]
  %s4 = inlined_call_operand.hbm [shape: f32[4,128], index: 4, kind: input, shape index: {}]
  %s5 = inlined_call_operand.<no memory space> [shape: f32[1], index: 5, kind: input, shape index: {}]
  %s6 = inlined_call_operand.hbm [shape: f32[16,512], index: 6, kind: output, shape index: {}]
  %s7 = sld [smem:[#allocation0]]
  $region77: #{tpu_custom_call.1} parent=0
    _
  %s9 = ssub.s32 1, %s7
  %s10 = scalar_select 0, %s9, %s7
  %11 = sst [smem:[#allocation2]] %s5
  $region1: #{tpu_custom_call.1} parent=0
    #allocation3 [shape = 'u8[16384]{0}', space=vmem, size = 0x4000, scoped, tag = 'input window, operand 0']
    #allocation4 [shape = 's32[2]{0}', space=sflag, size = 0x8, scoped, tag = 'scoped memory for tpu_custom_call.1']
    #allocation5 [shape = 's32[2]{0}', space=sflag, size = 0x8, scoped, tag = 'scoped memory for tpu_custom_call.1']
    #allocation6 [shape = 'u8[16384]{0}', space=vmem, size = 0x4000, scoped, tag = 'input window, operand 1, single buffered']
    #allocation7 [shape = 's32[1]{0}', space=sflag, size = 0x4, scoped, tag = 'scoped memory for tpu_custom_call.1']
    #allocation8 [shape = 'u8[4096]{0}', space=vmem, size = 0x1000, scoped, tag = 'input window, operand 2, single buffered']
    #allocation9 [shape = 'u8[4096]{0}', space=vmem, size = 0x1000, scoped, tag = 'input window, operand 3, single buffered']
    #allocation10 [shape = 's32[1]{0}', space=sflag, size = 0x4, scoped, tag = 'scoped memory for tpu_custom_call.1']
    #allocation11 [shape = 'u8[2048]{0}', space=vmem, size = 0x800, scoped, tag = 'input window, operand 4, single buffered']
    #allocation12 [shape = 'u8[16384]{0}', space=vmem, size = 0x4000, scoped, tag = 'output window, operand 0']
    %12 = vsyncpa [#allocation4], 0
    %s13 = scalar_lea.sflag [#allocation4], 1
    %14 = vsyncpa %s13, 0
    %15 = vsyncpa [#allocation7], 0
    %16 = vsyncpa [#allocation10], 0
    %17 = vsyncpa [#allocation5], 0
    %s18 = scalar_lea.sflag [#allocation5], 1
    %19 = vsyncpa %s18, 0
    loop: start=0, step=1, limit=6
    $region2: #{tpu_custom_call.1} parent=1 // loop_pre_header
      _
    $region3: #{tpu_custom_call.1} parent=1 // loop_header
      %s21 = sphi 0, %s25
      %p22 = scmp.ge.s32.totalorder %s21, 6
      %s31 = sphi 0, %s33
      %s34 = sphi 0, %s31
      %s35 = sphi 0, %s34
      %s51 = sphi 0, %s35
      %s55 = sphi 0, %s55
      %s57 = sphi 0, %s55
      %s58 = sphi 0, %s57
      %s72 = sphi 0, %s58
      %s76 = sphi 0, %s76
      %s78 = sphi 0, %s76
      %s79 = sphi 0, %s78
      %s93 = sphi 0, %s79
      %s97 = sphi 0, %s97
      %s99 = sphi 0, %s97
      %s100 = sphi 0, %s99
      %s114 = sphi 0, %s100
      %s118 = sphi 0, %s118
      %s120 = sphi 0, %s118
      %s121 = sphi 0, %s120
      %s135 = sphi 0, %s121
      %s139 = sphi 0, %s139
      %s141 = sphi 0, %s139
      %s142 = sphi 0, %s141
      %s156 = sphi 0, %s142
      %s162 = sphi 0, %s164
      %s165 = sphi 0, %s162
      %s166 = sphi 0, %s165
      %s182 = sphi 0, %s166
    $region4: #{tpu_custom_call.1} parent=1 // loop_header_branch
      %24 = sbr.rel (%p22) target = $region8
    $region5: #{tpu_custom_call.1} parent=1 // loop_body
      %s26 = ssub.s32 %s21, 1
      %s27 = ssub.s32 %s21, 2
      %s28 = sadd.s32 %s21, 1
      %s29 = ssub.s32 %s21, %s28
      %p30 = scmp.eq.s32.totalorder %s29, 0
      %s32 = sadd.s32 %s31, 1
      %s33 = scalar_select %p30, %s31, %s32
      %p36 = pneg %p30
      %p37 = scmp.eq.s32.totalorder %s21, 3
      %p38 = por %p36, %p37
      %p39 = scmp.ne.s32.totalorder %s31, %s34
      %p40 = scmp.eq.s32.totalorder %s21, 0
      %p41 = por %p39, %p40
      %p42 = scmp.ne.s32.totalorder %s31, %s34
      %p43 = scmp.eq.s32.totalorder %s26, 3
      %p44 = por %p42, %p43
      %p45 = scmp.ne.s32.totalorder %s34, %s35
      %p46 = scmp.eq.s32.totalorder %s26, 0
      %p47 = por %p45, %p46
      %p48 = scmp.ne.s32.totalorder %s34, %s35
      %p49 = scmp.eq.s32.totalorder %s27, 3
      %p50 = por %p48, %p49
      %p52 = scmp.ne.s32.totalorder %s35, %s51
      %p53 = scmp.eq.s32.totalorder %s27, 0
      %p54 = por %p52, %p53
      %s56 = sadd.s32 %s55, 1
      %p59 = scmp.eq.s32.totalorder %s21, 3
      %p60 = scmp.ne.s32.totalorder %s55, %s57
      %p61 = scmp.eq.s32.totalorder %s21, 0
      %p62 = por %p60, %p61
      %p63 = scmp.ne.s32.totalorder %s55, %s57
      %p64 = scmp.eq.s32.totalorder %s26, 3
      %p65 = por %p63, %p64
      %p66 = scmp.ne.s32.totalorder %s57, %s58
      %p67 = scmp.eq.s32.totalorder %s26, 0
      %p68 = por %p66, %p67
      %p69 = scmp.ne.s32.totalorder %s57, %s58
      %p70 = scmp.eq.s32.totalorder %s27, 3
      %p71 = por %p69, %p70
      %p73 = scmp.ne.s32.totalorder %s58, %s72
      %p74 = scmp.eq.s32.totalorder %s27, 0
      %p75 = por %p73, %p74
      %s77 = sadd.s32 %s76, 1
      %p80 = scmp.eq.s32.totalorder %s21, 3
      %p81 = scmp.ne.s32.totalorder %s76, %s78
      %p82 = scmp.eq.s32.totalorder %s21, 0
      %p83 = por %p81, %p82
      %p84 = scmp.ne.s32.totalorder %s76, %s78
      %p85 = scmp.eq.s32.totalorder %s26, 3
      %p86 = por %p84, %p85
      %p87 = scmp.ne.s32.totalorder %s78, %s79
      %p88 = scmp.eq.s32.totalorder %s26, 0
      %p89 = por %p87, %p88
      %p90 = scmp.ne.s32.totalorder %s78, %s79
      %p91 = scmp.eq.s32.totalorder %s27, 3
      %p92 = por %p90, %p91
      %p94 = scmp.ne.s32.totalorder %s79, %s93
      %p95 = scmp.eq.s32.totalorder %s27, 0
      %p96 = por %p94, %p95
      %s98 = sadd.s32 %s97, 1
      %p101 = scmp.eq.s32.totalorder %s21, 3
      %p102 = scmp.ne.s32.totalorder %s97, %s99
      %p103 = scmp.eq.s32.totalorder %s21, 0
      %p104 = por %p102, %p103
      %p105 = scmp.ne.s32.totalorder %s97, %s99
      %p106 = scmp.eq.s32.totalorder %s26, 3
      %p107 = por %p105, %p106
      %p108 = scmp.ne.s32.totalorder %s99, %s100
      %p109 = scmp.eq.s32.totalorder %s26, 0
      %p110 = por %p108, %p109
      %p111 = scmp.ne.s32.totalorder %s99, %s100
      %p112 = scmp.eq.s32.totalorder %s27, 3
      %p113 = por %p111, %p112
      %p115 = scmp.ne.s32.totalorder %s100, %s114
      %p116 = scmp.eq.s32.totalorder %s27, 0
      %p117 = por %p115, %p116
      %s119 = sadd.s32 %s118, 1
      %p122 = scmp.eq.s32.totalorder %s21, 3
      %p123 = scmp.ne.s32.totalorder %s118, %s120
      %p124 = scmp.eq.s32.totalorder %s21, 0
      %p125 = por %p123, %p124
      %p126 = scmp.ne.s32.totalorder %s118, %s120
      %p127 = scmp.eq.s32.totalorder %s26, 3
      %p128 = por %p126, %p127
      %p129 = scmp.ne.s32.totalorder %s120, %s121
      %p130 = scmp.eq.s32.totalorder %s26, 0
      %p131 = por %p129, %p130
      %p132 = scmp.ne.s32.totalorder %s120, %s121
      %p133 = scmp.eq.s32.totalorder %s27, 3
      %p134 = por %p132, %p133
      %p136 = scmp.ne.s32.totalorder %s121, %s135
      %p137 = scmp.eq.s32.totalorder %s27, 0
      %p138 = por %p136, %p137
      %s140 = sadd.s32 %s139, 1
      %p143 = scmp.eq.s32.totalorder %s21, 3
      %p144 = scmp.ne.s32.totalorder %s139, %s141
      %p145 = scmp.eq.s32.totalorder %s21, 0
      %p146 = por %p144, %p145
      %p147 = scmp.ne.s32.totalorder %s139, %s141
      %p148 = scmp.eq.s32.totalorder %s26, 3
      %p149 = por %p147, %p148
      %p150 = scmp.ne.s32.totalorder %s141, %s142
      %p151 = scmp.eq.s32.totalorder %s26, 0
      %p152 = por %p150, %p151
      %p153 = scmp.ne.s32.totalorder %s141, %s142
      %p154 = scmp.eq.s32.totalorder %s27, 3
      %p155 = por %p153, %p154
      %p157 = scmp.ne.s32.totalorder %s142, %s156
      %p158 = scmp.eq.s32.totalorder %s27, 0
      %p159 = por %p157, %p158
      %s160 = ssub.s32 %s21, %s28
      %p161 = scmp.eq.s32.totalorder %s160, 0
      %s163 = sadd.s32 %s162, 1
      %s164 = scalar_select %p161, %s162, %s163
      %p167 = pneg %p161
      %p168 = scmp.eq.s32.totalorder %s21, 3
      %p169 = por %p167, %p168
      %p170 = scmp.ne.s32.totalorder %s162, %s165
      %p171 = scmp.eq.s32.totalorder %s21, 0
      %p172 = por %p170, %p171
      %p173 = scmp.ne.s32.totalorder %s162, %s165
      %p174 = scmp.eq.s32.totalorder %s26, 3
      %p175 = por %p173, %p174
      %p176 = scmp.ne.s32.totalorder %s165, %s166
      %p177 = scmp.eq.s32.totalorder %s26, 0
      %p178 = por %p176, %p177
      %p179 = scmp.ne.s32.totalorder %s165, %s166
      %p180 = scmp.eq.s32.totalorder %s27, 3
      %p181 = por %p179, %p180
      %p183 = scmp.ne.s32.totalorder %s166, %s182
      %p184 = scmp.eq.s32.totalorder %s27, 0
      %p185 = por %p183, %p184
      %p186 = scmp.le.s32.totalorder 1, %s21
      %p187 = scmp.lt.s32.totalorder %s21, 5
      %p188 = pnand %p186, %p187
      %p189 = pneg %p188
      // Predicated region
      $region9: #{tpu_custom_call.1} parent=5 // pred_check
        _
      $region10: #{tpu_custom_call.1} parent=5 // pred_check_branch
        %191 = sbr.rel (%p188) target = $region12
      $region11: #{tpu_custom_call.1} parent=5 // pred_region
        %s192 = ssub.s32 %s21, 1
        // Predicated region
        $region13: #{tpu_custom_call.1} parent=11 // pred_check
          %p193 = pneg %p68
        $region14: #{tpu_custom_call.1} parent=11 // pred_check_branch
          %195 = sbr.rel (%p193) target = $region16
        $region15: #{tpu_custom_call.1} parent=11 // pred_region
          %s197 = ssub.s32 512, 512
          %198 = vsyncadd [#allocation7], %s197
          %s199 = sshll.u32 [#allocation6], 4
          %s200 = int_to_ptr.vmem [resolvable:$true] %s199
          %205 = dma.hbm_to_vmem [thread:$0]  %s1, 512, %s200, [#allocation7], 128, 128, 8
        $region16: #{tpu_custom_call.1} parent=11 // pred_fallthru
          _
        // Predicated region
        $region17: #{tpu_custom_call.1} parent=11 // pred_check
          %p206 = pneg %p89
        $region18: #{tpu_custom_call.1} parent=11 // pred_check_branch
          %208 = sbr.rel (%p206) target = $region20
        $region19: #{tpu_custom_call.1} parent=11 // pred_region
          %s210 = ssub.s32 128, 128
          %211 = vsyncadd [#allocation7], %s210
          %s212 = sshll.u32 [#allocation8], 4
          %s213 = int_to_ptr.vmem [resolvable:$true] %s212
          %218 = dma.hbm_to_vmem [thread:$0]  %s2, 128, %s213, [#allocation7], 64, 64, 4
        $region20: #{tpu_custom_call.1} parent=11 // pred_fallthru
          _
        // Predicated region
        $region21: #{tpu_custom_call.1} parent=11 // pred_check
          %p219 = pneg %p110
        $region22: #{tpu_custom_call.1} parent=11 // pred_check_branch
          %221 = sbr.rel (%p219) target = $region24
        $region23: #{tpu_custom_call.1} parent=11 // pred_region
          %s223 = ssub.s32 128, 128
          %224 = vsyncadd [#allocation10], %s223
          %s225 = sshll.u32 [#allocation9], 4
          %s226 = int_to_ptr.vmem [resolvable:$true] %s225
          %231 = dma.hbm_to_vmem [thread:$0]  %s3, 128, %s226, [#allocation10], 64, 64, 4
        $region24: #{tpu_custom_call.1} parent=11 // pred_fallthru
          _
        // Predicated region
        $region25: #{tpu_custom_call.1} parent=11 // pred_check
          %p232 = pneg %p131
        $region26: #{tpu_custom_call.1} parent=11 // pred_check_branch
          %234 = sbr.rel (%p232) target = $region28
        $region27: #{tpu_custom_call.1} parent=11 // pred_region
          %s236 = ssub.s32 64, 64
          %237 = vsyncadd [#allocation10], %s236
          %s239 = sshll.u32 [#allocation11], 4
          %s240 = int_to_ptr.vmem [resolvable:$true] %s239
          %242 = dma.hbm_to_vmem [thread:$0]  %s4, 64, %s240, [#allocation10]
        $region28: #{tpu_custom_call.1} parent=11 // pred_fallthru
          _
        // Predicated region
        $region29: #{tpu_custom_call.1} parent=11 // pred_check
          %p243 = pneg %p152
        $region30: #{tpu_custom_call.1} parent=11 // pred_check_branch
          %245 = sbr.rel (%p243) target = $region32
        $region31: #{tpu_custom_call.1} parent=11 // pred_region
          _
        $region32: #{tpu_custom_call.1} parent=11 // pred_fallthru
          _
      $region12: #{tpu_custom_call.1} parent=5 // pred_fallthru
        _
      %p246 = scmp.lt.s32.totalorder %s21, 4
      // Predicated region
      $region33: #{tpu_custom_call.1} parent=5 // pred_check
        %p247 = pneg %p246
      $region34: #{tpu_custom_call.1} parent=5 // pred_check_branch
        %249 = sbr.rel (%p247) target = $region36
      $region35: #{tpu_custom_call.1} parent=5 // pred_region
        // Predicated region
        $region37: #{tpu_custom_call.1} parent=35 // pred_check
          %p250 = pneg %p41
        $region38: #{tpu_custom_call.1} parent=35 // pred_check_branch
          %252 = sbr.rel (%p250) target = $region40
        $region39: #{tpu_custom_call.1} parent=35 // pred_region
          %s253 = sand.u32 %s31, 1
          %s254 = scalar_lea.sflag [#allocation4], %s253
          %s255 = sand.u32 %s31, 1
          %s256 = smul.addr %s255, 16
          %s257 = scalar_lea.vmem [#allocation3], %s256
          %s259 = ssub.s32 256, 256
          %260 = vsyncadd %s254, %s259
          %s261 = smul.addr %s21, 128
          %s262 = scalar_lea.hbm %s0, %s261
          %s263 = sshll.u32 %s257, 4
          %s264 = int_to_ptr.vmem [resolvable:$true] %s263
          %269 = dma.hbm_to_vmem [thread:$0]  %s262, 256, %s264, %s254, 512, 128, 8
        $region40: #{tpu_custom_call.1} parent=35 // pred_fallthru
          _
      $region36: #{tpu_custom_call.1} parent=5 // pred_fallthru
        _
      %p270 = scmp.le.s32.totalorder 1, %s21
      %p271 = scmp.lt.s32.totalorder %s21, 5
      %p272 = pnand %p270, %p271
      %p273 = pneg %p272
      // Predicated region
      $region41: #{tpu_custom_call.1} parent=5 // pred_check
        _
      $region42: #{tpu_custom_call.1} parent=5 // pred_check_branch
        %275 = sbr.rel (%p272) target = $region44
      $region43: #{tpu_custom_call.1} parent=5 // pred_region
        %s276 = ssub.s32 %s21, 1
        %s277 = sand.u32 %s34, 1
        %s278 = scalar_lea.sflag [#allocation4], %s277
        %s279 = sand.u32 %s34, 1
        %s280 = smul.addr %s279, 16
        %s281 = scalar_lea.vmem [#allocation3], %s280
        // Predicated region
        $region45: #{tpu_custom_call.1} parent=43 // pred_check
          %p282 = pneg %p47
        $region46: #{tpu_custom_call.1} parent=43 // pred_check_branch
          %284 = sbr.rel (%p282) target = $region48
        $region47: #{tpu_custom_call.1} parent=43 // pred_region
          %285 = dma.done %s278, 256
        $region48: #{tpu_custom_call.1} parent=43 // pred_fallthru
          _
        // Predicated region
        $region49: #{tpu_custom_call.1} parent=43 // pred_check
          %p286 = pneg %p68
        $region50: #{tpu_custom_call.1} parent=43 // pred_check_branch
          %288 = sbr.rel (%p286) target = $region52
        $region51: #{tpu_custom_call.1} parent=43 // pred_region
          %289 = dma.done [#allocation7], 512
        $region52: #{tpu_custom_call.1} parent=43 // pred_fallthru
          _
        // Predicated region
        $region53: #{tpu_custom_call.1} parent=43 // pred_check
          %p290 = pneg %p89
        $region54: #{tpu_custom_call.1} parent=43 // pred_check_branch
          %292 = sbr.rel (%p290) target = $region56
        $region55: #{tpu_custom_call.1} parent=43 // pred_region
          %293 = dma.done [#allocation7], 128
        $region56: #{tpu_custom_call.1} parent=43 // pred_fallthru
          _
        // Predicated region
        $region57: #{tpu_custom_call.1} parent=43 // pred_check
          %p294 = pneg %p110
        $region58: #{tpu_custom_call.1} parent=43 // pred_check_branch
          %296 = sbr.rel (%p294) target = $region60
        $region59: #{tpu_custom_call.1} parent=43 // pred_region
          %297 = dma.done [#allocation10], 128
        $region60: #{tpu_custom_call.1} parent=43 // pred_fallthru
          _
        // Predicated region
        $region61: #{tpu_custom_call.1} parent=43 // pred_check
          %p298 = pneg %p131
        $region62: #{tpu_custom_call.1} parent=43 // pred_check_branch
          %300 = sbr.rel (%p298) target = $region64
        $region63: #{tpu_custom_call.1} parent=43 // pred_region
          %301 = dma.done [#allocation10], 64
        $region64: #{tpu_custom_call.1} parent=43 // pred_fallthru
          _
        %s302 = sand.u32 %s34, 1
        %s303 = scalar_lea.sflag [#allocation4], %s302
        %s304 = sand.u32 %s34, 1
        %s305 = smul.addr %s304, 16
        %s306 = scalar_lea.vmem [#allocation3], %s305
        %p307 = pneg %p47
        %p308 = pneg %p44
        %p309 = pneg %p68
        %p310 = pneg %p65
        %p311 = pneg %p89
        %p312 = pneg %p86
        %p313 = pneg %p110
        %p314 = pneg %p107
        %p315 = pneg %p131
        %p316 = pneg %p128
        %p317 = pneg %p152
        %p318 = pneg %p149
        %p319 = pneg %p178
        %p320 = pneg %p175
        %s321 = sand.u32 %s165, 1
        %s322 = scalar_lea.sflag [#allocation5], %s321
        %s323 = sand.u32 %s165, 1
        %s324 = smul.addr %s323, 16
        %s325 = scalar_lea.vmem [#allocation12], %s324
        %v327 = vld [vmem:[%s281] sm:$0xff]
        %v328 = vld [vmem:[%s281 + $0x8] sm:$0xff]
        %v329 = vld [vmem:[#allocation6] sm:$0xff]
        %v330 = vld [vmem:[#allocation6 + $0x8] sm:$0xff]
        %v331 = vld [vmem:[#allocation6 + $0x10] sm:$0xff]
        %v332 = vld [vmem:[#allocation6 + $0x18] sm:$0xff]
        %vm333 = vcmask 130048
        %v335 = vsel %vm333, %v329, 0
        %v338 = vsel %vm333, %v330, 0
        %v341 = vsel %vm333, %v331, 0
        %v344 = vsel %vm333, %v332, 0
        %346 = vmatprep.subr.mxu0 0.0
        %v347 = vand.u32 %v327, 4294901760
        %348 = vmatpush1.msra.mxu0 %v347
        %349 = vmatprep.subr.mxu0 0.0
        %v350 = vand.u32 %v328, 4294901760
        %351 = vmatpush1.msra.mxu0 %v350
        %352 = vmatprep.subr.mxu0 0.0
        %353 = vmatpush1.msra.mxu0 0.0
        %354 = vmatprep.subr.mxu0 0.0
        %355 = vmatpush1.msra.mxu0 0.0
        %356 = vmatprep.subr.mxu0 0.0
        %357 = vmatpush1.msra.mxu0 0.0
        %358 = vmatprep.subr.mxu0 0.0
        %359 = vmatpush1.msra.mxu0 0.0
        %360 = vmatprep.subr.mxu0 0.0
        %361 = vmatpush1.msra.mxu0 0.0
        %362 = vmatprep.subr.mxu0 0.0
        %363 = vmatpush1.msra.mxu0 0.0
        %364 = vmatprep.subr.mxu0 0.0
        %365 = vmatpush1.msra.mxu0 0.0
        %366 = vmatprep.subr.mxu0 0.0
        %367 = vmatpush1.msra.mxu0 0.0
        %368 = vmatprep.subr.mxu0 0.0
        %369 = vmatpush1.msra.mxu0 0.0
        %370 = vmatprep.subr.mxu0 0.0
        %371 = vmatpush1.msra.mxu0 0.0
        %372 = vmatprep.subr.mxu0 0.0
        %373 = vmatpush1.msra.mxu0 0.0
        %374 = vmatprep.subr.mxu0 0.0
        %375 = vmatpush1.msra.mxu0 0.0
        %376 = vmatprep.subr.mxu0 0.0
        %377 = vmatpush1.msra.mxu0 0.0
        %378 = vmatprep.subr.mxu0 0.0
        %379 = vmatpush1.msra.mxu0 0.0
        %380 = vmatprep.subr.mxu0 0.0
        %381 = vmatpush1.msra.mxu0 0.0
        %382 = vmatprep.subr.mxu0 0.0
        %383 = vmatpush1.msra.mxu0 0.0
        %384 = vmatprep.subr.mxu0 0.0
        %385 = vmatpush1.msra.mxu0 0.0
        %386 = vmatprep.subr.mxu0 0.0
        %387 = vmatpush1.msra.mxu0 0.0
        %388 = vmatprep.subr.mxu0 0.0
        %389 = vmatpush1.msra.mxu0 0.0
        %390 = vmatprep.subr.mxu0 0.0
        %391 = vmatpush1.msra.mxu0 0.0
        %392 = vmatprep.subr.mxu0 0.0
        %393 = vmatpush1.msra.mxu0 0.0
        %394 = vmatprep.subr.mxu0 0.0
        %395 = vmatpush1.msra.mxu0 0.0
        %396 = vmatprep.subr.mxu0 0.0
        %397 = vmatpush1.msra.mxu0 0.0
        %398 = vmatprep.subr.mxu0 0.0
        %399 = vmatpush1.msra.mxu0 0.0
        %400 = vmatprep.subr.mxu0 0.0
        %401 = vmatpush1.msra.mxu0 0.0
        %402 = vmatprep.subr.mxu0 0.0
        %403 = vmatpush1.msra.mxu0 0.0
        %404 = vmatprep.subr.mxu0 0.0
        %405 = vmatpush1.msra.mxu0 0.0
        %406 = vmatprep.subr.mxu0 0.0
        %407 = vmatpush1.msra.mxu0 0.0
        %408 = vmatprep.subr.mxu0 0.0
        %409 = vmatpush1.msra.mxu0 0.0
        %410 = vmatprep.subr.mxu0 0.0
        %411 = vmatpush1.msra.mxu0 0.0
        %412 = vmatprep.mubr.f32.mxu0 0.0
        %v413 = vand.u32 %v335, 4294901760
        %v414 = vsub.f32 %v335, %v413
        %v415 = vand.u32 %v414, 4294901760
        %v416 = vsub.f32 %v414, %v415
        %v417 = vand.u32 %v416, 4294901760
        %418 = vmatmul.mubr.f32.gmra.mrb[0].mxu0 %v417
        %v419 = vpop.f32.mrb[0].mxu0
        %v420 = vadd.f32 0.0, %v419
        %v421 = vpop.f32.mrb[0].mxu0
        %422 = vmatprep.mubr.f32.mxu0 0.0
        %v423 = vand.u32 %v338, 4294901760
        %v424 = vsub.f32 %v338, %v423
        %v425 = vand.u32 %v424, 4294901760
        %v426 = vsub.f32 %v424, %v425
        %v427 = vand.u32 %v426, 4294901760
        %428 = vmatmul.mubr.f32.gmra.mrb[0].mxu0 %v427
        %v429 = vpop.f32.mrb[0].mxu0
        %v430 = vadd.f32 0.0, %v429
        %v431 = vpop.f32.mrb[0].mxu0
        %432 = vmatprep.mubr.f32.mxu0 0.0
        %v433 = vand.u32 %v341, 4294901760
        %v434 = vsub.f32 %v341, %v433
        %v435 = vand.u32 %v434, 4294901760
        %v436 = vsub.f32 %v434, %v435
        %v437 = vand.u32 %v436, 4294901760
        %438 = vmatmul.mubr.f32.gmra.mrb[0].mxu0 %v437
        %v439 = vpop.f32.mrb[0].mxu0
        %v440 = vadd.f32 0.0, %v439
        %v441 = vpop.f32.mrb[0].mxu0
        %442 = vmatprep.mubr.f32.mxu0 0.0
        %v443 = vand.u32 %v344, 4294901760
        %v444 = vsub.f32 %v344, %v443
        %v445 = vand.u32 %v444, 4294901760
        %v446 = vsub.f32 %v444, %v445
        %v447 = vand.u32 %v446, 4294901760
        %448 = vmatmul.mubr.f32.gmra.mrb[0].mxu0 %v447
        %v449 = vpop.f32.mrb[0].mxu0
        %v450 = vadd.f32 0.0, %v449
        %v451 = vpop.f32.mrb[0].mxu0
        %452 = vdwg.mxu0
        %453 = vmatprep.subr.mxu0 0.0
        %v454 = vand.u32 %v327, 4294901760
        %v455 = vsub.f32 %v327, %v454
        %v456 = vand.u32 %v455, 4294901760
        %v457 = vsub.f32 %v455, %v456
        %v458 = vand.u32 %v457, 4294901760
        %459 = vmatpush1.msra.mxu0 %v458
        %460 = vmatprep.subr.mxu0 0.0
        %v461 = vand.u32 %v328, 4294901760
        %v462 = vsub.f32 %v328, %v461
        %v463 = vand.u32 %v462, 4294901760
        %v464 = vsub.f32 %v462, %v463
        %v465 = vand.u32 %v464, 4294901760
        %466 = vmatpush1.msra.mxu0 %v465
        %467 = vmatprep.subr.mxu0 0.0
        %468 = vmatpush1.msra.mxu0 0.0
        %469 = vmatprep.subr.mxu0 0.0
        %470 = vmatpush1.msra.mxu0 0.0
        %471 = vmatprep.subr.mxu0 0.0
        %472 = vmatpush1.msra.mxu0 0.0
        %473 = vmatprep.subr.mxu0 0.0
        %474 = vmatpush1.msra.mxu0 0.0
        %475 = vmatprep.subr.mxu0 0.0
        %476 = vmatpush1.msra.mxu0 0.0
        %477 = vmatprep.subr.mxu0 0.0
        %478 = vmatpush1.msra.mxu0 0.0
        %479 = vmatprep.subr.mxu0 0.0
        %480 = vmatpush1.msra.mxu0 0.0
        %481 = vmatprep.subr.mxu0 0.0
        %482 = vmatpush1.msra.mxu0 0.0
        %483 = vmatprep.subr.mxu0 0.0
        %484 = vmatpush1.msra.mxu0 0.0
        %485 = vmatprep.subr.mxu0 0.0
        %486 = vmatpush1.msra.mxu0 0.0
        %487 = vmatprep.subr.mxu0 0.0
        %488 = vmatpush1.msra.mxu0 0.0
        %489 = vmatprep.subr.mxu0 0.0
        %490 = vmatpush1.msra.mxu0 0.0
        %491 = vmatprep.subr.mxu0 0.0
        %492 = vmatpush1.msra.mxu0 0.0
        %493 = vmatprep.subr.mxu0 0.0
        %494 = vmatpush1.msra.mxu0 0.0
        %495 = vmatprep.subr.mxu0 0.0
        %496 = vmatpush1.msra.mxu0 0.0
        %497 = vmatprep.subr.mxu0 0.0
        %498 = vmatpush1.msra.mxu0 0.0
        %499 = vmatprep.subr.mxu0 0.0
        %500 = vmatpush1.msra.mxu0 0.0
        %501 = vmatprep.subr.mxu0 0.0
        %502 = vmatpush1.msra.mxu0 0.0
        %503 = vmatprep.subr.mxu0 0.0
        %504 = vmatpush1.msra.mxu0 0.0
        %505 = vmatprep.subr.mxu0 0.0
        %506 = vmatpush1.msra.mxu0 0.0
        %507 = vmatprep.subr.mxu0 0.0
        %508 = vmatpush1.msra.mxu0 0.0
        %509 = vmatprep.subr.mxu0 0.0
        %510 = vmatpush1.msra.mxu0 0.0
        %511 = vmatprep.subr.mxu0 0.0
        %512 = vmatpush1.msra.mxu0 0.0
        %513 = vmatprep.subr.mxu0 0.0
        %514 = vmatpush1.msra.mxu0 0.0
        %515 = vmatprep.subr.mxu0 0.0
        %516 = vmatpush1.msra.mxu0 0.0
        %517 = vmatprep.subr.mxu0 0.0
        %518 = vmatpush1.msra.mxu0 0.0
        %519 = vmatprep.subr.mxu0 0.0
        %520 = vmatpush1.msra.mxu0 0.0
        %521 = vmatprep.subr.mxu0 0.0
        %522 = vmatpush1.msra.mxu0 0.0
        %523 = vmatprep.subr.mxu0 0.0
        %524 = vmatpush1.msra.mxu0 0.0
        %525 = vmatprep.subr.mxu0 0.0
        %526 = vmatpush1.msra.mxu0 0.0
        %527 = vmatprep.mubr.f32.mxu0 0.0
        %v528 = vand.u32 %v335, 4294901760
        %529 = vmatmul.mubr.f32.gmra.mrb[0].mxu0 %v528
        %v530 = vpop.f32.mrb[0].mxu0
        %v531 = vadd.f32 %v420, %v530
        %v532 = vpop.f32.mrb[0].mxu0
        %533 = vmatprep.mubr.f32.mxu0 0.0
        %v534 = vand.u32 %v338, 4294901760
        %535 = vmatmul.mubr.f32.gmra.mrb[0].mxu0 %v534
        %v536 = vpop.f32.mrb[0].mxu0
        %v537 = vadd.f32 %v430, %v536
        %v538 = vpop.f32.mrb[0].mxu0
        %539 = vmatprep.mubr.f32.mxu0 0.0
        %v540 = vand.u32 %v341, 4294901760
        %541 = vmatmul.mubr.f32.gmra.mrb[0].mxu0 %v540
        %v542 = vpop.f32.mrb[0].mxu0
        %v543 = vadd.f32 %v440, %v542
        %v544 = vpop.f32.mrb[0].mxu0
        %545 = vmatprep.mubr.f32.mxu0 0.0
        %v546 = vand.u32 %v344, 4294901760
        %547 = vmatmul.mubr.f32.gmra.mrb[0].mxu0 %v546
        %v548 = vpop.f32.mrb[0].mxu0
        %v549 = vadd.f32 %v450, %v548
        %v550 = vpop.f32.mrb[0].mxu0
        %551 = vdwg.mxu0
        %552 = vmatprep.subr.mxu0 0.0
        %v553 = vand.u32 %v327, 4294901760
        %v554 = vsub.f32 %v327, %v553
        %555 = vmatpush1.msra.mxu0 %v554
        %556 = vmatprep.subr.mxu0 0.0
        %v557 = vand.u32 %v328, 4294901760
        %v558 = vsub.f32 %v328, %v557
        %559 = vmatpush1.msra.mxu0 %v558
        %560 = vmatprep.subr.mxu0 0.0
        %561 = vmatpush1.msra.mxu0 0.0
        %562 = vmatprep.subr.mxu0 0.0
        %563 = vmatpush1.msra.mxu0 0.0
        %564 = vmatprep.subr.mxu0 0.0
        %565 = vmatpush1.msra.mxu0 0.0
        %566 = vmatprep.subr.mxu0 0.0
        %567 = vmatpush1.msra.mxu0 0.0
        %568 = vmatprep.subr.mxu0 0.0
        %569 = vmatpush1.msra.mxu0 0.0
        %570 = vmatprep.subr.mxu0 0.0
        %571 = vmatpush1.msra.mxu0 0.0
        %572 = vmatprep.subr.mxu0 0.0
        %573 = vmatpush1.msra.mxu0 0.0
        %574 = vmatprep.subr.mxu0 0.0
        %575 = vmatpush1.msra.mxu0 0.0
        %576 = vmatprep.subr.mxu0 0.0
        %577 = vmatpush1.msra.mxu0 0.0
        %578 = vmatprep.subr.mxu0 0.0
        %579 = vmatpush1.msra.mxu0 0.0
        %580 = vmatprep.subr.mxu0 0.0
        %581 = vmatpush1.msra.mxu0 0.0
        %582 = vmatprep.subr.mxu0 0.0
        %583 = vmatpush1.msra.mxu0 0.0
        %584 = vmatprep.subr.mxu0 0.0
        %585 = vmatpush1.msra.mxu0 0.0
        %586 = vmatprep.subr.mxu0 0.0
        %587 = vmatpush1.msra.mxu0 0.0
        %588 = vmatprep.subr.mxu0 0.0
        %589 = vmatpush1.msra.mxu0 0.0
        %590 = vmatprep.subr.mxu0 0.0
        %591 = vmatpush1.msra.mxu0 0.0
        %592 = vmatprep.subr.mxu0 0.0
        %593 = vmatpush1.msra.mxu0 0.0
        %594 = vmatprep.subr.mxu0 0.0
        %595 = vmatpush1.msra.mxu0 0.0
        %596 = vmatprep.subr.mxu0 0.0
        %597 = vmatpush1.msra.mxu0 0.0
        %598 = vmatprep.subr.mxu0 0.0
        %599 = vmatpush1.msra.mxu0 0.0
        %600 = vmatprep.subr.mxu0 0.0
        %601 = vmatpush1.msra.mxu0 0.0
        %602 = vmatprep.subr.mxu0 0.0
        %603 = vmatpush1.msra.mxu0 0.0
        %604 = vmatprep.subr.mxu0 0.0
        %605 = vmatpush1.msra.mxu0 0.0
        %606 = vmatprep.subr.mxu0 0.0
        %607 = vmatpush1.msra.mxu0 0.0
        %608 = vmatprep.subr.mxu0 0.0
        %609 = vmatpush1.msra.mxu0 0.0
        %610 = vmatprep.subr.mxu0 0.0
        %611 = vmatpush1.msra.mxu0 0.0
        %612 = vmatprep.subr.mxu0 0.0
        %613 = vmatpush1.msra.mxu0 0.0
        %614 = vmatprep.subr.mxu0 0.0
        %615 = vmatpush1.msra.mxu0 0.0
        %616 = vmatprep.subr.mxu0 0.0
        %617 = vmatpush1.msra.mxu0 0.0
        %618 = vmatprep.subr.mxu0 0.0
        %619 = vmatpush1.msra.mxu0 0.0
        %620 = vmatprep.mubr.f32.mxu0 0.0
        %v621 = vand.u32 %v335, 4294901760
        %v622 = vsub.f32 %v335, %v621
        %623 = vmatmul.mubr.f32.gmra.mrb[0].mxu0 %v622
        %v624 = vpop.f32.mrb[0].mxu0
        %v625 = vadd.f32 %v531, %v624
        %v626 = vpop.f32.mrb[0].mxu0
        %627 = vmatprep.mubr.f32.mxu0 0.0
        %v628 = vand.u32 %v338, 4294901760
        %v629 = vsub.f32 %v338, %v628
        %630 = vmatmul.mubr.f32.gmra.mrb[0].mxu0 %v629
        %v631 = vpop.f32.mrb[0].mxu0
        %v632 = vadd.f32 %v537, %v631
        %v633 = vpop.f32.mrb[0].mxu0
        %634 = vmatprep.mubr.f32.mxu0 0.0
        %v635 = vand.u32 %v341, 4294901760
        %v636 = vsub.f32 %v341, %v635
        %637 = vmatmul.mubr.f32.gmra.mrb[0].mxu0 %v636
        %v638 = vpop.f32.mrb[0].mxu0
        %v639 = vadd.f32 %v543, %v638
        %v640 = vpop.f32.mrb[0].mxu0
        %641 = vmatprep.mubr.f32.mxu0 0.0
        %v642 = vand.u32 %v344, 4294901760
        %v643 = vsub.f32 %v344, %v642
        %644 = vmatmul.mubr.f32.gmra.mrb[0].mxu0 %v643
        %v645 = vpop.f32.mrb[0].mxu0
        %v646 = vadd.f32 %v549, %v645
        %v647 = vpop.f32.mrb[0].mxu0
        %648 = vdwg.mxu0
        %649 = vmatprep.subr.mxu0 0.0
        %v650 = vand.u32 %v327, 4294901760
        %651 = vmatpush1.msra.mxu0 %v650
        %652 = vmatprep.subr.mxu0 0.0
        %v653 = vand.u32 %v328, 4294901760
        %654 = vmatpush1.msra.mxu0 %v653
        %655 = vmatprep.subr.mxu0 0.0
        %656 = vmatpush1.msra.mxu0 0.0
        %657 = vmatprep.subr.mxu0 0.0
        %658 = vmatpush1.msra.mxu0 0.0
        %659 = vmatprep.subr.mxu0 0.0
        %660 = vmatpush1.msra.mxu0 0.0
        %661 = vmatprep.subr.mxu0 0.0
        %662 = vmatpush1.msra.mxu0 0.0
        %663 = vmatprep.subr.mxu0 0.0
        %664 = vmatpush1.msra.mxu0 0.0
        %665 = vmatprep.subr.mxu0 0.0
        %666 = vmatpush1.msra.mxu0 0.0
        %667 = vmatprep.subr.mxu0 0.0
        %668 = vmatpush1.msra.mxu0 0.0
        %669 = vmatprep.subr.mxu0 0.0
        %670 = vmatpush1.msra.mxu0 0.0
        %671 = vmatprep.subr.mxu0 0.0
        %672 = vmatpush1.msra.mxu0 0.0
        %673 = vmatprep.subr.mxu0 0.0
        %674 = vmatpush1.msra.mxu0 0.0
        %675 = vmatprep.subr.mxu0 0.0
        %676 = vmatpush1.msra.mxu0 0.0
        %677 = vmatprep.subr.mxu0 0.0
        %678 = vmatpush1.msra.mxu0 0.0
        %679 = vmatprep.subr.mxu0 0.0
        %680 = vmatpush1.msra.mxu0 0.0
        %681 = vmatprep.subr.mxu0 0.0
        %682 = vmatpush1.msra.mxu0 0.0
        %683 = vmatprep.subr.mxu0 0.0
        %684 = vmatpush1.msra.mxu0 0.0
        %685 = vmatprep.subr.mxu0 0.0
        %686 = vmatpush1.msra.mxu0 0.0
        %687 = vmatprep.subr.mxu0 0.0
        %688 = vmatpush1.msra.mxu0 0.0
        %689 = vmatprep.subr.mxu0 0.0
        %690 = vmatpush1.msra.mxu0 0.0
        %691 = vmatprep.subr.mxu0 0.0
        %692 = vmatpush1.msra.mxu0 0.0
        %693 = vmatprep.subr.mxu0 0.0
        %694 = vmatpush1.msra.mxu0 0.0
        %695 = vmatprep.subr.mxu0 0.0
        %696 = vmatpush1.msra.mxu0 0.0
        %697 = vmatprep.subr.mxu0 0.0
        %698 = vmatpush1.msra.mxu0 0.0
        %699 = vmatprep.subr.mxu0 0.0
        %700 = vmatpush1.msra.mxu0 0.0
        %701 = vmatprep.subr.mxu0 0.0
        %702 = vmatpush1.msra.mxu0 0.0
        %703 = vmatprep.subr.mxu0 0.0
        %704 = vmatpush1.msra.mxu0 0.0
        %705 = vmatprep.subr.mxu0 0.0
        %706 = vmatpush1.msra.mxu0 0.0
        %707 = vmatprep.subr.mxu0 0.0
        %708 = vmatpush1.msra.mxu0 0.0
        %709 = vmatprep.subr.mxu0 0.0
        %710 = vmatpush1.msra.mxu0 0.0
        %711 = vmatprep.subr.mxu0 0.0
        %712 = vmatpush1.msra.mxu0 0.0
        %713 = vmatprep.subr.mxu0 0.0
        %714 = vmatpush1.msra.mxu0 0.0
        %715 = vmatprep.mubr.f32.mxu0 0.0
        %v716 = vand.u32 %v335, 4294901760
        %v717 = vsub.f32 %v335, %v716
        %v718 = vand.u32 %v717, 4294901760
        %719 = vmatmul.mubr.f32.gmra.mrb[0].mxu0 %v718
        %v720 = vpop.f32.mrb[0].mxu0
        %v721 = vadd.f32 %v625, %v720
        %v722 = vpop.f32.mrb[0].mxu0
        %723 = vmatprep.mubr.f32.mxu0 0.0
        %v724 = vand.u32 %v338, 4294901760
        %v725 = vsub.f32 %v338, %v724
        %v726 = vand.u32 %v725, 4294901760
        %727 = vmatmul.mubr.f32.gmra.mrb[0].mxu0 %v726
        %v728 = vpop.f32.mrb[0].mxu0
        %v729 = vadd.f32 %v632, %v728
        %v730 = vpop.f32.mrb[0].mxu0
        %731 = vmatprep.mubr.f32.mxu0 0.0
        %v732 = vand.u32 %v341, 4294901760
        %v733 = vsub.f32 %v341, %v732
        %v734 = vand.u32 %v733, 4294901760
        %735 = vmatmul.mubr.f32.gmra.mrb[0].mxu0 %v734
        %v736 = vpop.f32.mrb[0].mxu0
        %v737 = vadd.f32 %v639, %v736
        %v738 = vpop.f32.mrb[0].mxu0
        %739 = vmatprep.mubr.f32.mxu0 0.0
        %v740 = vand.u32 %v344, 4294901760
        %v741 = vsub.f32 %v344, %v740
        %v742 = vand.u32 %v741, 4294901760
        %743 = vmatmul.mubr.f32.gmra.mrb[0].mxu0 %v742
        %v744 = vpop.f32.mrb[0].mxu0
        %v745 = vadd.f32 %v646, %v744
        %v746 = vpop.f32.mrb[0].mxu0
        %747 = vdwg.mxu0
        %748 = vmatprep.subr.mxu0 0.0
        %v749 = vand.u32 %v327, 4294901760
        %v750 = vsub.f32 %v327, %v749
        %v751 = vand.u32 %v750, 4294901760
        %752 = vmatpush1.msra.mxu0 %v751
        %753 = vmatprep.subr.mxu0 0.0
        %v754 = vand.u32 %v328, 4294901760
        %v755 = vsub.f32 %v328, %v754
        %v756 = vand.u32 %v755, 4294901760
        %757 = vmatpush1.msra.mxu0 %v756
        %758 = vmatprep.subr.mxu0 0.0
        %759 = vmatpush1.msra.mxu0 0.0
        %760 = vmatprep.subr.mxu0 0.0
        %761 = vmatpush1.msra.mxu0 0.0
        %762 = vmatprep.subr.mxu0 0.0
        %763 = vmatpush1.msra.mxu0 0.0
        %764 = vmatprep.subr.mxu0 0.0
        %765 = vmatpush1.msra.mxu0 0.0
        %766 = vmatprep.subr.mxu0 0.0
        %767 = vmatpush1.msra.mxu0 0.0
        %768 = vmatprep.subr.mxu0 0.0
        %769 = vmatpush1.msra.mxu0 0.0
        %770 = vmatprep.subr.mxu0 0.0
        %771 = vmatpush1.msra.mxu0 0.0
        %772 = vmatprep.subr.mxu0 0.0
        %773 = vmatpush1.msra.mxu0 0.0
        %774 = vmatprep.subr.mxu0 0.0
        %775 = vmatpush1.msra.mxu0 0.0
        %776 = vmatprep.subr.mxu0 0.0
        %777 = vmatpush1.msra.mxu0 0.0
        %778 = vmatprep.subr.mxu0 0.0
        %779 = vmatpush1.msra.mxu0 0.0
        %780 = vmatprep.subr.mxu0 0.0
        %781 = vmatpush1.msra.mxu0 0.0
        %782 = vmatprep.subr.mxu0 0.0
        %783 = vmatpush1.msra.mxu0 0.0
        %784 = vmatprep.subr.mxu0 0.0
        %785 = vmatpush1.msra.mxu0 0.0
        %786 = vmatprep.subr.mxu0 0.0
        %787 = vmatpush1.msra.mxu0 0.0
        %788 = vmatprep.subr.mxu0 0.0
        %789 = vmatpush1.msra.mxu0 0.0
        %790 = vmatprep.subr.mxu0 0.0
        %791 = vmatpush1.msra.mxu0 0.0
        %792 = vmatprep.subr.mxu0 0.0
        %793 = vmatpush1.msra.mxu0 0.0
        %794 = vmatprep.subr.mxu0 0.0
        %795 = vmatpush1.msra.mxu0 0.0
        %796 = vmatprep.subr.mxu0 0.0
        %797 = vmatpush1.msra.mxu0 0.0
        %798 = vmatprep.subr.mxu0 0.0
        %799 = vmatpush1.msra.mxu0 0.0
        %800 = vmatprep.subr.mxu0 0.0
        %801 = vmatpush1.msra.mxu0 0.0
        %802 = vmatprep.subr.mxu0 0.0
        %803 = vmatpush1.msra.mxu0 0.0
        %804 = vmatprep.subr.mxu0 0.0
        %805 = vmatpush1.msra.mxu0 0.0
        %806 = vmatprep.subr.mxu0 0.0
        %807 = vmatpush1.msra.mxu0 0.0
        %808 = vmatprep.subr.mxu0 0.0
        %809 = vmatpush1.msra.mxu0 0.0
        %810 = vmatprep.subr.mxu0 0.0
        %811 = vmatpush1.msra.mxu0 0.0
        %812 = vmatprep.subr.mxu0 0.0
        %813 = vmatpush1.msra.mxu0 0.0
        %814 = vmatprep.subr.mxu0 0.0
        %815 = vmatpush1.msra.mxu0 0.0
        %816 = vmatprep.subr.mxu0 0.0
        %817 = vmatpush1.msra.mxu0 0.0
        %818 = vmatprep.mubr.f32.mxu0 0.0
        %v819 = vand.u32 %v335, 4294901760
        %820 = vmatmul.mubr.f32.gmra.mrb[0].mxu0 %v819
        %v821 = vpop.f32.mrb[0].mxu0
        %v822 = vadd.f32 %v721, %v821
        %v823 = vpop.f32.mrb[0].mxu0
        %824 = vmatprep.mubr.f32.mxu0 0.0
        %v825 = vand.u32 %v338, 4294901760
        %826 = vmatmul.mubr.f32.gmra.mrb[0].mxu0 %v825
        %v827 = vpop.f32.mrb[0].mxu0
        %v828 = vadd.f32 %v729, %v827
        %v829 = vpop.f32.mrb[0].mxu0
        %830 = vmatprep.mubr.f32.mxu0 0.0
        %v831 = vand.u32 %v341, 4294901760
        %832 = vmatmul.mubr.f32.gmra.mrb[0].mxu0 %v831
        %v833 = vpop.f32.mrb[0].mxu0
        %v834 = vadd.f32 %v737, %v833
        %v835 = vpop.f32.mrb[0].mxu0
        %836 = vmatprep.mubr.f32.mxu0 0.0
        %v837 = vand.u32 %v344, 4294901760
        %838 = vmatmul.mubr.f32.gmra.mrb[0].mxu0 %v837
        %v839 = vpop.f32.mrb[0].mxu0
        %v840 = vadd.f32 %v745, %v839
        %v841 = vpop.f32.mrb[0].mxu0
        %842 = vdwg.mxu0
        %843 = vmatprep.subr.mxu0 0.0
        %v844 = vand.u32 %v327, 4294901760
        %845 = vmatpush1.msra.mxu0 %v844
        %846 = vmatprep.subr.mxu0 0.0
        %v847 = vand.u32 %v328, 4294901760
        %848 = vmatpush1.msra.mxu0 %v847
        %849 = vmatprep.subr.mxu0 0.0
        %850 = vmatpush1.msra.mxu0 0.0
        %851 = vmatprep.subr.mxu0 0.0
        %852 = vmatpush1.msra.mxu0 0.0
        %853 = vmatprep.subr.mxu0 0.0
        %854 = vmatpush1.msra.mxu0 0.0
        %855 = vmatprep.subr.mxu0 0.0
        %856 = vmatpush1.msra.mxu0 0.0
        %857 = vmatprep.subr.mxu0 0.0
        %858 = vmatpush1.msra.mxu0 0.0
        %859 = vmatprep.subr.mxu0 0.0
        %860 = vmatpush1.msra.mxu0 0.0
        %861 = vmatprep.subr.mxu0 0.0
        %862 = vmatpush1.msra.mxu0 0.0
        %863 = vmatprep.subr.mxu0 0.0
        %864 = vmatpush1.msra.mxu0 0.0
        %865 = vmatprep.subr.mxu0 0.0
        %866 = vmatpush1.msra.mxu0 0.0
        %867 = vmatprep.subr.mxu0 0.0
        %868 = vmatpush1.msra.mxu0 0.0
        %869 = vmatprep.subr.mxu0 0.0
        %870 = vmatpush1.msra.mxu0 0.0
        %871 = vmatprep.subr.mxu0 0.0
        %872 = vmatpush1.msra.mxu0 0.0
        %873 = vmatprep.subr.mxu0 0.0
        %874 = vmatpush1.msra.mxu0 0.0
        %875 = vmatprep.subr.mxu0 0.0
        %876 = vmatpush1.msra.mxu0 0.0
        %877 = vmatprep.subr.mxu0 0.0
        %878 = vmatpush1.msra.mxu0 0.0
        %879 = vmatprep.subr.mxu0 0.0
        %880 = vmatpush1.msra.mxu0 0.0
        %881 = vmatprep.subr.mxu0 0.0
        %882 = vmatpush1.msra.mxu0 0.0
        %883 = vmatprep.subr.mxu0 0.0
        %884 = vmatpush1.msra.mxu0 0.0
        %885 = vmatprep.subr.mxu0 0.0
        %886 = vmatpush1.msra.mxu0 0.0
        %887 = vmatprep.subr.mxu0 0.0
        %888 = vmatpush1.msra.mxu0 0.0
        %889 = vmatprep.subr.mxu0 0.0
        %890 = vmatpush1.msra.mxu0 0.0
        %891 = vmatprep.subr.mxu0 0.0
        %892 = vmatpush1.msra.mxu0 0.0
        %893 = vmatprep.subr.mxu0 0.0
        %894 = vmatpush1.msra.mxu0 0.0
        %895 = vmatprep.subr.mxu0 0.0
        %896 = vmatpush1.msra.mxu0 0.0
        %897 = vmatprep.subr.mxu0 0.0
        %898 = vmatpush1.msra.mxu0 0.0
        %899 = vmatprep.subr.mxu0 0.0
        %900 = vmatpush1.msra.mxu0 0.0
        %901 = vmatprep.subr.mxu0 0.0
        %902 = vmatpush1.msra.mxu0 0.0
        %903 = vmatprep.subr.mxu0 0.0
        %904 = vmatpush1.msra.mxu0 0.0
        %905 = vmatprep.subr.mxu0 0.0
        %906 = vmatpush1.msra.mxu0 0.0
        %907 = vmatprep.subr.mxu0 0.0
        %908 = vmatpush1.msra.mxu0 0.0
        %909 = vmatprep.mubr.f32.mxu0 0.0
        %v910 = vand.u32 %v335, 4294901760
        %911 = vmatmul.mubr.f32.gmra.mrb[0].mxu0 %v910
        %v912 = vpop.f32.mrb[0].mxu0
        %v913 = vadd.f32 %v822, %v912
        %v914 = vpop.f32.mrb[0].mxu0
        %915 = vmatprep.mubr.f32.mxu0 0.0
        %v916 = vand.u32 %v338, 4294901760
        %917 = vmatmul.mubr.f32.gmra.mrb[0].mxu0 %v916
        %v918 = vpop.f32.mrb[0].mxu0
        %v919 = vadd.f32 %v828, %v918
        %v920 = vpop.f32.mrb[0].mxu0
        %921 = vmatprep.mubr.f32.mxu0 0.0
        %v922 = vand.u32 %v341, 4294901760
        %923 = vmatmul.mubr.f32.gmra.mrb[0].mxu0 %v922
        %v924 = vpop.f32.mrb[0].mxu0
        %v925 = vadd.f32 %v834, %v924
        %v926 = vpop.f32.mrb[0].mxu0
        %927 = vmatprep.mubr.f32.mxu0 0.0
        %v928 = vand.u32 %v344, 4294901760
        %929 = vmatmul.mubr.f32.gmra.mrb[0].mxu0 %v928
        %v930 = vpop.f32.mrb[0].mxu0
        %v931 = vadd.f32 %v840, %v930
        %v932 = vpop.f32.mrb[0].mxu0
        %933 = vdwg.mxu0
        %v934 = vmul.f32 %v913, %v913
        %v935 = vmul.f32 %v919, %v919
        %v936 = vmul.f32 %v925, %v925
        %v937 = vmul.f32 %v931, %v931
        %v938 = vadd.f32 %v934, %v936
        %v939 = vadd.f32 %v935, %v937
        %v940 = vlaneseq
        %v941 = vshrl.u32 %v940, 7
        %v942 = vadd.s32 %v941, 8
        %v943 = vadd.s32 %v941, 16
        %v944 = vadd.s32 %v941, 24
        %v945 = vadd.s32 %v941, 32
        %v946 = vadd.s32 %v941, 40
        %v947 = vadd.s32 %v941, 48
        %v948 = vadd.s32 %v941, 56
        %v949 = vadd.s32 %v941, 64
        %v950 = vadd.s32 %v941, 72
        %v951 = vadd.s32 %v941, 80
        %v952 = vadd.s32 %v941, 88
        %v953 = vadd.s32 %v941, 96
        %v954 = vadd.s32 %v941, 104
        %v955 = vadd.s32 %v941, 112
        %v956 = vadd.s32 %v941, 120
        %v957 = vlaneseq
        %v958 = vand.u32 %v957, 127
        %v959 = vmul.u32 %v958, 64
        %vm960 = vcmp.ge.s32.totalorder %v941, %v959
        %vm961 = vcmp.ge.s32.totalorder %v942, %v959
        %vm962 = vcmp.ge.s32.totalorder %v943, %v959
        %vm963 = vcmp.ge.s32.totalorder %v944, %v959
        %vm964 = vcmp.ge.s32.totalorder %v945, %v959
        %vm965 = vcmp.ge.s32.totalorder %v946, %v959
        %vm966 = vcmp.ge.s32.totalorder %v947, %v959
        %vm967 = vcmp.ge.s32.totalorder %v948, %v959
        %vm968 = vcmp.ge.s32.totalorder %v949, %v959
        %vm969 = vcmp.ge.s32.totalorder %v950, %v959
        %vm970 = vcmp.ge.s32.totalorder %v951, %v959
        %vm971 = vcmp.ge.s32.totalorder %v952, %v959
        %vm972 = vcmp.ge.s32.totalorder %v953, %v959
        %vm973 = vcmp.ge.s32.totalorder %v954, %v959
        %vm974 = vcmp.ge.s32.totalorder %v955, %v959
        %vm975 = vcmp.ge.s32.totalorder %v956, %v959
        %v976 = vadd.s32 %v959, 64
        %vm977 = vcmp.lt.s32.totalorder %v941, %v976
        %vm978 = vcmp.lt.s32.totalorder %v942, %v976
        %vm979 = vcmp.lt.s32.totalorder %v943, %v976
        %vm980 = vcmp.lt.s32.totalorder %v944, %v976
        %vm981 = vcmp.lt.s32.totalorder %v945, %v976
        %vm982 = vcmp.lt.s32.totalorder %v946, %v976
        %vm983 = vcmp.lt.s32.totalorder %v947, %v976
        %vm984 = vcmp.lt.s32.totalorder %v948, %v976
        %vm985 = vcmp.lt.s32.totalorder %v949, %v976
        %vm986 = vcmp.lt.s32.totalorder %v950, %v976
        %vm987 = vcmp.lt.s32.totalorder %v951, %v976
        %vm988 = vcmp.lt.s32.totalorder %v952, %v976
        %vm989 = vcmp.lt.s32.totalorder %v953, %v976
        %vm990 = vcmp.lt.s32.totalorder %v954, %v976
        %vm991 = vcmp.lt.s32.totalorder %v955, %v976
        %vm992 = vcmp.lt.s32.totalorder %v956, %v976
        %vm993 = vmand %vm960, %vm977
        %vm994 = vmand %vm961, %vm978
        %vm995 = vmand %vm962, %vm979
        %vm996 = vmand %vm963, %vm980
        %vm997 = vmand %vm964, %vm981
        %vm998 = vmand %vm965, %vm982
        %vm999 = vmand %vm966, %vm983
        %vm1000 = vmand %vm967, %vm984
        %vm1001 = vmand %vm968, %vm985
        %vm1002 = vmand %vm969, %vm986
        %vm1003 = vmand %vm970, %vm987
        %vm1004 = vmand %vm971, %vm988
        %vm1005 = vmand %vm972, %vm989
        %vm1006 = vmand %vm973, %vm990
        %vm1007 = vmand %vm974, %vm991
        %vm1008 = vmand %vm975, %vm992
        %v1009 = vsel %vm993, 1, 0
        %v1010 = vsel %vm994, 1, 0
        %v1011 = vsel %vm995, 1, 0
        %v1012 = vsel %vm996, 1, 0
        %v1013 = vsel %vm997, 1, 0
        %v1014 = vsel %vm998, 1, 0
        %v1015 = vsel %vm999, 1, 0
        %v1016 = vsel %vm1000, 1, 0
        %v1017 = vsel %vm1001, 1, 0
        %v1018 = vsel %vm1002, 1, 0
        %v1019 = vsel %vm1003, 1, 0
        %v1020 = vsel %vm1004, 1, 0
        %v1021 = vsel %vm1005, 1, 0
        %v1022 = vsel %vm1006, 1, 0
        %v1023 = vsel %vm1007, 1, 0
        %v1024 = vsel %vm1008, 1, 0
        %v1025 = vcvt.s32.f32 %v1009
        %v1026 = vcvt.s32.f32 %v1010
        %v1027 = vcvt.s32.f32 %v1011
        %v1028 = vcvt.s32.f32 %v1012
        %v1029 = vcvt.s32.f32 %v1013
        %v1030 = vcvt.s32.f32 %v1014
        %v1031 = vcvt.s32.f32 %v1015
        %v1032 = vcvt.s32.f32 %v1016
        %v1033 = vcvt.s32.f32 %v1017
        %v1034 = vcvt.s32.f32 %v1018
        %v1035 = vcvt.s32.f32 %v1019
        %v1036 = vcvt.s32.f32 %v1020
        %v1037 = vcvt.s32.f32 %v1021
        %v1038 = vcvt.s32.f32 %v1022
        %v1039 = vcvt.s32.f32 %v1023
        %v1040 = vcvt.s32.f32 %v1024
        %1041 = vmatprep.subr.mxu0 0.0
        %v1042 = vand.u32 %v1025, 4294901760
        %1043 = vmatpush1.msra.mxu0 %v1042
        %1044 = vmatprep.subr.mxu0 0.0
        %v1045 = vand.u32 %v1026, 4294901760
        %1046 = vmatpush1.msra.mxu0 %v1045
        %1047 = vmatprep.subr.mxu0 0.0
        %v1048 = vand.u32 %v1027, 4294901760
        %1049 = vmatpush1.msra.mxu0 %v1048
        %1050 = vmatprep.subr.mxu0 0.0
        %v1051 = vand.u32 %v1028, 4294901760
        %1052 = vmatpush1.msra.mxu0 %v1051
        %1053 = vmatprep.subr.mxu0 0.0
        %v1054 = vand.u32 %v1029, 4294901760
        %1055 = vmatpush1.msra.mxu0 %v1054
        %1056 = vmatprep.subr.mxu0 0.0
        %v1057 = vand.u32 %v1030, 4294901760
        %1058 = vmatpush1.msra.mxu0 %v1057
        %1059 = vmatprep.subr.mxu0 0.0
        %v1060 = vand.u32 %v1031, 4294901760
        %1061 = vmatpush1.msra.mxu0 %v1060
        %1062 = vmatprep.subr.mxu0 0.0
        %v1063 = vand.u32 %v1032, 4294901760
        %1064 = vmatpush1.msra.mxu0 %v1063
        %1065 = vmatprep.subr.mxu0 0.0
        %v1066 = vand.u32 %v1033, 4294901760
        %1067 = vmatpush1.msra.mxu0 %v1066
        %1068 = vmatprep.subr.mxu0 0.0
        %v1069 = vand.u32 %v1034, 4294901760
        %1070 = vmatpush1.msra.mxu0 %v1069
        %1071 = vmatprep.subr.mxu0 0.0
        %v1072 = vand.u32 %v1035, 4294901760
        %1073 = vmatpush1.msra.mxu0 %v1072
        %1074 = vmatprep.subr.mxu0 0.0
        %v1075 = vand.u32 %v1036, 4294901760
        %1076 = vmatpush1.msra.mxu0 %v1075
        %1077 = vmatprep.subr.mxu0 0.0
        %v1078 = vand.u32 %v1037, 4294901760
        %1079 = vmatpush1.msra.mxu0 %v1078
        %1080 = vmatprep.subr.mxu0 0.0
        %v1081 = vand.u32 %v1038, 4294901760
        %1082 = vmatpush1.msra.mxu0 %v1081
        %1083 = vmatprep.subr.mxu0 0.0
        %v1084 = vand.u32 %v1039, 4294901760
        %1085 = vmatpush1.msra.mxu0 %v1084
        %1086 = vmatprep.subr.mxu0 0.0
        %v1087 = vand.u32 %v1040, 4294901760
        %1088 = vmatpush1.msra.mxu0 %v1087
        %1089 = vmatprep.subr.mxu0 0.0
        %1090 = vmatpush1.msra.mxu0 0.0
        %1091 = vmatprep.subr.mxu0 0.0
        %1092 = vmatpush1.msra.mxu0 0.0
        %1093 = vmatprep.subr.mxu0 0.0
        %1094 = vmatpush1.msra.mxu0 0.0
        %1095 = vmatprep.subr.mxu0 0.0
        %1096 = vmatpush1.msra.mxu0 0.0
        %1097 = vmatprep.subr.mxu0 0.0
        %1098 = vmatpush1.msra.mxu0 0.0
        %1099 = vmatprep.subr.mxu0 0.0
        %1100 = vmatpush1.msra.mxu0 0.0
        %1101 = vmatprep.subr.mxu0 0.0
        %1102 = vmatpush1.msra.mxu0 0.0
        %1103 = vmatprep.subr.mxu0 0.0
        %1104 = vmatpush1.msra.mxu0 0.0
        %1105 = vmatprep.subr.mxu0 0.0
        %1106 = vmatpush1.msra.mxu0 0.0
        %1107 = vmatprep.subr.mxu0 0.0
        %1108 = vmatpush1.msra.mxu0 0.0
        %1109 = vmatprep.subr.mxu0 0.0
        %1110 = vmatpush1.msra.mxu0 0.0
        %1111 = vmatprep.subr.mxu0 0.0
        %1112 = vmatpush1.msra.mxu0 0.0
        %1113 = vmatprep.subr.mxu0 0.0
        %1114 = vmatpush1.msra.mxu0 0.0
        %1115 = vmatprep.subr.mxu0 0.0
        %1116 = vmatpush1.msra.mxu0 0.0
        %1117 = vmatprep.subr.mxu0 0.0
        %1118 = vmatpush1.msra.mxu0 0.0
        %1119 = vmatprep.subr.mxu0 0.0
        %1120 = vmatpush1.msra.mxu0 0.0
        %1121 = vmatprep.mubr.f32.mxu0 0.0
        %v1122 = vand.u32 %v938, 4294901760
        %v1123 = vsub.f32 %v938, %v1122
        %v1124 = vand.u32 %v1123, 4294901760
        %v1125 = vsub.f32 %v1123, %v1124
        %v1126 = vand.u32 %v1125, 4294901760
        %1127 = vmatmul.mubr.f32.gmra.mrb[0].mxu0 %v1126
        %v1128 = vpop.f32.mrb[0].mxu0
        %v1129 = vadd.f32 0.0, %v1128
        %v1130 = vpop.f32.mrb[0].mxu0
        %1131 = vmatprep.mubr.f32.mxu0 0.0
        %v1132 = vand.u32 %v939, 4294901760
        %v1133 = vsub.f32 %v939, %v1132
        %v1134 = vand.u32 %v1133, 4294901760
        %v1135 = vsub.f32 %v1133, %v1134
        %v1136 = vand.u32 %v1135, 4294901760
        %1137 = vmatmul.mubr.f32.gmra.mrb[0].mxu0 %v1136
        %v1138 = vpop.f32.mrb[0].mxu0
        %v1139 = vadd.f32 0.0, %v1138
        %v1140 = vpop.f32.mrb[0].mxu0
        %1141 = vdwg.mxu0
        %1142 = vmatprep.subr.mxu0 0.0
        %v1143 = vand.u32 %v1025, 4294901760
        %v1144 = vsub.f32 %v1025, %v1143
        %v1145 = vand.u32 %v1144, 4294901760
        %v1146 = vsub.f32 %v1144, %v1145
        %v1147 = vand.u32 %v1146, 4294901760
        %1148 = vmatpush1.msra.mxu0 %v1147
        %1149 = vmatprep.subr.mxu0 0.0
        %v1150 = vand.u32 %v1026, 4294901760
        %v1151 = vsub.f32 %v1026, %v1150
        %v1152 = vand.u32 %v1151, 4294901760
        %v1153 = vsub.f32 %v1151, %v1152
        %v1154 = vand.u32 %v1153, 4294901760
        %1155 = vmatpush1.msra.mxu0 %v1154
        %1156 = vmatprep.subr.mxu0 0.0
        %v1157 = vand.u32 %v1027, 4294901760
        %v1158 = vsub.f32 %v1027, %v1157
        %v1159 = vand.u32 %v1158, 4294901760
        %v1160 = vsub.f32 %v1158, %v1159
        %v1161 = vand.u32 %v1160, 4294901760
        %1162 = vmatpush1.msra.mxu0 %v1161
        %1163 = vmatprep.subr.mxu0 0.0
        %v1164 = vand.u32 %v1028, 4294901760
        %v1165 = vsub.f32 %v1028, %v1164
        %v1166 = vand.u32 %v1165, 4294901760
        %v1167 = vsub.f32 %v1165, %v1166
        %v1168 = vand.u32 %v1167, 4294901760
        %1169 = vmatpush1.msra.mxu0 %v1168
        %1170 = vmatprep.subr.mxu0 0.0
        %v1171 = vand.u32 %v1029, 4294901760
        %v1172 = vsub.f32 %v1029, %v1171
        %v1173 = vand.u32 %v1172, 4294901760
        %v1174 = vsub.f32 %v1172, %v1173
        %v1175 = vand.u32 %v1174, 4294901760
        %1176 = vmatpush1.msra.mxu0 %v1175
        %1177 = vmatprep.subr.mxu0 0.0
        %v1178 = vand.u32 %v1030, 4294901760
        %v1179 = vsub.f32 %v1030, %v1178
        %v1180 = vand.u32 %v1179, 4294901760
        %v1181 = vsub.f32 %v1179, %v1180
        %v1182 = vand.u32 %v1181, 4294901760
        %1183 = vmatpush1.msra.mxu0 %v1182
        %1184 = vmatprep.subr.mxu0 0.0
        %v1185 = vand.u32 %v1031, 4294901760
        %v1186 = vsub.f32 %v1031, %v1185
        %v1187 = vand.u32 %v1186, 4294901760
        %v1188 = vsub.f32 %v1186, %v1187
        %v1189 = vand.u32 %v1188, 4294901760
        %1190 = vmatpush1.msra.mxu0 %v1189
        %1191 = vmatprep.subr.mxu0 0.0
        %v1192 = vand.u32 %v1032, 4294901760
        %v1193 = vsub.f32 %v1032, %v1192
        %v1194 = vand.u32 %v1193, 4294901760
        %v1195 = vsub.f32 %v1193, %v1194
        %v1196 = vand.u32 %v1195, 4294901760
        %1197 = vmatpush1.msra.mxu0 %v1196
        %1198 = vmatprep.subr.mxu0 0.0
        %v1199 = vand.u32 %v1033, 4294901760
        %v1200 = vsub.f32 %v1033, %v1199
        %v1201 = vand.u32 %v1200, 4294901760
        %v1202 = vsub.f32 %v1200, %v1201
        %v1203 = vand.u32 %v1202, 4294901760
        %1204 = vmatpush1.msra.mxu0 %v1203
        %1205 = vmatprep.subr.mxu0 0.0
        %v1206 = vand.u32 %v1034, 4294901760
        %v1207 = vsub.f32 %v1034, %v1206
        %v1208 = vand.u32 %v1207, 4294901760
        %v1209 = vsub.f32 %v1207, %v1208
        %v1210 = vand.u32 %v1209, 4294901760
        %1211 = vmatpush1.msra.mxu0 %v1210
        %1212 = vmatprep.subr.mxu0 0.0
        %v1213 = vand.u32 %v1035, 4294901760
        %v1214 = vsub.f32 %v1035, %v1213
        %v1215 = vand.u32 %v1214, 4294901760
        %v1216 = vsub.f32 %v1214, %v1215
        %v1217 = vand.u32 %v1216, 4294901760
        %1218 = vmatpush1.msra.mxu0 %v1217
        %1219 = vmatprep.subr.mxu0 0.0
        %v1220 = vand.u32 %v1036, 4294901760
        %v1221 = vsub.f32 %v1036, %v1220
        %v1222 = vand.u32 %v1221, 4294901760
        %v1223 = vsub.f32 %v1221, %v1222
        %v1224 = vand.u32 %v1223, 4294901760
        %1225 = vmatpush1.msra.mxu0 %v1224
        %1226 = vmatprep.subr.mxu0 0.0
        %v1227 = vand.u32 %v1037, 4294901760
        %v1228 = vsub.f32 %v1037, %v1227
        %v1229 = vand.u32 %v1228, 4294901760
        %v1230 = vsub.f32 %v1228, %v1229
        %v1231 = vand.u32 %v1230, 4294901760
        %1232 = vmatpush1.msra.mxu0 %v1231
        %1233 = vmatprep.subr.mxu0 0.0
        %v1234 = vand.u32 %v1038, 4294901760
        %v1235 = vsub.f32 %v1038, %v1234
        %v1236 = vand.u32 %v1235, 4294901760
        %v1237 = vsub.f32 %v1235, %v1236
        %v1238 = vand.u32 %v1237, 4294901760
        %1239 = vmatpush1.msra.mxu0 %v1238
        %1240 = vmatprep.subr.mxu0 0.0
        %v1241 = vand.u32 %v1039, 4294901760
        %v1242 = vsub.f32 %v1039, %v1241
        %v1243 = vand.u32 %v1242, 4294901760
        %v1244 = vsub.f32 %v1242, %v1243
        %v1245 = vand.u32 %v1244, 4294901760
        %1246 = vmatpush1.msra.mxu0 %v1245
        %1247 = vmatprep.subr.mxu0 0.0
        %v1248 = vand.u32 %v1040, 4294901760
        %v1249 = vsub.f32 %v1040, %v1248
        %v1250 = vand.u32 %v1249, 4294901760
        %v1251 = vsub.f32 %v1249, %v1250
        %v1252 = vand.u32 %v1251, 4294901760
        %1253 = vmatpush1.msra.mxu0 %v1252
        %1254 = vmatprep.subr.mxu0 0.0
        %1255 = vmatpush1.msra.mxu0 0.0
        %1256 = vmatprep.subr.mxu0 0.0
        %1257 = vmatpush1.msra.mxu0 0.0
        %1258 = vmatprep.subr.mxu0 0.0
        %1259 = vmatpush1.msra.mxu0 0.0
        %1260 = vmatprep.subr.mxu0 0.0
        %1261 = vmatpush1.msra.mxu0 0.0
        %1262 = vmatprep.subr.mxu0 0.0
        %1263 = vmatpush1.msra.mxu0 0.0
        %1264 = vmatprep.subr.mxu0 0.0
        %1265 = vmatpush1.msra.mxu0 0.0
        %1266 = vmatprep.subr.mxu0 0.0
        %1267 = vmatpush1.msra.mxu0 0.0
        %1268 = vmatprep.subr.mxu0 0.0
        %1269 = vmatpush1.msra.mxu0 0.0
        %1270 = vmatprep.subr.mxu0 0.0
        %1271 = vmatpush1.msra.mxu0 0.0
        %1272 = vmatprep.subr.mxu0 0.0
        %1273 = vmatpush1.msra.mxu0 0.0
        %1274 = vmatprep.subr.mxu0 0.0
        %1275 = vmatpush1.msra.mxu0 0.0
        %1276 = vmatprep.subr.mxu0 0.0
        %1277 = vmatpush1.msra.mxu0 0.0
        %1278 = vmatprep.subr.mxu0 0.0
        %1279 = vmatpush1.msra.mxu0 0.0
        %1280 = vmatprep.subr.mxu0 0.0
        %1281 = vmatpush1.msra.mxu0 0.0
        %1282 = vmatprep.subr.mxu0 0.0
        %1283 = vmatpush1.msra.mxu0 0.0
        %1284 = vmatprep.subr.mxu0 0.0
        %1285 = vmatpush1.msra.mxu0 0.0
        %1286 = vmatprep.mubr.f32.mxu0 0.0
        %v1287 = vand.u32 %v938, 4294901760
        %1288 = vmatmul.mubr.f32.gmra.mrb[0].mxu0 %v1287
        %v1289 = vpop.f32.mrb[0].mxu0
        %v1290 = vadd.f32 %v1129, %v1289
        %v1291 = vpop.f32.mrb[0].mxu0
        %1292 = vmatprep.mubr.f32.mxu0 0.0
        %v1293 = vand.u32 %v939, 4294901760
        %1294 = vmatmul.mubr.f32.gmra.mrb[0].mxu0 %v1293
        %v1295 = vpop.f32.mrb[0].mxu0
        %v1296 = vadd.f32 %v1139, %v1295
        %v1297 = vpop.f32.mrb[0].mxu0
        %1298 = vdwg.mxu0
        %1299 = vmatprep.subr.mxu0 0.0
        %v1300 = vand.u32 %v1025, 4294901760
        %v1301 = vsub.f32 %v1025, %v1300
        %1302 = vmatpush1.msra.mxu0 %v1301
        %1303 = vmatprep.subr.mxu0 0.0
        %v1304 = vand.u32 %v1026, 4294901760
        %v1305 = vsub.f32 %v1026, %v1304
        %1306 = vmatpush1.msra.mxu0 %v1305
        %1307 = vmatprep.subr.mxu0 0.0
        %v1308 = vand.u32 %v1027, 4294901760
        %v1309 = vsub.f32 %v1027, %v1308
        %1310 = vmatpush1.msra.mxu0 %v1309
        %1311 = vmatprep.subr.mxu0 0.0
        %v1312 = vand.u32 %v1028, 4294901760
        %v1313 = vsub.f32 %v1028, %v1312
        %1314 = vmatpush1.msra.mxu0 %v1313
        %1315 = vmatprep.subr.mxu0 0.0
        %v1316 = vand.u32 %v1029, 4294901760
        %v1317 = vsub.f32 %v1029, %v1316
        %1318 = vmatpush1.msra.mxu0 %v1317
        %1319 = vmatprep.subr.mxu0 0.0
        %v1320 = vand.u32 %v1030, 4294901760
        %v1321 = vsub.f32 %v1030, %v1320
        %1322 = vmatpush1.msra.mxu0 %v1321
        %1323 = vmatprep.subr.mxu0 0.0
        %v1324 = vand.u32 %v1031, 4294901760
        %v1325 = vsub.f32 %v1031, %v1324
        %1326 = vmatpush1.msra.mxu0 %v1325
        %1327 = vmatprep.subr.mxu0 0.0
        %v1328 = vand.u32 %v1032, 4294901760
        %v1329 = vsub.f32 %v1032, %v1328
        %1330 = vmatpush1.msra.mxu0 %v1329
        %1331 = vmatprep.subr.mxu0 0.0
        %v1332 = vand.u32 %v1033, 4294901760
        %v1333 = vsub.f32 %v1033, %v1332
        %1334 = vmatpush1.msra.mxu0 %v1333
        %1335 = vmatprep.subr.mxu0 0.0
        %v1336 = vand.u32 %v1034, 4294901760
        %v1337 = vsub.f32 %v1034, %v1336
        %1338 = vmatpush1.msra.mxu0 %v1337
        %1339 = vmatprep.subr.mxu0 0.0
        %v1340 = vand.u32 %v1035, 4294901760
        %v1341 = vsub.f32 %v1035, %v1340
        %1342 = vmatpush1.msra.mxu0 %v1341
        %1343 = vmatprep.subr.mxu0 0.0
        %v1344 = vand.u32 %v1036, 4294901760
        %v1345 = vsub.f32 %v1036, %v1344
        %1346 = vmatpush1.msra.mxu0 %v1345
        %1347 = vmatprep.subr.mxu0 0.0
        %v1348 = vand.u32 %v1037, 4294901760
        %v1349 = vsub.f32 %v1037, %v1348
        %1350 = vmatpush1.msra.mxu0 %v1349
        %1351 = vmatprep.subr.mxu0 0.0
        %v1352 = vand.u32 %v1038, 4294901760
        %v1353 = vsub.f32 %v1038, %v1352
        %1354 = vmatpush1.msra.mxu0 %v1353
        %1355 = vmatprep.subr.mxu0 0.0
        %v1356 = vand.u32 %v1039, 4294901760
        %v1357 = vsub.f32 %v1039, %v1356
        %1358 = vmatpush1.msra.mxu0 %v1357
        %1359 = vmatprep.subr.mxu0 0.0
        %v1360 = vand.u32 %v1040, 4294901760
        %v1361 = vsub.f32 %v1040, %v1360
        %1362 = vmatpush1.msra.mxu0 %v1361
        %1363 = vmatprep.subr.mxu0 0.0
        %1364 = vmatpush1.msra.mxu0 0.0
        %1365 = vmatprep.subr.mxu0 0.0
        %1366 = vmatpush1.msra.mxu0 0.0
        %1367 = vmatprep.subr.mxu0 0.0
        %1368 = vmatpush1.msra.mxu0 0.0
        %1369 = vmatprep.subr.mxu0 0.0
        %1370 = vmatpush1.msra.mxu0 0.0
        %1371 = vmatprep.subr.mxu0 0.0
        %1372 = vmatpush1.msra.mxu0 0.0
        %1373 = vmatprep.subr.mxu0 0.0
        %1374 = vmatpush1.msra.mxu0 0.0
        %1375 = vmatprep.subr.mxu0 0.0
        %1376 = vmatpush1.msra.mxu0 0.0
        %1377 = vmatprep.subr.mxu0 0.0
        %1378 = vmatpush1.msra.mxu0 0.0
        %1379 = vmatprep.subr.mxu0 0.0
        %1380 = vmatpush1.msra.mxu0 0.0
        %1381 = vmatprep.subr.mxu0 0.0
        %1382 = vmatpush1.msra.mxu0 0.0
        %1383 = vmatprep.subr.mxu0 0.0
        %1384 = vmatpush1.msra.mxu0 0.0
        %1385 = vmatprep.subr.mxu0 0.0
        %1386 = vmatpush1.msra.mxu0 0.0
        %1387 = vmatprep.subr.mxu0 0.0
        %1388 = vmatpush1.msra.mxu0 0.0
        %1389 = vmatprep.subr.mxu0 0.0
        %1390 = vmatpush1.msra.mxu0 0.0
        %1391 = vmatprep.subr.mxu0 0.0
        %1392 = vmatpush1.msra.mxu0 0.0
        %1393 = vmatprep.subr.mxu0 0.0
        %1394 = vmatpush1.msra.mxu0 0.0
        %1395 = vmatprep.mubr.f32.mxu0 0.0
        %v1396 = vand.u32 %v938, 4294901760
        %v1397 = vsub.f32 %v938, %v1396
        %1398 = vmatmul.mubr.f32.gmra.mrb[0].mxu0 %v1397
        %v1399 = vpop.f32.mrb[0].mxu0
        %v1400 = vadd.f32 %v1290, %v1399
        %v1401 = vpop.f32.mrb[0].mxu0
        %1402 = vmatprep.mubr.f32.mxu0 0.0
        %v1403 = vand.u32 %v939, 4294901760
        %v1404 = vsub.f32 %v939, %v1403
        %1405 = vmatmul.mubr.f32.gmra.mrb[0].mxu0 %v1404
        %v1406 = vpop.f32.mrb[0].mxu0
        %v1407 = vadd.f32 %v1296, %v1406
        %v1408 = vpop.f32.mrb[0].mxu0
        %1409 = vdwg.mxu0
        %1410 = vmatprep.subr.mxu0 0.0
        %v1411 = vand.u32 %v1025, 4294901760
        %1412 = vmatpush1.msra.mxu0 %v1411
        %1413 = vmatprep.subr.mxu0 0.0
        %v1414 = vand.u32 %v1026, 4294901760
        %1415 = vmatpush1.msra.mxu0 %v1414
        %1416 = vmatprep.subr.mxu0 0.0
        %v1417 = vand.u32 %v1027, 4294901760
        %1418 = vmatpush1.msra.mxu0 %v1417
        %1419 = vmatprep.subr.mxu0 0.0
        %v1420 = vand.u32 %v1028, 4294901760
        %1421 = vmatpush1.msra.mxu0 %v1420
        %1422 = vmatprep.subr.mxu0 0.0
        %v1423 = vand.u32 %v1029, 4294901760
        %1424 = vmatpush1.msra.mxu0 %v1423
        %1425 = vmatprep.subr.mxu0 0.0
        %v1426 = vand.u32 %v1030, 4294901760
        %1427 = vmatpush1.msra.mxu0 %v1426
        %1428 = vmatprep.subr.mxu0 0.0
        %v1429 = vand.u32 %v1031, 4294901760
        %1430 = vmatpush1.msra.mxu0 %v1429
        %1431 = vmatprep.subr.mxu0 0.0
        %v1432 = vand.u32 %v1032, 4294901760
        %1433 = vmatpush1.msra.mxu0 %v1432
        %1434 = vmatprep.subr.mxu0 0.0
        %v1435 = vand.u32 %v1033, 4294901760
        %1436 = vmatpush1.msra.mxu0 %v1435
        %1437 = vmatprep.subr.mxu0 0.0
        %v1438 = vand.u32 %v1034, 4294901760
        %1439 = vmatpush1.msra.mxu0 %v1438
        %1440 = vmatprep.subr.mxu0 0.0
        %v1441 = vand.u32 %v1035, 4294901760
        %1442 = vmatpush1.msra.mxu0 %v1441
        %1443 = vmatprep.subr.mxu0 0.0
        %v1444 = vand.u32 %v1036, 4294901760
        %1445 = vmatpush1.msra.mxu0 %v1444
        %1446 = vmatprep.subr.mxu0 0.0
        %v1447 = vand.u32 %v1037, 4294901760
        %1448 = vmatpush1.msra.mxu0 %v1447
        %1449 = vmatprep.subr.mxu0 0.0
        %v1450 = vand.u32 %v1038, 4294901760
        %1451 = vmatpush1.msra.mxu0 %v1450
        %1452 = vmatprep.subr.mxu0 0.0
        %v1453 = vand.u32 %v1039, 4294901760
        %1454 = vmatpush1.msra.mxu0 %v1453
        %1455 = vmatprep.subr.mxu0 0.0
        %v1456 = vand.u32 %v1040, 4294901760
        %1457 = vmatpush1.msra.mxu0 %v1456
        %1458 = vmatprep.subr.mxu0 0.0
        %1459 = vmatpush1.msra.mxu0 0.0
        %1460 = vmatprep.subr.mxu0 0.0
        %1461 = vmatpush1.msra.mxu0 0.0
        %1462 = vmatprep.subr.mxu0 0.0
        %1463 = vmatpush1.msra.mxu0 0.0
        %1464 = vmatprep.subr.mxu0 0.0
        %1465 = vmatpush1.msra.mxu0 0.0
        %1466 = vmatprep.subr.mxu0 0.0
        %1467 = vmatpush1.msra.mxu0 0.0
        %1468 = vmatprep.subr.mxu0 0.0
        %1469 = vmatpush1.msra.mxu0 0.0
        %1470 = vmatprep.subr.mxu0 0.0
        %1471 = vmatpush1.msra.mxu0 0.0
        %1472 = vmatprep.subr.mxu0 0.0
        %1473 = vmatpush1.msra.mxu0 0.0
        %1474 = vmatprep.subr.mxu0 0.0
        %1475 = vmatpush1.msra.mxu0 0.0
        %1476 = vmatprep.subr.mxu0 0.0
        %1477 = vmatpush1.msra.mxu0 0.0
        %1478 = vmatprep.subr.mxu0 0.0
        %1479 = vmatpush1.msra.mxu0 0.0
        %1480 = vmatprep.subr.mxu0 0.0
        %1481 = vmatpush1.msra.mxu0 0.0
        %1482 = vmatprep.subr.mxu0 0.0
        %1483 = vmatpush1.msra.mxu0 0.0
        %1484 = vmatprep.subr.mxu0 0.0
        %1485 = vmatpush1.msra.mxu0 0.0
        %1486 = vmatprep.subr.mxu0 0.0
        %1487 = vmatpush1.msra.mxu0 0.0
        %1488 = vmatprep.subr.mxu0 0.0
        %1489 = vmatpush1.msra.mxu0 0.0
        %1490 = vmatprep.mubr.f32.mxu0 0.0
        %v1491 = vand.u32 %v938, 4294901760
        %v1492 = vsub.f32 %v938, %v1491
        %v1493 = vand.u32 %v1492, 4294901760
        %1494 = vmatmul.mubr.f32.gmra.mrb[0].mxu0 %v1493
        %v1495 = vpop.f32.mrb[0].mxu0
        %v1496 = vadd.f32 %v1400, %v1495
        %v1497 = vpop.f32.mrb[0].mxu0
        %1498 = vmatprep.mubr.f32.mxu0 0.0
        %v1499 = vand.u32 %v939, 4294901760
        %v1500 = vsub.f32 %v939, %v1499
        %v1501 = vand.u32 %v1500, 4294901760
        %1502 = vmatmul.mubr.f32.gmra.mrb[0].mxu0 %v1501
        %v1503 = vpop.f32.mrb[0].mxu0
        %v1504 = vadd.f32 %v1407, %v1503
        %v1505 = vpop.f32.mrb[0].mxu0
        %1506 = vdwg.mxu0
        %1507 = vmatprep.subr.mxu0 0.0
        %v1508 = vand.u32 %v1025, 4294901760
        %v1509 = vsub.f32 %v1025, %v1508
        %v1510 = vand.u32 %v1509, 4294901760
        %1511 = vmatpush1.msra.mxu0 %v1510
        %1512 = vmatprep.subr.mxu0 0.0
        %v1513 = vand.u32 %v1026, 4294901760
        %v1514 = vsub.f32 %v1026, %v1513
        %v1515 = vand.u32 %v1514, 4294901760
        %1516 = vmatpush1.msra.mxu0 %v1515
        %1517 = vmatprep.subr.mxu0 0.0
        %v1518 = vand.u32 %v1027, 4294901760
        %v1519 = vsub.f32 %v1027, %v1518
        %v1520 = vand.u32 %v1519, 4294901760
        %1521 = vmatpush1.msra.mxu0 %v1520
        %1522 = vmatprep.subr.mxu0 0.0
        %v1523 = vand.u32 %v1028, 4294901760
        %v1524 = vsub.f32 %v1028, %v1523
        %v1525 = vand.u32 %v1524, 4294901760
        %1526 = vmatpush1.msra.mxu0 %v1525
        %1527 = vmatprep.subr.mxu0 0.0
        %v1528 = vand.u32 %v1029, 4294901760
        %v1529 = vsub.f32 %v1029, %v1528
        %v1530 = vand.u32 %v1529, 4294901760
        %1531 = vmatpush1.msra.mxu0 %v1530
        %1532 = vmatprep.subr.mxu0 0.0
        %v1533 = vand.u32 %v1030, 4294901760
        %v1534 = vsub.f32 %v1030, %v1533
        %v1535 = vand.u32 %v1534, 4294901760
        %1536 = vmatpush1.msra.mxu0 %v1535
        %1537 = vmatprep.subr.mxu0 0.0
        %v1538 = vand.u32 %v1031, 4294901760
        %v1539 = vsub.f32 %v1031, %v1538
        %v1540 = vand.u32 %v1539, 4294901760
        %1541 = vmatpush1.msra.mxu0 %v1540
        %1542 = vmatprep.subr.mxu0 0.0
        %v1543 = vand.u32 %v1032, 4294901760
        %v1544 = vsub.f32 %v1032, %v1543
        %v1545 = vand.u32 %v1544, 4294901760
        %1546 = vmatpush1.msra.mxu0 %v1545
        %1547 = vmatprep.subr.mxu0 0.0
        %v1548 = vand.u32 %v1033, 4294901760
        %v1549 = vsub.f32 %v1033, %v1548
        %v1550 = vand.u32 %v1549, 4294901760
        %1551 = vmatpush1.msra.mxu0 %v1550
        %1552 = vmatprep.subr.mxu0 0.0
        %v1553 = vand.u32 %v1034, 4294901760
        %v1554 = vsub.f32 %v1034, %v1553
        %v1555 = vand.u32 %v1554, 4294901760
        %1556 = vmatpush1.msra.mxu0 %v1555
        %1557 = vmatprep.subr.mxu0 0.0
        %v1558 = vand.u32 %v1035, 4294901760
        %v1559 = vsub.f32 %v1035, %v1558
        %v1560 = vand.u32 %v1559, 4294901760
        %1561 = vmatpush1.msra.mxu0 %v1560
        %1562 = vmatprep.subr.mxu0 0.0
        %v1563 = vand.u32 %v1036, 4294901760
        %v1564 = vsub.f32 %v1036, %v1563
        %v1565 = vand.u32 %v1564, 4294901760
        %1566 = vmatpush1.msra.mxu0 %v1565
        %1567 = vmatprep.subr.mxu0 0.0
        %v1568 = vand.u32 %v1037, 4294901760
        %v1569 = vsub.f32 %v1037, %v1568
        %v1570 = vand.u32 %v1569, 4294901760
        %1571 = vmatpush1.msra.mxu0 %v1570
        %1572 = vmatprep.subr.mxu0 0.0
        %v1573 = vand.u32 %v1038, 4294901760
        %v1574 = vsub.f32 %v1038, %v1573
        %v1575 = vand.u32 %v1574, 4294901760
        %1576 = vmatpush1.msra.mxu0 %v1575
        %1577 = vmatprep.subr.mxu0 0.0
        %v1578 = vand.u32 %v1039, 4294901760
        %v1579 = vsub.f32 %v1039, %v1578
        %v1580 = vand.u32 %v1579, 4294901760
        %1581 = vmatpush1.msra.mxu0 %v1580
        %1582 = vmatprep.subr.mxu0 0.0
        %v1583 = vand.u32 %v1040, 4294901760
        %v1584 = vsub.f32 %v1040, %v1583
        %v1585 = vand.u32 %v1584, 4294901760
        %1586 = vmatpush1.msra.mxu0 %v1585
        %1587 = vmatprep.subr.mxu0 0.0
        %1588 = vmatpush1.msra.mxu0 0.0
        %1589 = vmatprep.subr.mxu0 0.0
        %1590 = vmatpush1.msra.mxu0 0.0
        %1591 = vmatprep.subr.mxu0 0.0
        %1592 = vmatpush1.msra.mxu0 0.0
        %1593 = vmatprep.subr.mxu0 0.0
        %1594 = vmatpush1.msra.mxu0 0.0
        %1595 = vmatprep.subr.mxu0 0.0
        %1596 = vmatpush1.msra.mxu0 0.0
        %1597 = vmatprep.subr.mxu0 0.0
        %1598 = vmatpush1.msra.mxu0 0.0
        %1599 = vmatprep.subr.mxu0 0.0
        %1600 = vmatpush1.msra.mxu0 0.0
        %1601 = vmatprep.subr.mxu0 0.0
        %1602 = vmatpush1.msra.mxu0 0.0
        %1603 = vmatprep.subr.mxu0 0.0
        %1604 = vmatpush1.msra.mxu0 0.0
        %1605 = vmatprep.subr.mxu0 0.0
        %1606 = vmatpush1.msra.mxu0 0.0
        %1607 = vmatprep.subr.mxu0 0.0
        %1608 = vmatpush1.msra.mxu0 0.0
        %1609 = vmatprep.subr.mxu0 0.0
        %1610 = vmatpush1.msra.mxu0 0.0
        %1611 = vmatprep.subr.mxu0 0.0
        %1612 = vmatpush1.msra.mxu0 0.0
        %1613 = vmatprep.subr.mxu0 0.0
        %1614 = vmatpush1.msra.mxu0 0.0
        %1615 = vmatprep.subr.mxu0 0.0
        %1616 = vmatpush1.msra.mxu0 0.0
        %1617 = vmatprep.subr.mxu0 0.0
        %1618 = vmatpush1.msra.mxu0 0.0
        %1619 = vmatprep.mubr.f32.mxu0 0.0
        %v1620 = vand.u32 %v938, 4294901760
        %1621 = vmatmul.mubr.f32.gmra.mrb[0].mxu0 %v1620
        %v1622 = vpop.f32.mrb[0].mxu0
        %v1623 = vadd.f32 %v1496, %v1622
        %v1624 = vpop.f32.mrb[0].mxu0
        %1625 = vmatprep.mubr.f32.mxu0 0.0
        %v1626 = vand.u32 %v939, 4294901760
        %1627 = vmatmul.mubr.f32.gmra.mrb[0].mxu0 %v1626
        %v1628 = vpop.f32.mrb[0].mxu0
        %v1629 = vadd.f32 %v1504, %v1628
        %v1630 = vpop.f32.mrb[0].mxu0
        %1631 = vdwg.mxu0
        %1632 = vmatprep.subr.mxu0 0.0
        %v1633 = vand.u32 %v1025, 4294901760
        %1634 = vmatpush1.msra.mxu0 %v1633
        %1635 = vmatprep.subr.mxu0 0.0
        %v1636 = vand.u32 %v1026, 4294901760
        %1637 = vmatpush1.msra.mxu0 %v1636
        %1638 = vmatprep.subr.mxu0 0.0
        %v1639 = vand.u32 %v1027, 4294901760
        %1640 = vmatpush1.msra.mxu0 %v1639
        %1641 = vmatprep.subr.mxu0 0.0
        %v1642 = vand.u32 %v1028, 4294901760
        %1643 = vmatpush1.msra.mxu0 %v1642
        %1644 = vmatprep.subr.mxu0 0.0
        %v1645 = vand.u32 %v1029, 4294901760
        %1646 = vmatpush1.msra.mxu0 %v1645
        %1647 = vmatprep.subr.mxu0 0.0
        %v1648 = vand.u32 %v1030, 4294901760
        %1649 = vmatpush1.msra.mxu0 %v1648
        %1650 = vmatprep.subr.mxu0 0.0
        %v1651 = vand.u32 %v1031, 4294901760
        %1652 = vmatpush1.msra.mxu0 %v1651
        %1653 = vmatprep.subr.mxu0 0.0
        %v1654 = vand.u32 %v1032, 4294901760
        %1655 = vmatpush1.msra.mxu0 %v1654
        %1656 = vmatprep.subr.mxu0 0.0
        %v1657 = vand.u32 %v1033, 4294901760
        %1658 = vmatpush1.msra.mxu0 %v1657
        %1659 = vmatprep.subr.mxu0 0.0
        %v1660 = vand.u32 %v1034, 4294901760
        %1661 = vmatpush1.msra.mxu0 %v1660
        %1662 = vmatprep.subr.mxu0 0.0
        %v1663 = vand.u32 %v1035, 4294901760
        %1664 = vmatpush1.msra.mxu0 %v1663
        %1665 = vmatprep.subr.mxu0 0.0
        %v1666 = vand.u32 %v1036, 4294901760
        %1667 = vmatpush1.msra.mxu0 %v1666
        %1668 = vmatprep.subr.mxu0 0.0
        %v1669 = vand.u32 %v1037, 4294901760
        %1670 = vmatpush1.msra.mxu0 %v1669
        %1671 = vmatprep.subr.mxu0 0.0
        %v1672 = vand.u32 %v1038, 4294901760
        %1673 = vmatpush1.msra.mxu0 %v1672
        %1674 = vmatprep.subr.mxu0 0.0
        %v1675 = vand.u32 %v1039, 4294901760
        %1676 = vmatpush1.msra.mxu0 %v1675
        %1677 = vmatprep.subr.mxu0 0.0
        %v1678 = vand.u32 %v1040, 4294901760
        %1679 = vmatpush1.msra.mxu0 %v1678
        %1680 = vmatprep.subr.mxu0 0.0
        %1681 = vmatpush1.msra.mxu0 0.0
        %1682 = vmatprep.subr.mxu0 0.0
        %1683 = vmatpush1.msra.mxu0 0.0
        %1684 = vmatprep.subr.mxu0 0.0
        %1685 = vmatpush1.msra.mxu0 0.0
        %1686 = vmatprep.subr.mxu0 0.0
        %1687 = vmatpush1.msra.mxu0 0.0
        %1688 = vmatprep.subr.mxu0 0.0
        %1689 = vmatpush1.msra.mxu0 0.0
        %1690 = vmatprep.subr.mxu0 0.0
        %1691 = vmatpush1.msra.mxu0 0.0
        %1692 = vmatprep.subr.mxu0 0.0
        %1693 = vmatpush1.msra.mxu0 0.0
        %1694 = vmatprep.subr.mxu0 0.0
        %1695 = vmatpush1.msra.mxu0 0.0
        %1696 = vmatprep.subr.mxu0 0.0
        %1697 = vmatpush1.msra.mxu0 0.0
        %1698 = vmatprep.subr.mxu0 0.0
        %1699 = vmatpush1.msra.mxu0 0.0
        %1700 = vmatprep.subr.mxu0 0.0
        %1701 = vmatpush1.msra.mxu0 0.0
        %1702 = vmatprep.subr.mxu0 0.0
        %1703 = vmatpush1.msra.mxu0 0.0
        %1704 = vmatprep.subr.mxu0 0.0
        %1705 = vmatpush1.msra.mxu0 0.0
        %1706 = vmatprep.subr.mxu0 0.0
        %1707 = vmatpush1.msra.mxu0 0.0
        %1708 = vmatprep.subr.mxu0 0.0
        %1709 = vmatpush1.msra.mxu0 0.0
        %1710 = vmatprep.subr.mxu0 0.0
        %1711 = vmatpush1.msra.mxu0 0.0
        %1712 = vmatprep.mubr.f32.mxu0 0.0
        %v1713 = vand.u32 %v938, 4294901760
        %1714 = vmatmul.mubr.f32.gmra.mrb[0].mxu0 %v1713
        %v1715 = vpop.f32.mrb[0].mxu0
        %v1716 = vadd.f32 %v1623, %v1715
        %v1717 = vpop.f32.mrb[0].mxu0
        %1718 = vmatprep.mubr.f32.mxu0 0.0
        %v1719 = vand.u32 %v939, 4294901760
        %1720 = vmatmul.mubr.f32.gmra.mrb[0].mxu0 %v1719
        %v1721 = vpop.f32.mrb[0].mxu0
        %v1722 = vadd.f32 %v1629, %v1721
        %v1723 = vpop.f32.mrb[0].mxu0
        %1724 = vdwg.mxu0
        %vm1725 = vcmp.lt.s32.totalorder %v941, 9
        %vm1726 = vcmp.lt.s32.totalorder %v942, 9
        %v1727 = vsel %vm1725, %v1716, 1e+30
        %v1728 = vsel %vm1726, %v1722, 1e+30
        %v1729 = vlaneseq
        %v1730 = vshrl.u32 %v1729, 7
        %v1731 = vsub.s32 0, %v1730
        %v1732 = vrot.slane %v1727, %v1731
        %vm1733 = vcmp.lt.f32.partialorder %v1732, %v1727
        %vm1734 = vcmp.lt.f32.partialorder %v1732, %v1728
        %v1735 = vsel %vm1733, 1, 0
        %v1736 = vsel %vm1734, 1, 0
        %v1737 = vcvt.s32.f32 %v1735
        %v1738 = vcvt.s32.f32 %v1736
        %v1739 = vadd.f32 %v1737, 0.0
        %v1740 = vadd.f32 %v1738, 0.0
        %vm1741 = vcmp.le.f32.partialorder %v1732, %v1727
        %vm1742 = vcmp.le.f32.partialorder %v1732, %v1728
        %v1743 = vsel %vm1741, 1, 0
        %v1744 = vsel %vm1742, 1, 0
        %v1745 = vcvt.s32.f32 %v1743
        %v1746 = vcvt.s32.f32 %v1744
        %v1747 = vadd.f32 %v1745, 0.0
        %v1748 = vadd.f32 %v1746, 0.0
        %v1749 = vlaneseq
        %v1750 = vshrl.u32 %v1749, 7
        %v1751 = vsub.s32 1, %v1750
        %v1752 = vrot.slane %v1727, %v1751
        %vm1753 = vcmp.lt.f32.partialorder %v1752, %v1727
        %vm1754 = vcmp.lt.f32.partialorder %v1752, %v1728
        %v1755 = vsel %vm1753, 1, 0
        %v1756 = vsel %vm1754, 1, 0
        %v1757 = vcvt.s32.f32 %v1755
        %v1758 = vcvt.s32.f32 %v1756
        %v1759 = vadd.f32 %v1739, %v1757
        %v1760 = vadd.f32 %v1740, %v1758
        %vm1761 = vcmp.le.f32.partialorder %v1752, %v1727
        %vm1762 = vcmp.le.f32.partialorder %v1752, %v1728
        %v1763 = vsel %vm1761, 1, 0
        %v1764 = vsel %vm1762, 1, 0
        %v1765 = vcvt.s32.f32 %v1763
        %v1766 = vcvt.s32.f32 %v1764
        %v1767 = vadd.f32 %v1747, %v1765
        %v1768 = vadd.f32 %v1748, %v1766
        %v1769 = vlaneseq
        %v1770 = vshrl.u32 %v1769, 7
        %v1771 = vsub.s32 2, %v1770
        %v1772 = vrot.slane %v1727, %v1771
        %vm1773 = vcmp.lt.f32.partialorder %v1772, %v1727
        %vm1774 = vcmp.lt.f32.partialorder %v1772, %v1728
        %v1775 = vsel %vm1773, 1, 0
        %v1776 = vsel %vm1774, 1, 0
        %v1777 = vcvt.s32.f32 %v1775
        %v1778 = vcvt.s32.f32 %v1776
        %v1779 = vadd.f32 %v1759, %v1777
        %v1780 = vadd.f32 %v1760, %v1778
        %vm1781 = vcmp.le.f32.partialorder %v1772, %v1727
        %vm1782 = vcmp.le.f32.partialorder %v1772, %v1728
        %v1783 = vsel %vm1781, 1, 0
        %v1784 = vsel %vm1782, 1, 0
        %v1785 = vcvt.s32.f32 %v1783
        %v1786 = vcvt.s32.f32 %v1784
        %v1787 = vadd.f32 %v1767, %v1785
        %v1788 = vadd.f32 %v1768, %v1786
        %v1789 = vlaneseq
        %v1790 = vshrl.u32 %v1789, 7
        %v1791 = vsub.s32 3, %v1790
        %v1792 = vrot.slane %v1727, %v1791
        %vm1793 = vcmp.lt.f32.partialorder %v1792, %v1727
        %vm1794 = vcmp.lt.f32.partialorder %v1792, %v1728
        %v1795 = vsel %vm1793, 1, 0
        %v1796 = vsel %vm1794, 1, 0
        %v1797 = vcvt.s32.f32 %v1795
        %v1798 = vcvt.s32.f32 %v1796
        %v1799 = vadd.f32 %v1779, %v1797
        %v1800 = vadd.f32 %v1780, %v1798
        %vm1801 = vcmp.le.f32.partialorder %v1792, %v1727
        %vm1802 = vcmp.le.f32.partialorder %v1792, %v1728
        %v1803 = vsel %vm1801, 1, 0
        %v1804 = vsel %vm1802, 1, 0
        %v1805 = vcvt.s32.f32 %v1803
        %v1806 = vcvt.s32.f32 %v1804
        %v1807 = vadd.f32 %v1787, %v1805
        %v1808 = vadd.f32 %v1788, %v1806
        %v1809 = vlaneseq
        %v1810 = vshrl.u32 %v1809, 7
        %v1811 = vsub.s32 4, %v1810
        %v1812 = vrot.slane %v1727, %v1811
        %vm1813 = vcmp.lt.f32.partialorder %v1812, %v1727
        %vm1814 = vcmp.lt.f32.partialorder %v1812, %v1728
        %v1815 = vsel %vm1813, 1, 0
        %v1816 = vsel %vm1814, 1, 0
        %v1817 = vcvt.s32.f32 %v1815
        %v1818 = vcvt.s32.f32 %v1816
        %v1819 = vadd.f32 %v1799, %v1817
        %v1820 = vadd.f32 %v1800, %v1818
        %vm1821 = vcmp.le.f32.partialorder %v1812, %v1727
        %vm1822 = vcmp.le.f32.partialorder %v1812, %v1728
        %v1823 = vsel %vm1821, 1, 0
        %v1824 = vsel %vm1822, 1, 0
        %v1825 = vcvt.s32.f32 %v1823
        %v1826 = vcvt.s32.f32 %v1824
        %v1827 = vadd.f32 %v1807, %v1825
        %v1828 = vadd.f32 %v1808, %v1826
        %v1829 = vlaneseq
        %v1830 = vshrl.u32 %v1829, 7
        %v1831 = vsub.s32 5, %v1830
        %v1832 = vrot.slane %v1727, %v1831
        %vm1833 = vcmp.lt.f32.partialorder %v1832, %v1727
        %vm1834 = vcmp.lt.f32.partialorder %v1832, %v1728
        %v1835 = vsel %vm1833, 1, 0
        %v1836 = vsel %vm1834, 1, 0
        %v1837 = vcvt.s32.f32 %v1835
        %v1838 = vcvt.s32.f32 %v1836
        %v1839 = vadd.f32 %v1819, %v1837
        %v1840 = vadd.f32 %v1820, %v1838
        %vm1841 = vcmp.le.f32.partialorder %v1832, %v1727
        %vm1842 = vcmp.le.f32.partialorder %v1832, %v1728
        %v1843 = vsel %vm1841, 1, 0
        %v1844 = vsel %vm1842, 1, 0
        %v1845 = vcvt.s32.f32 %v1843
        %v1846 = vcvt.s32.f32 %v1844
        %v1847 = vadd.f32 %v1827, %v1845
        %v1848 = vadd.f32 %v1828, %v1846
        %v1849 = vlaneseq
        %v1850 = vshrl.u32 %v1849, 7
        %v1851 = vsub.s32 6, %v1850
        %v1852 = vrot.slane %v1727, %v1851
        %vm1853 = vcmp.lt.f32.partialorder %v1852, %v1727
        %vm1854 = vcmp.lt.f32.partialorder %v1852, %v1728
        %v1855 = vsel %vm1853, 1, 0
        %v1856 = vsel %vm1854, 1, 0
        %v1857 = vcvt.s32.f32 %v1855
        %v1858 = vcvt.s32.f32 %v1856
        %v1859 = vadd.f32 %v1839, %v1857
        %v1860 = vadd.f32 %v1840, %v1858
        %vm1861 = vcmp.le.f32.partialorder %v1852, %v1727
        %vm1862 = vcmp.le.f32.partialorder %v1852, %v1728
        %v1863 = vsel %vm1861, 1, 0
        %v1864 = vsel %vm1862, 1, 0
        %v1865 = vcvt.s32.f32 %v1863
        %v1866 = vcvt.s32.f32 %v1864
        %v1867 = vadd.f32 %v1847, %v1865
        %v1868 = vadd.f32 %v1848, %v1866
        %v1869 = vlaneseq
        %v1870 = vshrl.u32 %v1869, 7
        %v1871 = vsub.s32 7, %v1870
        %v1872 = vrot.slane %v1727, %v1871
        %vm1873 = vcmp.lt.f32.partialorder %v1872, %v1727
        %vm1874 = vcmp.lt.f32.partialorder %v1872, %v1728
        %v1875 = vsel %vm1873, 1, 0
        %v1876 = vsel %vm1874, 1, 0
        %v1877 = vcvt.s32.f32 %v1875
        %v1878 = vcvt.s32.f32 %v1876
        %v1879 = vadd.f32 %v1859, %v1877
        %v1880 = vadd.f32 %v1860, %v1878
        %vm1881 = vcmp.le.f32.partialorder %v1872, %v1727
        %vm1882 = vcmp.le.f32.partialorder %v1872, %v1728
        %v1883 = vsel %vm1881, 1, 0
        %v1884 = vsel %vm1882, 1, 0
        %v1885 = vcvt.s32.f32 %v1883
        %v1886 = vcvt.s32.f32 %v1884
        %v1887 = vadd.f32 %v1867, %v1885
        %v1888 = vadd.f32 %v1868, %v1886
        %v1889 = vlaneseq
        %v1890 = vshrl.u32 %v1889, 7
        %v1891 = vsub.s32 0, %v1890
        %v1892 = vrot.slane %v1728, %v1891
        %vm1893 = vcmp.lt.f32.partialorder %v1892, %v1727
        %vm1894 = vcmp.lt.f32.partialorder %v1892, %v1728
        %v1895 = vsel %vm1893, 1, 0
        %v1896 = vsel %vm1894, 1, 0
        %v1897 = vcvt.s32.f32 %v1895
        %v1898 = vcvt.s32.f32 %v1896
        %v1899 = vadd.f32 %v1879, %v1897
        %v1900 = vadd.f32 %v1880, %v1898
        %vm1901 = vcmp.le.f32.partialorder %v1892, %v1727
        %vm1902 = vcmp.le.f32.partialorder %v1892, %v1728
        %v1903 = vsel %vm1901, 1, 0
        %v1904 = vsel %vm1902, 1, 0
        %v1905 = vcvt.s32.f32 %v1903
        %v1906 = vcvt.s32.f32 %v1904
        %v1907 = vadd.f32 %v1887, %v1905
        %v1908 = vadd.f32 %v1888, %v1906
        %v1909 = vlaneseq
        %v1910 = vshrl.u32 %v1909, 7
        %v1911 = vsub.s32 1, %v1910
        %v1912 = vrot.slane %v1728, %v1911
        %vm1913 = vcmp.lt.f32.partialorder %v1912, %v1727
        %vm1914 = vcmp.lt.f32.partialorder %v1912, %v1728
        %v1915 = vsel %vm1913, 1, 0
        %v1916 = vsel %vm1914, 1, 0
        %v1917 = vcvt.s32.f32 %v1915
        %v1918 = vcvt.s32.f32 %v1916
        %v1919 = vadd.f32 %v1899, %v1917
        %v1920 = vadd.f32 %v1900, %v1918
        %vm1921 = vcmp.le.f32.partialorder %v1912, %v1727
        %vm1922 = vcmp.le.f32.partialorder %v1912, %v1728
        %v1923 = vsel %vm1921, 1, 0
        %v1924 = vsel %vm1922, 1, 0
        %v1925 = vcvt.s32.f32 %v1923
        %v1926 = vcvt.s32.f32 %v1924
        %v1927 = vadd.f32 %v1907, %v1925
        %v1928 = vadd.f32 %v1908, %v1926
        %v1929 = vlaneseq
        %v1930 = vshrl.u32 %v1929, 7
        %v1931 = vsub.s32 2, %v1930
        %v1932 = vrot.slane %v1728, %v1931
        %vm1933 = vcmp.lt.f32.partialorder %v1932, %v1727
        %vm1934 = vcmp.lt.f32.partialorder %v1932, %v1728
        %v1935 = vsel %vm1933, 1, 0
        %v1936 = vsel %vm1934, 1, 0
        %v1937 = vcvt.s32.f32 %v1935
        %v1938 = vcvt.s32.f32 %v1936
        %v1939 = vadd.f32 %v1919, %v1937
        %v1940 = vadd.f32 %v1920, %v1938
        %vm1941 = vcmp.le.f32.partialorder %v1932, %v1727
        %vm1942 = vcmp.le.f32.partialorder %v1932, %v1728
        %v1943 = vsel %vm1941, 1, 0
        %v1944 = vsel %vm1942, 1, 0
        %v1945 = vcvt.s32.f32 %v1943
        %v1946 = vcvt.s32.f32 %v1944
        %v1947 = vadd.f32 %v1927, %v1945
        %v1948 = vadd.f32 %v1928, %v1946
        %v1949 = vlaneseq
        %v1950 = vshrl.u32 %v1949, 7
        %v1951 = vsub.s32 3, %v1950
        %v1952 = vrot.slane %v1728, %v1951
        %vm1953 = vcmp.lt.f32.partialorder %v1952, %v1727
        %vm1954 = vcmp.lt.f32.partialorder %v1952, %v1728
        %v1955 = vsel %vm1953, 1, 0
        %v1956 = vsel %vm1954, 1, 0
        %v1957 = vcvt.s32.f32 %v1955
        %v1958 = vcvt.s32.f32 %v1956
        %v1959 = vadd.f32 %v1939, %v1957
        %v1960 = vadd.f32 %v1940, %v1958
        %vm1961 = vcmp.le.f32.partialorder %v1952, %v1727
        %vm1962 = vcmp.le.f32.partialorder %v1952, %v1728
        %v1963 = vsel %vm1961, 1, 0
        %v1964 = vsel %vm1962, 1, 0
        %v1965 = vcvt.s32.f32 %v1963
        %v1966 = vcvt.s32.f32 %v1964
        %v1967 = vadd.f32 %v1947, %v1965
        %v1968 = vadd.f32 %v1948, %v1966
        %v1969 = vlaneseq
        %v1970 = vshrl.u32 %v1969, 7
        %v1971 = vsub.s32 4, %v1970
        %v1972 = vrot.slane %v1728, %v1971
        %vm1973 = vcmp.lt.f32.partialorder %v1972, %v1727
        %vm1974 = vcmp.lt.f32.partialorder %v1972, %v1728
        %v1975 = vsel %vm1973, 1, 0
        %v1976 = vsel %vm1974, 1, 0
        %v1977 = vcvt.s32.f32 %v1975
        %v1978 = vcvt.s32.f32 %v1976
        %v1979 = vadd.f32 %v1959, %v1977
        %v1980 = vadd.f32 %v1960, %v1978
        %vm1981 = vcmp.le.f32.partialorder %v1972, %v1727
        %vm1982 = vcmp.le.f32.partialorder %v1972, %v1728
        %v1983 = vsel %vm1981, 1, 0
        %v1984 = vsel %vm1982, 1, 0
        %v1985 = vcvt.s32.f32 %v1983
        %v1986 = vcvt.s32.f32 %v1984
        %v1987 = vadd.f32 %v1967, %v1985
        %v1988 = vadd.f32 %v1968, %v1986
        %v1989 = vlaneseq
        %v1990 = vshrl.u32 %v1989, 7
        %v1991 = vsub.s32 5, %v1990
        %v1992 = vrot.slane %v1728, %v1991
        %vm1993 = vcmp.lt.f32.partialorder %v1992, %v1727
        %vm1994 = vcmp.lt.f32.partialorder %v1992, %v1728
        %v1995 = vsel %vm1993, 1, 0
        %v1996 = vsel %vm1994, 1, 0
        %v1997 = vcvt.s32.f32 %v1995
        %v1998 = vcvt.s32.f32 %v1996
        %v1999 = vadd.f32 %v1979, %v1997
        %v2000 = vadd.f32 %v1980, %v1998
        %vm2001 = vcmp.le.f32.partialorder %v1992, %v1727
        %vm2002 = vcmp.le.f32.partialorder %v1992, %v1728
        %v2003 = vsel %vm2001, 1, 0
        %v2004 = vsel %vm2002, 1, 0
        %v2005 = vcvt.s32.f32 %v2003
        %v2006 = vcvt.s32.f32 %v2004
        %v2007 = vadd.f32 %v1987, %v2005
        %v2008 = vadd.f32 %v1988, %v2006
        %v2009 = vlaneseq
        %v2010 = vshrl.u32 %v2009, 7
        %v2011 = vsub.s32 6, %v2010
        %v2012 = vrot.slane %v1728, %v2011
        %vm2013 = vcmp.lt.f32.partialorder %v2012, %v1727
        %vm2014 = vcmp.lt.f32.partialorder %v2012, %v1728
        %v2015 = vsel %vm2013, 1, 0
        %v2016 = vsel %vm2014, 1, 0
        %v2017 = vcvt.s32.f32 %v2015
        %v2018 = vcvt.s32.f32 %v2016
        %v2019 = vadd.f32 %v1999, %v2017
        %v2020 = vadd.f32 %v2000, %v2018
        %vm2021 = vcmp.le.f32.partialorder %v2012, %v1727
        %vm2022 = vcmp.le.f32.partialorder %v2012, %v1728
        %v2023 = vsel %vm2021, 1, 0
        %v2024 = vsel %vm2022, 1, 0
        %v2025 = vcvt.s32.f32 %v2023
        %v2026 = vcvt.s32.f32 %v2024
        %v2027 = vadd.f32 %v2007, %v2025
        %v2028 = vadd.f32 %v2008, %v2026
        %v2029 = vlaneseq
        %v2030 = vshrl.u32 %v2029, 7
        %v2031 = vsub.s32 7, %v2030
        %v2032 = vrot.slane %v1728, %v2031
        %vm2033 = vcmp.lt.f32.partialorder %v2032, %v1727
        %vm2034 = vcmp.lt.f32.partialorder %v2032, %v1728
        %v2035 = vsel %vm2033, 1, 0
        %v2036 = vsel %vm2034, 1, 0
        %v2037 = vcvt.s32.f32 %v2035
        %v2038 = vcvt.s32.f32 %v2036
        %v2039 = vadd.f32 %v2019, %v2037
        %v2040 = vadd.f32 %v2020, %v2038
        %vm2041 = vcmp.le.f32.partialorder %v2032, %v1727
        %vm2042 = vcmp.le.f32.partialorder %v2032, %v1728
        %v2043 = vsel %vm2041, 1, 0
        %v2044 = vsel %vm2042, 1, 0
        %v2045 = vcvt.s32.f32 %v2043
        %v2046 = vcvt.s32.f32 %v2044
        %v2047 = vadd.f32 %v2027, %v2045
        %v2048 = vadd.f32 %v2028, %v2046
        %vm2049 = vcmp.le.f32.partialorder %v2039, 4.0
        %vm2050 = vcmp.le.f32.partialorder %v2040, 4.0
        %vm2051 = vcmp.gt.f32.partialorder %v2047, 4.0
        %vm2052 = vcmp.gt.f32.partialorder %v2048, 4.0
        %vm2053 = vmand %vm2049, %vm2051
        %vm2054 = vmand %vm2050, %vm2052
        %v2055 = vsel %vm2053, %v1727, -1.0
        %v2056 = vsel %vm2054, %v1728, -1.0
        %vm2057 = vcmask 64512
        %v2058 = vsel %vm2057, %v2055, -inf
        %v2059 = vsel %vm2057, %v2056, -inf
        %v2060 = vmax.f32 %v2058, %v2059
        %v2061 = vrot.slane %v2060, 4
        %v2062 = vmax.f32 %v2060, %v2061
        %v2063 = vrot.slane %v2062, 2
        %v2064 = vmax.f32 %v2062, %v2063
        %v2065 = vrot.slane %v2064, 1
        %v2066 = vmax.f32 %v2064, %v2065
        %s2067 = sld [smem:[#allocation2]]
        %v2068 = vadd.f32 %v2066, 1e-06
        %v2069 = vstv %s2067
        %v2070 = vmul.f32 %v2069, %v2068
        %vm2071 = vcmp.gt.f32.partialorder %v1716, %v2070
        %vm2072 = vcmp.gt.f32.partialorder %v1722, %v2070
        %v2073 = vsel %vm2071, 1, 0
        %v2074 = vsel %vm2072, 1, 0
        %v2075 = vcvt.s32.f32 %v2073
        %v2076 = vcvt.s32.f32 %v2074
        %v2077 = vpack.c.bf16 %v2076, %v2075
        %v2078 = vmul.u32 %v941, 64
        %vm2079 = vcmp.ge.s32.totalorder %v958, %v2078
        %v2080 = vadd.s32 %v2078, 64
        %vm2081 = vcmp.lt.s32.totalorder %v958, %v2080
        %vm2082 = vmand %vm2079, %vm2081
        %v2083 = vsel %vm2082, 1, 0
        %v2084 = vcvt.s32.f32 %v2083
        %v2085 = vpack.c.bf16 %v2084, %v2084
        %v2087 = vsel %vm2057, %v2077, 0
        %vm2089 = vcmask 1043456
        %v2091 = vsel %vm2089, %v2085, 0
        %2093 = vmatprep.subr.bf16.mxu0 0
        %2094 = vmatpush1.bf16.msra.mxu0 %v2091
        %2095 = vmatprep.subr.bf16.mxu0 0
        %2096 = vmatpush1.bf16.msra.mxu0 0
        %2097 = vmatprep.subr.bf16.mxu0 0
        %2098 = vmatpush1.bf16.msra.mxu0 0
        %2099 = vmatprep.subr.bf16.mxu0 0
        %2100 = vmatpush1.bf16.msra.mxu0 0
        %2101 = vmatprep.subr.bf16.mxu0 0
        %2102 = vmatpush1.bf16.msra.mxu0 0
        %2103 = vmatprep.subr.bf16.mxu0 0
        %2104 = vmatpush1.bf16.msra.mxu0 0
        %2105 = vmatprep.subr.bf16.mxu0 0
        %2106 = vmatpush1.bf16.msra.mxu0 0
        %2107 = vmatprep.subr.bf16.mxu0 0
        %2108 = vmatpush1.bf16.msra.mxu0 0
        %2109 = vmatprep.subr.bf16.mxu0 0
        %2110 = vmatpush1.bf16.msra.mxu0 0
        %2111 = vmatprep.subr.bf16.mxu0 0
        %2112 = vmatpush1.bf16.msra.mxu0 0
        %2113 = vmatprep.subr.bf16.mxu0 0
        %2114 = vmatpush1.bf16.msra.mxu0 0
        %2115 = vmatprep.subr.bf16.mxu0 0
        %2116 = vmatpush1.bf16.msra.mxu0 0
        %2117 = vmatprep.subr.bf16.mxu0 0
        %2118 = vmatpush1.bf16.msra.mxu0 0
        %2119 = vmatprep.subr.bf16.mxu0 0
        %2120 = vmatpush1.bf16.msra.mxu0 0
        %2121 = vmatprep.subr.bf16.mxu0 0
        %2122 = vmatpush1.bf16.msra.mxu0 0
        %2123 = vmatprep.subr.bf16.mxu0 0
        %2124 = vmatpush1.bf16.msra.mxu0 0
        %2125 = vmatprep.mubr.bf16.mxu0 0
        %2126 = vmatmul.mubr.bf16.gmra.mrb[0].mxu0 %v2087
        %v2127 = vpop.f32.mrb[0].mxu0
        %v2128 = vadd.f32 0.0, %v2127
        %v2129 = vpop.f32.mrb[0].mxu0
        %v2130 = vpop.f32.mrb[0].mxu0
        %v2131 = vadd.f32 0.0, %v2130
        %v2132 = vpop.f32.mrb[0].mxu0
        %2133 = vdwg.mxu0
        %v2134 = vld [vmem:[#allocation11] sm:$0x1]
        %v2135 = vld [vmem:[#allocation11 + $0x1] sm:$0x1]
        %v2136 = vld [vmem:[#allocation11 + $0x2] sm:$0x1]
        %v2137 = vld [vmem:[#allocation11 + $0x3] sm:$0x1]
        %v2138 = vlaneseq
        %v2139 = vshrl.u32 %v2138, 7
        %v2140 = vsub.s32 0, %v2139
        %v2141 = vrot.slane %v2136, %v2140
        %v2142 = vmul.f32 %v2128, %v2141
        %v2143 = vmul.f32 %v2131, %v2141
        %v2144 = vlaneseq
        %v2145 = vshrl.u32 %v2144, 7
        %v2146 = vsub.s32 0, %v2145
        %v2147 = vrot.slane %v2134, %v2146
        %v2148 = vadd.f32 %v2147, %v2142
        %v2149 = vadd.f32 %v2147, %v2143
        %v2150 = vlaneseq
        %v2151 = vshrl.u32 %v2150, 7
        %v2152 = vsub.s32 0, %v2151
        %v2153 = vrot.slane %v2137, %v2152
        %v2154 = vmul.f32 %v2128, %v2153
        %v2155 = vmul.f32 %v2131, %v2153
        %v2156 = vlaneseq
        %v2157 = vshrl.u32 %v2156, 7
        %v2158 = vsub.s32 0, %v2157
        %v2159 = vrot.slane %v2135, %v2158
        %v2160 = vadd.f32 %v2159, %v2154
        %v2161 = vadd.f32 %v2159, %v2155
        %v2162 = vmul.f32 %v913, %v2148
        %v2163 = vmul.f32 %v919, %v2149
        %v2164 = vmul.f32 %v925, %v2160
        %v2165 = vmul.f32 %v931, %v2161
        %v2166 = vsub.f32 %v2162, %v2164
        %v2167 = vsub.f32 %v2163, %v2165
        %v2168 = vpack.c.bf16 %v2167, %v2166
        %v2169 = vmul.f32 %v913, %v2160
        %v2170 = vmul.f32 %v919, %v2161
        %v2171 = vmul.f32 %v925, %v2148
        %v2172 = vmul.f32 %v931, %v2149
        %v2173 = vadd.f32 %v2169, %v2171
        %v2174 = vadd.f32 %v2170, %v2172
        %v2175 = vpack.c.bf16 %v2174, %v2173
        %v2176 = vld [vmem:[#allocation8] sm:$0xf]
        %v2177 = vld [vmem:[#allocation8 + $0x4] sm:$0xf]
        %v2178 = vld [vmem:[#allocation9] sm:$0xf]
        %v2179 = vld [vmem:[#allocation9 + $0x4] sm:$0xf]
        %v2182 = vunpack.c.l.b16 %v2178
        %v2183 = vunpack.c.l.b16 %v2179
        %v2184 = vpack.c.b16 %v2183, %v2182
        %v2186 = vsel %vm333, %v2184, 0
        %2188 = vmatprep.subr.bf16.mxu0 0
        %2189 = vmatpush1.bf16.msra.mxu0 %v2175
        %2190 = vmatprep.subr.bf16.mxu0 0
        %2191 = vmatpush1.bf16.msra.mxu0 0
        %2192 = vmatprep.subr.bf16.mxu0 0
        %2193 = vmatpush1.bf16.msra.mxu0 0
        %2194 = vmatprep.subr.bf16.mxu0 0
        %2195 = vmatpush1.bf16.msra.mxu0 0
        %2196 = vmatprep.subr.bf16.mxu0 0
        %2197 = vmatpush1.bf16.msra.mxu0 0
        %2198 = vmatprep.subr.bf16.mxu0 0
        %2199 = vmatpush1.bf16.msra.mxu0 0
        %2200 = vmatprep.subr.bf16.mxu0 0
        %2201 = vmatpush1.bf16.msra.mxu0 0
        %2202 = vmatprep.subr.bf16.mxu0 0
        %2203 = vmatpush1.bf16.msra.mxu0 0
        %2204 = vmatprep.subr.bf16.mxu0 0
        %2205 = vmatpush1.bf16.msra.mxu0 0
        %2206 = vmatprep.subr.bf16.mxu0 0
        %2207 = vmatpush1.bf16.msra.mxu0 0
        %2208 = vmatprep.subr.bf16.mxu0 0
        %2209 = vmatpush1.bf16.msra.mxu0 0
        %2210 = vmatprep.subr.bf16.mxu0 0
        %2211 = vmatpush1.bf16.msra.mxu0 0
        %2212 = vmatprep.subr.bf16.mxu0 0
        %2213 = vmatpush1.bf16.msra.mxu0 0
        %2214 = vmatprep.subr.bf16.mxu0 0
        %2215 = vmatpush1.bf16.msra.mxu0 0
        %2216 = vmatprep.subr.bf16.mxu0 0
        %2217 = vmatpush1.bf16.msra.mxu0 0
        %2218 = vmatprep.subr.bf16.mxu0 0
        %2219 = vmatpush1.bf16.msra.mxu0 0
        %2220 = vmatprep.mubr.bf16.mxu0 0
        %2221 = vmatmul.mubr.bf16.gmra.mrb[0].mxu0 %v2186
        %v2222 = vpop.f32.mrb[0].mxu0
        %v2223 = vadd.f32 0.0, %v2222
        %v2224 = vpop.f32.mrb[0].mxu0
        %v2225 = vpop.f32.mrb[0].mxu0
        %v2226 = vadd.f32 0.0, %v2225
        %v2227 = vpop.f32.mrb[0].mxu0
        %2228 = vdwg.mxu0
        %v2231 = vunpack.c.l.b16 %v2176
        %v2232 = vunpack.c.l.b16 %v2177
        %v2233 = vpack.c.b16 %v2232, %v2231
        %v2235 = vsel %vm333, %v2233, 0
        %2237 = vmatprep.subr.bf16.mxu0 0
        %2238 = vmatpush1.bf16.msra.mxu0 %v2168
        %2239 = vmatprep.subr.bf16.mxu0 0
        %2240 = vmatpush1.bf16.msra.mxu0 0
        %2241 = vmatprep.subr.bf16.mxu0 0
        %2242 = vmatpush1.bf16.msra.mxu0 0
        %2243 = vmatprep.subr.bf16.mxu0 0
        %2244 = vmatpush1.bf16.msra.mxu0 0
        %2245 = vmatprep.subr.bf16.mxu0 0
        %2246 = vmatpush1.bf16.msra.mxu0 0
        %2247 = vmatprep.subr.bf16.mxu0 0
        %2248 = vmatpush1.bf16.msra.mxu0 0
        %2249 = vmatprep.subr.bf16.mxu0 0
        %2250 = vmatpush1.bf16.msra.mxu0 0
        %2251 = vmatprep.subr.bf16.mxu0 0
        %2252 = vmatpush1.bf16.msra.mxu0 0
        %2253 = vmatprep.subr.bf16.mxu0 0
        %2254 = vmatpush1.bf16.msra.mxu0 0
        %2255 = vmatprep.subr.bf16.mxu0 0
        %2256 = vmatpush1.bf16.msra.mxu0 0
        %2257 = vmatprep.subr.bf16.mxu0 0
        %2258 = vmatpush1.bf16.msra.mxu0 0
        %2259 = vmatprep.subr.bf16.mxu0 0
        %2260 = vmatpush1.bf16.msra.mxu0 0
        %2261 = vmatprep.subr.bf16.mxu0 0
        %2262 = vmatpush1.bf16.msra.mxu0 0
        %2263 = vmatprep.subr.bf16.mxu0 0
        %2264 = vmatpush1.bf16.msra.mxu0 0
        %2265 = vmatprep.subr.bf16.mxu0 0
        %2266 = vmatpush1.bf16.msra.mxu0 0
        %2267 = vmatprep.subr.bf16.mxu0 0
        %2268 = vmatpush1.bf16.msra.mxu0 0
        %2269 = vmatprep.mubr.bf16.mxu0 0
        %2270 = vmatmul.mubr.bf16.gmra.mrb[0].mxu0 %v2235
        %v2271 = vpop.f32.mrb[0].mxu0
        %v2272 = vadd.f32 %v2223, %v2271
        %v2273 = vpop.f32.mrb[0].mxu0
        %v2274 = vpop.f32.mrb[0].mxu0
        %v2275 = vadd.f32 %v2226, %v2274
        %v2276 = vpop.f32.mrb[0].mxu0
        %2277 = vdwg.mxu0
        %2278 = vst [vmem:[%s325] sm:$0xff] %v2272
        %2279 = vst [vmem:[%s325 + $0x8] sm:$0xff] %v2275
        %s2280 = sand.u32 %s165, 1
        %s2281 = scalar_lea.sflag [#allocation5], %s2280
        %s2282 = sand.u32 %s165, 1
        %s2283 = smul.addr %s2282, 16
        %s2284 = scalar_lea.vmem [#allocation12], %s2283
        // Predicated region
        $region65: #{tpu_custom_call.1} parent=43 // pred_check
          %p2285 = pneg %p175
        $region66: #{tpu_custom_call.1} parent=43 // pred_check_branch
          %2287 = sbr.rel (%p2285) target = $region68
        $region67: #{tpu_custom_call.1} parent=43 // pred_region
          %s2289 = ssub.s32 256, 256
          %2290 = vsyncadd %s2281, %s2289
          %s2291 = smul.addr %s26, 128
          %s2292 = scalar_lea.hbm %s6, %s2291
          %s2293 = sshll.u32 %s2284, 4
          %s2294 = int_to_ptr.vmem [resolvable:$true] %s2293
          %2299 = dma.vmem_to_hbm [thread:$0]  %s2294, 256, %s2292, %s2281, 128, 512, 8
        $region68: #{tpu_custom_call.1} parent=43 // pred_fallthru
          _
      $region44: #{tpu_custom_call.1} parent=5 // pred_fallthru
        _
      %p2300 = scmp.le.s32.totalorder 2, %s21
      // Predicated region
      $region69: #{tpu_custom_call.1} parent=5 // pred_check
        %p2301 = pneg %p2300
      $region70: #{tpu_custom_call.1} parent=5 // pred_check_branch
        %2303 = sbr.rel (%p2301) target = $region72
      $region71: #{tpu_custom_call.1} parent=5 // pred_region
        %s2304 = ssub.s32 %s21, 2
        // Predicated region
        $region73: #{tpu_custom_call.1} parent=71 // pred_check
          %p2305 = pneg %p181
        $region74: #{tpu_custom_call.1} parent=71 // pred_check_branch
          %2307 = sbr.rel (%p2305) target = $region76
        $region75: #{tpu_custom_call.1} parent=71 // pred_region
          %s2308 = sand.u32 %s166, 1
          %s2309 = scalar_lea.sflag [#allocation5], %s2308
          %s2310 = sand.u32 %s166, 1
          %s2311 = smul.addr %s2310, 16
          %s2312 = scalar_lea.vmem [#allocation12], %s2311
          %2313 = dma.done %s2309, 256
        $region76: #{tpu_custom_call.1} parent=71 // pred_fallthru
          _
      $region72: #{tpu_custom_call.1} parent=5 // pred_fallthru
        _
    $region6: #{tpu_custom_call.1} parent=1 // loop_footer
      %s25 = sadd.s32 1, %s21
    $region7: #{tpu_custom_call.1} parent=1 // loop_footer_branch
      %20 = sbr.rel target = $region3
    $region8: #{tpu_custom_call.1} parent=1 // loop_exit
      _
    %2314 = vsyncpa [#allocation4], 1
    %s2315 = scalar_lea.sflag [#allocation4], 1
    %2316 = vsyncpa %s2315, 1
    %2317 = vsyncpa [#allocation7], 1
    %2318 = vsyncpa [#allocation10], 1
    %2319 = vsyncpa [#allocation5], 1
    %s2320 = scalar_lea.sflag [#allocation5], 1
    %2321 = vsyncpa %s2320, 1

</llo_original>
